<compile_context>
chip_gen: v7x
topology: tpu7x:2x2x1
jax: 0.10.0
libtpu: 0.0.40
codegen_flags: <defaults>
</compile_context>

<pallas_src>
import functools

import numpy as np
import jax
import jax.numpy as jnp
from jax import lax
from jax.experimental import pallas as pl
from jax.experimental.pallas import tpu as pltpu


# -----------------------------------------------------------------------------
# Gray-labeled QAM constellation helpers (Sionna convention), numpy-only.
# -----------------------------------------------------------------------------
def _pam_gray(b):
    if len(b) > 1:
        return (1 - 2 * b[0]) * (2 ** len(b[1:]) - _pam_gray(b[1:]))
    return 1 - 2 * b[0]


def _qam_norm(n_axis_bits):
    n = n_axis_bits
    var = 1 / (2 ** (n - 2)) * np.sum(np.linspace(1, 2 ** n - 1, 2 ** (n - 1)) ** 2)
    return np.sqrt(var)


def qam_constellation(num_bits_per_symbol):
    assert num_bits_per_symbol % 2 == 0
    p = 2 ** num_bits_per_symbol
    c = np.zeros(p, dtype=np.complex64)
    for i in range(p):
        b = np.array(list(np.binary_repr(i, num_bits_per_symbol)), dtype=np.int16)
        c[i] = _pam_gray(b[0::2]) + 1j * _pam_gray(b[1::2])
    return (c / _qam_norm(num_bits_per_symbol // 2)).astype(np.complex64)


def bit_labels_msb_first(num_bits_per_symbol):
    # bits[j, p] = j-th bit (MSB first) of the binary label of point p
    p = 2 ** num_bits_per_symbol
    bits = np.zeros((num_bits_per_symbol, p), dtype=np.float32)
    for i in range(p):
        bits[:, i] = np.array(list(np.binary_repr(i, num_bits_per_symbol)),
                              dtype=np.float32)
    return bits


def pam_levels_and_bits(num_bits_per_symbol):
    """1-D Gray-PAM levels + per-bit labels of one I/Q axis (square QAM)."""
    n = num_bits_per_symbol // 2
    lp = 2 ** n
    levels = np.zeros(lp, dtype=np.float64)
    bits = np.zeros((n, lp), dtype=np.int32)
    for i in range(lp):
        b = np.array(list(np.binary_repr(i, n)), dtype=np.int16)
        levels[i] = _pam_gray(b)
        bits[:, i] = b
    levels = levels / _qam_norm(n)
    return (tuple(float(v) for v in levels),
            tuple(tuple(int(v) for v in row) for row in bits))


# -----------------------------------------------------------------------------
# Fused kernel: Gram + unrolled complex Cholesky solve + LMMSE + max-log.
# Layout: batch on (sublane, lane) = (8, 128); every per-batch value is a full
# (8, TB) vreg plane.
# -----------------------------------------------------------------------------
def _recip(x):
    # EUP approximate reciprocal + one Newton refinement (full f32 accuracy).
    r = pl.reciprocal(x, approx=True)
    return r * (2.0 - x * r)


def _lmmse_maxlog_kernel(K, M, num_bits, pam_levels, pam_bits,
                         h_ref, y_ref, llr_ref):
    """h_ref: (2K, M, 8, TB) real planes [0:K], imag planes [K:2K] of whitened H^T
       y_ref: (2, M, 8, TB)  real/imag planes of whitened y
       llr_ref: (K*num_bits, 8, TB)"""
    n_axis_bits = num_bits // 2
    lp = len(pam_levels)

    # --- Gram A = H^H H + I (upper triangle) and b = H^H y, accumulate over m --
    Ar = [[None] * K for _ in range(K)]
    Ai = [[None] * K for _ in range(K)]
    br = [None] * K
    bi = [None] * K
    for m in range(M):
        hr = [h_ref[k, m] for k in range(K)]        # (8, TB) each
        hi = [h_ref[K + k, m] for k in range(K)]
        yr = y_ref[0, m]
        yi = y_ref[1, m]
        for j in range(K):
            for c in range(j, K):
                rr = hr[j] * hr[c] + hi[j] * hi[c]
                Ar[j][c] = rr if m == 0 else Ar[j][c] + rr
                if c != j:
                    ii = hr[j] * hi[c] - hi[j] * hr[c]
                    Ai[j][c] = ii if m == 0 else Ai[j][c] + ii
            pr = hr[j] * yr + hi[j] * yi
            pi = hr[j] * yi - hi[j] * yr
            br[j] = pr if m == 0 else br[j] + pr
            bi[j] = pi if m == 0 else bi[j] + pi
    for j in range(K):
        Ar[j][j] = Ar[j][j] + 1.0        # + I (post-whitening noise cov = I)

    # --- Complex Cholesky A = L L^H (unrolled; A is HPD, no pivoting) ---------
    # Only off-diagonal L entries and 1/L[j][j] are ever needed downstream.
    Lr = [[None] * K for _ in range(K)]
    Li = [[None] * K for _ in range(K)]
    inv_diag = [None] * K
    for j in range(K):
        d = Ar[j][j]
        for p in range(j):
            d = d - (Lr[j][p] * Lr[j][p] + Li[j][p] * Li[j][p])
        d = jnp.maximum(d, 1e-12)
        inv_d = lax.rsqrt(d)             # 1 / L[j][j]  (EUP)
        inv_diag[j] = inv_d
        for i in range(j + 1, K):
            sr = Ar[j][i]                # A[i][j] = conj(A[j][i])
            si = -Ai[j][i]
            for p in range(j):           # s -= L[i][p] * conj(L[j][p])
                sr = sr - (Lr[i][p] * Lr[j][p] + Li[i][p] * Li[j][p])
                si = si - (Li[i][p] * Lr[j][p] - Lr[i][p] * Li[j][p])
            Lr[i][j] = sr * inv_d
            Li[i][j] = si * inv_d

    # --- z = A^-1 b via forward (L u = b) then backward (L^H z = u) -----------
    ur = [None] * K
    ui = [None] * K
    for i in range(K):
        sr = br[i]
        si = bi[i]
        for p in range(i):
            sr = sr - (Lr[i][p] * ur[p] - Li[i][p] * ui[p])
            si = si - (Lr[i][p] * ui[p] + Li[i][p] * ur[p])
        ur[i] = sr * inv_diag[i]
        ui[i] = si * inv_diag[i]
    zr = [None] * K
    zi = [None] * K
    for i in reversed(range(K)):
        sr = ur[i]
        si = ui[i]
        for p in range(i + 1, K):        # (L^H)[i][p] = conj(L[p][i])
            sr = sr - (Lr[p][i] * zr[p] + Li[p][i] * zi[p])
            si = si - (Lr[p][i] * zi[p] - Li[p][i] * zr[p])
        zr[i] = sr * inv_diag[i]
        zi[i] = si * inv_diag[i]

    # --- diag(A^-1)_kk = sum_{i>=k} |(L^-1)[i][k]|^2 (K short fwd-substs) ------
    diagA = [None] * K
    for k in range(K):
        vr = {k: inv_diag[k]}            # column k of L^-1 ; v[k] is real
        vi = {}
        acc = inv_diag[k] * inv_diag[k]
        for i in range(k + 1, K):
            sr = Lr[i][k] * vr[k]
            si = Li[i][k] * vr[k]
            for p in range(k + 1, i):
                sr = sr + Lr[i][p] * vr[p] - Li[i][p] * vi[p]
                si = si + Lr[i][p] * vi[p] + Li[i][p] * vr[p]
            vr[i] = -sr * inv_diag[i]
            vi[i] = -si * inv_diag[i]
            acc = acc + vr[i] * vr[i] + vi[i] * vi[i]
        diagA[k] = acc

    # --- LMMSE scaling + Gray-QAM I/Q-separable max-log demapping -------------
    def axis_llrs(x_ax):
        # max-log LLRs of the bits carried by one I/Q axis (1-D Gray PAM); the
        # other axis cancels exactly for square Gray-mapped QAM.
        if lp == 2:                      # QPSK per-axis closed form
            l0 = pam_levels[pam_bits[0].index(0)]
            l1 = pam_levels[pam_bits[0].index(1)]
            v = (2.0 * (l1 - l0)) * x_ax
            const = l0 * l0 - l1 * l1
            if const != 0.0:
                v = v + const
            return [v]
        mets = []
        for lvl in pam_levels:
            dlt = x_ax - lvl
            mets.append(-(dlt * dlt))
        out = []
        for mb in range(n_axis_bits):
            e1 = functools.reduce(jnp.maximum,
                                  [mets[l] for l in range(lp) if pam_bits[mb][l] == 1])
            e0 = functools.reduce(jnp.maximum,
                                  [mets[l] for l in range(lp) if pam_bits[mb][l] == 0])
            out.append(e1 - e0)
        return out

    for k in range(K):
        diag_k = jnp.maximum(diagA[k], 1e-20)
        d_k = jnp.maximum(1.0 - diag_k, 1e-20)     # d_k = (G H)_kk  (real)
        inv_d = _recip(d_k)
        x_r = zr[k] * inv_d                        # x_hat_k = z_k / d_k
        x_i = zi[k] * inv_d
        inv_no_eff = d_k * _recip(diag_k)          # 1/no_eff = d_k / (A^-1)_kk

        re_l = axis_llrs(x_r)
        im_l = axis_llrs(x_i)
        for jb in range(num_bits):                 # even bits -> I, odd -> Q
            v = re_l[jb // 2] if (jb % 2 == 0) else im_l[jb // 2]
            llr_ref[k * num_bits + jb] = v * inv_no_eff   # dense (8,TB) store


# -----------------------------------------------------------------------------
# Wrapper = LinearDetector.forward
# -----------------------------------------------------------------------------
def linear_detector_forward(y, h, s, pam_levels, pam_bits, num_bits,
                            sub=8, lanes=128):
    B, M = y.shape
    K = h.shape[-1]
    R = K * num_bits

    # ---- whitening: y <- L^-1 y, H <- L^-1 H with L = cholesky(S) -------------
    # TODO(synk): complex batched Cholesky / triangular solves have no Pallas
    # TPU (Mosaic) equivalent (no complex dtype); kept as XLA glue upstream.
    Lc = jnp.linalg.cholesky(s)
    y_w = lax.linalg.triangular_solve(Lc, y[..., None], left_side=True, lower=True)[..., 0]
    h_w = lax.linalg.triangular_solve(Lc, h, left_side=True, lower=True)

    # ---- layout plumbing: batch packed on (sublane, lane) = (8, 128) ----------
    bs = sub * lanes
    nblk = (B + bs - 1) // bs          # on v7x keep nblk >= 2 to feed both TCs
    b_pad = nblk * bs

    h_ri = jnp.stack([jnp.real(h_w), jnp.imag(h_w)], axis=0).astype(jnp.float32)
    h_ri = jnp.transpose(h_ri, (0, 3, 2, 1)).reshape(2 * K, M, B)   # (2K, M, B)
    y_ri = jnp.stack([jnp.real(y_w), jnp.imag(y_w)], axis=0).astype(jnp.float32)
    y_ri = jnp.transpose(y_ri, (0, 2, 1))                           # (2, M, B)
    if b_pad != B:
        pad = b_pad - B                 # zero padding keeps padded lanes finite
        h_ri = jnp.pad(h_ri, ((0, 0), (0, 0), (0, pad)))
        y_ri = jnp.pad(y_ri, ((0, 0), (0, 0), (0, pad)))
    h_in = h_ri.reshape(2 * K, M, nblk * sub, lanes)
    y_in = y_ri.reshape(2, M, nblk * sub, lanes)

    kernel = functools.partial(_lmmse_maxlog_kernel, K, M, num_bits,
                               pam_levels, pam_bits)

    llr_t = pl.pallas_call(
        kernel,
        out_shape=jax.ShapeDtypeStruct((R, nblk * sub, lanes), jnp.float32),
        grid=(nblk,),
        in_specs=[pl.BlockSpec((2 * K, M, sub, lanes), lambda b: (0, 0, b, 0)),
                  pl.BlockSpec((2, M, sub, lanes), lambda b: (0, 0, b, 0))],
        out_specs=pl.BlockSpec((R, sub, lanes), lambda b: (0, b, 0)),
        compiler_params=pltpu.CompilerParams(dimension_semantics=("parallel",)),
    )(h_in, y_in)

    # Module output: [..., num_streams, num_bits_per_symbol]
    llr = llr_t.reshape(R, b_pad)[:, :B]
    return jnp.transpose(llr, (1, 0)).reshape(B, K, num_bits)


# -----------------------------------------------------------------------------
# Pure-JAX reference (mirrors the PyTorch/Sionna math) for a sanity check.
# -----------------------------------------------------------------------------
def reference_forward(y, h, s, points, bits_msb):
    K = h.shape[-1]
    L = jnp.linalg.cholesky(s)
    L_inv = jnp.linalg.inv(L)
    y_w = jnp.squeeze(L_inv @ y[..., None], -1)
    h_w = L_inv @ h
    hH = jnp.conj(jnp.swapaxes(h_w, -1, -2))
    A = hH @ h_w + jnp.eye(K, dtype=h_w.dtype)
    G = jnp.linalg.inv(A) @ hH
    gy = jnp.squeeze(G @ y_w[..., None], -1)
    d = jnp.diagonal(G @ h_w, axis1=-2, axis2=-1)
    x_hat = gy / d
    no_eff = jnp.real(1.0 / d - 1.0)
    sq = jnp.abs(x_hat[..., None] - points[None, None, :]) ** 2
    exps = -sq / no_eff[..., None]
    llrs = []
    for j in range(bits_msb.shape[0]):
        m = bits_msb[j] > 0.5
        l1 = jnp.max(jnp.where(m[None, None, :], exps, -jnp.inf), axis=-1)
        l0 = jnp.max(jnp.where(m[None, None, :], -jnp.inf, exps), axis=-1)
        llrs.append(l1 - l0)
    return jnp.stack(llrs, axis=-1)


if __name__ == "__main__":
    B, M, K, NUM_BITS = 2, 16, 4, 2          # batch, rx antennas, streams, QPSK
    P = 2 ** NUM_BITS

    points = jnp.asarray(qam_constellation(NUM_BITS))            # (P,) complex64
    bits_msb = jnp.asarray(bit_labels_msb_first(NUM_BITS))       # (NUM_BITS, P)
    pam_levels, pam_bits = pam_levels_and_bits(NUM_BITS)         # 1-D PAM tables

    key = jax.random.PRNGKey(0)
    kh_r, kh_i, kx, kn_r, kn_i, ke_r, ke_i = jax.random.split(key, 7)
    h = ((jax.random.normal(kh_r, (B, M, K)) +
          1j * jax.random.normal(kh_i, (B, M, K))) / jnp.sqrt(2.0 * K)
         ).astype(jnp.complex64)
    x = points[jax.random.randint(kx, (B, K), 0, P)]
    no = 0.1
    n = ((jax.random.normal(kn_r, (B, M)) + 1j * jax.random.normal(kn_i, (B, M)))
         * jnp.sqrt(no / 2.0)).astype(jnp.complex64)
    y = (jnp.squeeze(h @ x[..., None], -1) + n).astype(jnp.complex64)
    e = (jax.random.normal(ke_r, (B, M, M)) +
         1j * jax.random.normal(ke_i, (B, M, M))).astype(jnp.complex64)
    s = (no * jnp.eye(M, dtype=jnp.complex64)[None]
         + 0.01 * (e @ jnp.conj(jnp.swapaxes(e, -1, -2))) / M).astype(jnp.complex64)

    z = linear_detector_forward(y, h, s, pam_levels, pam_bits, NUM_BITS)
    z = jax.block_until_ready(z)

    ref = reference_forward(y, h, s, points, bits_msb)
    np.testing.assert_allclose(np.asarray(z), np.asarray(ref), rtol=5e-2, atol=5e-1)
    assert z.shape == (B, K, NUM_BITS)
    assert z.dtype == jnp.float32
    print("KERNEL_OK")
</pallas_src>

<mosaic_0001>
module attributes {stable_mosaic.version = 11 : i64} {
  func.func @_lmmse_maxlog_kernel(%arg0: i32, %arg1: memref<8x16x8x128xf32, #tpu.memory_space<vmem>>, %arg2: memref<2x16x8x128xf32, #tpu.memory_space<vmem>>, %arg3: memref<8x8x128xf32, #tpu.memory_space<vmem>>) attributes {dimension_semantics = [#tpu.dimension_semantics<parallel>], iteration_bounds = array<i64: 1>, scalar_prefetch = 0 : i64, scratch_operands = 0 : i64, tpu.core_type = #tpu.core_type<tc>, window_params = [{transform_indices = @transform_0, window_bounds = array<i64: 8, 16, 8, 128>}, {transform_indices = @transform_1, window_bounds = array<i64: 2, 16, 8, 128>}, {transform_indices = @transform_2, window_bounds = array<i64: 8, 8, 128>}]} {
    %c0 = arith.constant 0 : index
    %c0_0 = arith.constant 0 : index
    %c0_1 = arith.constant 0 : index
    %c0_2 = arith.constant 0 : index
    %0 = vector.load %arg1[%c0, %c0_0, %c0_1, %c0_2] : memref<8x16x8x128xf32, #tpu.memory_space<vmem>>, vector<1x1x8x128xf32>
    %1 = vector.shape_cast %0 : vector<1x1x8x128xf32> to vector<8x128xf32>
    %c1 = arith.constant 1 : index
    %c0_3 = arith.constant 0 : index
    %c0_4 = arith.constant 0 : index
    %c0_5 = arith.constant 0 : index
    %2 = vector.load %arg1[%c1, %c0_3, %c0_4, %c0_5] : memref<8x16x8x128xf32, #tpu.memory_space<vmem>>, vector<1x1x8x128xf32>
    %3 = vector.shape_cast %2 : vector<1x1x8x128xf32> to vector<8x128xf32>
    %c2 = arith.constant 2 : index
    %c0_6 = arith.constant 0 : index
    %c0_7 = arith.constant 0 : index
    %c0_8 = arith.constant 0 : index
    %4 = vector.load %arg1[%c2, %c0_6, %c0_7, %c0_8] : memref<8x16x8x128xf32, #tpu.memory_space<vmem>>, vector<1x1x8x128xf32>
    %5 = vector.shape_cast %4 : vector<1x1x8x128xf32> to vector<8x128xf32>
    %c3 = arith.constant 3 : index
    %c0_9 = arith.constant 0 : index
    %c0_10 = arith.constant 0 : index
    %c0_11 = arith.constant 0 : index
    %6 = vector.load %arg1[%c3, %c0_9, %c0_10, %c0_11] : memref<8x16x8x128xf32, #tpu.memory_space<vmem>>, vector<1x1x8x128xf32>
    %7 = vector.shape_cast %6 : vector<1x1x8x128xf32> to vector<8x128xf32>
    %c4 = arith.constant 4 : index
    %c0_12 = arith.constant 0 : index
    %c0_13 = arith.constant 0 : index
    %c0_14 = arith.constant 0 : index
    %8 = vector.load %arg1[%c4, %c0_12, %c0_13, %c0_14] : memref<8x16x8x128xf32, #tpu.memory_space<vmem>>, vector<1x1x8x128xf32>
    %9 = vector.shape_cast %8 : vector<1x1x8x128xf32> to vector<8x128xf32>
    %c5 = arith.constant 5 : index
    %c0_15 = arith.constant 0 : index
    %c0_16 = arith.constant 0 : index
    %c0_17 = arith.constant 0 : index
    %10 = vector.load %arg1[%c5, %c0_15, %c0_16, %c0_17] : memref<8x16x8x128xf32, #tpu.memory_space<vmem>>, vector<1x1x8x128xf32>
    %11 = vector.shape_cast %10 : vector<1x1x8x128xf32> to vector<8x128xf32>
    %c6 = arith.constant 6 : index
    %c0_18 = arith.constant 0 : index
    %c0_19 = arith.constant 0 : index
    %c0_20 = arith.constant 0 : index
    %12 = vector.load %arg1[%c6, %c0_18, %c0_19, %c0_20] : memref<8x16x8x128xf32, #tpu.memory_space<vmem>>, vector<1x1x8x128xf32>
    %13 = vector.shape_cast %12 : vector<1x1x8x128xf32> to vector<8x128xf32>
    %c7 = arith.constant 7 : index
    %c0_21 = arith.constant 0 : index
    %c0_22 = arith.constant 0 : index
    %c0_23 = arith.constant 0 : index
    %14 = vector.load %arg1[%c7, %c0_21, %c0_22, %c0_23] : memref<8x16x8x128xf32, #tpu.memory_space<vmem>>, vector<1x1x8x128xf32>
    %15 = vector.shape_cast %14 : vector<1x1x8x128xf32> to vector<8x128xf32>
    %c0_24 = arith.constant 0 : index
    %c0_25 = arith.constant 0 : index
    %c0_26 = arith.constant 0 : index
    %c0_27 = arith.constant 0 : index
    %16 = vector.load %arg2[%c0_24, %c0_25, %c0_26, %c0_27] : memref<2x16x8x128xf32, #tpu.memory_space<vmem>>, vector<1x1x8x128xf32>
    %17 = vector.shape_cast %16 : vector<1x1x8x128xf32> to vector<8x128xf32>
    %c1_28 = arith.constant 1 : index
    %c0_29 = arith.constant 0 : index
    %c0_30 = arith.constant 0 : index
    %c0_31 = arith.constant 0 : index
    %18 = vector.load %arg2[%c1_28, %c0_29, %c0_30, %c0_31] : memref<2x16x8x128xf32, #tpu.memory_space<vmem>>, vector<1x1x8x128xf32>
    %19 = vector.shape_cast %18 : vector<1x1x8x128xf32> to vector<8x128xf32>
    %20 = arith.mulf %1, %1 : vector<8x128xf32>
    %21 = arith.mulf %9, %9 : vector<8x128xf32>
    %22 = arith.addf %20, %21 : vector<8x128xf32>
    %23 = arith.mulf %1, %3 : vector<8x128xf32>
    %24 = arith.mulf %9, %11 : vector<8x128xf32>
    %25 = arith.addf %23, %24 : vector<8x128xf32>
    %26 = arith.mulf %1, %11 : vector<8x128xf32>
    %27 = arith.mulf %9, %3 : vector<8x128xf32>
    %28 = arith.subf %26, %27 : vector<8x128xf32>
    %29 = arith.mulf %1, %5 : vector<8x128xf32>
    %30 = arith.mulf %9, %13 : vector<8x128xf32>
    %31 = arith.addf %29, %30 : vector<8x128xf32>
    %32 = arith.mulf %1, %13 : vector<8x128xf32>
    %33 = arith.mulf %9, %5 : vector<8x128xf32>
    %34 = arith.subf %32, %33 : vector<8x128xf32>
    %35 = arith.mulf %1, %7 : vector<8x128xf32>
    %36 = arith.mulf %9, %15 : vector<8x128xf32>
    %37 = arith.addf %35, %36 : vector<8x128xf32>
    %38 = arith.mulf %1, %15 : vector<8x128xf32>
    %39 = arith.mulf %9, %7 : vector<8x128xf32>
    %40 = arith.subf %38, %39 : vector<8x128xf32>
    %41 = arith.mulf %1, %17 : vector<8x128xf32>
    %42 = arith.mulf %9, %19 : vector<8x128xf32>
    %43 = arith.addf %41, %42 : vector<8x128xf32>
    %44 = arith.mulf %1, %19 : vector<8x128xf32>
    %45 = arith.mulf %9, %17 : vector<8x128xf32>
    %46 = arith.subf %44, %45 : vector<8x128xf32>
    %47 = arith.mulf %3, %3 : vector<8x128xf32>
    %48 = arith.mulf %11, %11 : vector<8x128xf32>
    %49 = arith.addf %47, %48 : vector<8x128xf32>
    %50 = arith.mulf %3, %5 : vector<8x128xf32>
    %51 = arith.mulf %11, %13 : vector<8x128xf32>
    %52 = arith.addf %50, %51 : vector<8x128xf32>
    %53 = arith.mulf %3, %13 : vector<8x128xf32>
    %54 = arith.mulf %11, %5 : vector<8x128xf32>
    %55 = arith.subf %53, %54 : vector<8x128xf32>
    %56 = arith.mulf %3, %7 : vector<8x128xf32>
    %57 = arith.mulf %11, %15 : vector<8x128xf32>
    %58 = arith.addf %56, %57 : vector<8x128xf32>
    %59 = arith.mulf %3, %15 : vector<8x128xf32>
    %60 = arith.mulf %11, %7 : vector<8x128xf32>
    %61 = arith.subf %59, %60 : vector<8x128xf32>
    %62 = arith.mulf %3, %17 : vector<8x128xf32>
    %63 = arith.mulf %11, %19 : vector<8x128xf32>
    %64 = arith.addf %62, %63 : vector<8x128xf32>
    %65 = arith.mulf %3, %19 : vector<8x128xf32>
    %66 = arith.mulf %11, %17 : vector<8x128xf32>
    %67 = arith.subf %65, %66 : vector<8x128xf32>
    %68 = arith.mulf %5, %5 : vector<8x128xf32>
    %69 = arith.mulf %13, %13 : vector<8x128xf32>
    %70 = arith.addf %68, %69 : vector<8x128xf32>
    %71 = arith.mulf %5, %7 : vector<8x128xf32>
    %72 = arith.mulf %13, %15 : vector<8x128xf32>
    %73 = arith.addf %71, %72 : vector<8x128xf32>
    %74 = arith.mulf %5, %15 : vector<8x128xf32>
    %75 = arith.mulf %13, %7 : vector<8x128xf32>
    %76 = arith.subf %74, %75 : vector<8x128xf32>
    %77 = arith.mulf %5, %17 : vector<8x128xf32>
    %78 = arith.mulf %13, %19 : vector<8x128xf32>
    %79 = arith.addf %77, %78 : vector<8x128xf32>
    %80 = arith.mulf %5, %19 : vector<8x128xf32>
    %81 = arith.mulf %13, %17 : vector<8x128xf32>
    %82 = arith.subf %80, %81 : vector<8x128xf32>
    %83 = arith.mulf %7, %7 : vector<8x128xf32>
    %84 = arith.mulf %15, %15 : vector<8x128xf32>
    %85 = arith.addf %83, %84 : vector<8x128xf32>
    %86 = arith.mulf %7, %17 : vector<8x128xf32>
    %87 = arith.mulf %15, %19 : vector<8x128xf32>
    %88 = arith.addf %86, %87 : vector<8x128xf32>
    %89 = arith.mulf %7, %19 : vector<8x128xf32>
    %90 = arith.mulf %15, %17 : vector<8x128xf32>
    %91 = arith.subf %89, %90 : vector<8x128xf32>
    %c0_32 = arith.constant 0 : index
    %c1_33 = arith.constant 1 : index
    %c0_34 = arith.constant 0 : index
    %c0_35 = arith.constant 0 : index
    %92 = vector.load %arg1[%c0_32, %c1_33, %c0_34, %c0_35] : memref<8x16x8x128xf32, #tpu.memory_space<vmem>>, vector<1x1x8x128xf32>
    %93 = vector.shape_cast %92 : vector<1x1x8x128xf32> to vector<8x128xf32>
    %c1_36 = arith.constant 1 : index
    %c1_37 = arith.constant 1 : index
    %c0_38 = arith.constant 0 : index
    %c0_39 = arith.constant 0 : index
    %94 = vector.load %arg1[%c1_36, %c1_37, %c0_38, %c0_39] : memref<8x16x8x128xf32, #tpu.memory_space<vmem>>, vector<1x1x8x128xf32>
    %95 = vector.shape_cast %94 : vector<1x1x8x128xf32> to vector<8x128xf32>
    %c2_40 = arith.constant 2 : index
    %c1_41 = arith.constant 1 : index
    %c0_42 = arith.constant 0 : index
    %c0_43 = arith.constant 0 : index
    %96 = vector.load %arg1[%c2_40, %c1_41, %c0_42, %c0_43] : memref<8x16x8x128xf32, #tpu.memory_space<vmem>>, vector<1x1x8x128xf32>
    %97 = vector.shape_cast %96 : vector<1x1x8x128xf32> to vector<8x128xf32>
    %c3_44 = arith.constant 3 : index
    %c1_45 = arith.constant 1 : index
    %c0_46 = arith.constant 0 : index
    %c0_47 = arith.constant 0 : index
    %98 = vector.load %arg1[%c3_44, %c1_45, %c0_46, %c0_47] : memref<8x16x8x128xf32, #tpu.memory_space<vmem>>, vector<1x1x8x128xf32>
    %99 = vector.shape_cast %98 : vector<1x1x8x128xf32> to vector<8x128xf32>
    %c4_48 = arith.constant 4 : index
    %c1_49 = arith.constant 1 : index
    %c0_50 = arith.constant 0 : index
    %c0_51 = arith.constant 0 : index
    %100 = vector.load %arg1[%c4_48, %c1_49, %c0_50, %c0_51] : memref<8x16x8x128xf32, #tpu.memory_space<vmem>>, vector<1x1x8x128xf32>
    %101 = vector.shape_cast %100 : vector<1x1x8x128xf32> to vector<8x128xf32>
    %c5_52 = arith.constant 5 : index
    %c1_53 = arith.constant 1 : index
    %c0_54 = arith.constant 0 : index
    %c0_55 = arith.constant 0 : index
    %102 = vector.load %arg1[%c5_52, %c1_53, %c0_54, %c0_55] : memref<8x16x8x128xf32, #tpu.memory_space<vmem>>, vector<1x1x8x128xf32>
    %103 = vector.shape_cast %102 : vector<1x1x8x128xf32> to vector<8x128xf32>
    %c6_56 = arith.constant 6 : index
    %c1_57 = arith.constant 1 : index
    %c0_58 = arith.constant 0 : index
    %c0_59 = arith.constant 0 : index
    %104 = vector.load %arg1[%c6_56, %c1_57, %c0_58, %c0_59] : memref<8x16x8x128xf32, #tpu.memory_space<vmem>>, vector<1x1x8x128xf32>
    %105 = vector.shape_cast %104 : vector<1x1x8x128xf32> to vector<8x128xf32>
    %c7_60 = arith.constant 7 : index
    %c1_61 = arith.constant 1 : index
    %c0_62 = arith.constant 0 : index
    %c0_63 = arith.constant 0 : index
    %106 = vector.load %arg1[%c7_60, %c1_61, %c0_62, %c0_63] : memref<8x16x8x128xf32, #tpu.memory_space<vmem>>, vector<1x1x8x128xf32>
    %107 = vector.shape_cast %106 : vector<1x1x8x128xf32> to vector<8x128xf32>
    %c0_64 = arith.constant 0 : index
    %c1_65 = arith.constant 1 : index
    %c0_66 = arith.constant 0 : index
    %c0_67 = arith.constant 0 : index
    %108 = vector.load %arg2[%c0_64, %c1_65, %c0_66, %c0_67] : memref<2x16x8x128xf32, #tpu.memory_space<vmem>>, vector<1x1x8x128xf32>
    %109 = vector.shape_cast %108 : vector<1x1x8x128xf32> to vector<8x128xf32>
    %c1_68 = arith.constant 1 : index
    %c1_69 = arith.constant 1 : index
    %c0_70 = arith.constant 0 : index
    %c0_71 = arith.constant 0 : index
    %110 = vector.load %arg2[%c1_68, %c1_69, %c0_70, %c0_71] : memref<2x16x8x128xf32, #tpu.memory_space<vmem>>, vector<1x1x8x128xf32>
    %111 = vector.shape_cast %110 : vector<1x1x8x128xf32> to vector<8x128xf32>
    %112 = arith.mulf %93, %93 : vector<8x128xf32>
    %113 = arith.mulf %101, %101 : vector<8x128xf32>
    %114 = arith.addf %112, %113 : vector<8x128xf32>
    %115 = arith.addf %22, %114 : vector<8x128xf32>
    %116 = arith.mulf %93, %95 : vector<8x128xf32>
    %117 = arith.mulf %101, %103 : vector<8x128xf32>
    %118 = arith.addf %116, %117 : vector<8x128xf32>
    %119 = arith.addf %25, %118 : vector<8x128xf32>
    %120 = arith.mulf %93, %103 : vector<8x128xf32>
    %121 = arith.mulf %101, %95 : vector<8x128xf32>
    %122 = arith.subf %120, %121 : vector<8x128xf32>
    %123 = arith.addf %28, %122 : vector<8x128xf32>
    %124 = arith.mulf %93, %97 : vector<8x128xf32>
    %125 = arith.mulf %101, %105 : vector<8x128xf32>
    %126 = arith.addf %124, %125 : vector<8x128xf32>
    %127 = arith.addf %31, %126 : vector<8x128xf32>
    %128 = arith.mulf %93, %105 : vector<8x128xf32>
    %129 = arith.mulf %101, %97 : vector<8x128xf32>
    %130 = arith.subf %128, %129 : vector<8x128xf32>
    %131 = arith.addf %34, %130 : vector<8x128xf32>
    %132 = arith.mulf %93, %99 : vector<8x128xf32>
    %133 = arith.mulf %101, %107 : vector<8x128xf32>
    %134 = arith.addf %132, %133 : vector<8x128xf32>
    %135 = arith.addf %37, %134 : vector<8x128xf32>
    %136 = arith.mulf %93, %107 : vector<8x128xf32>
    %137 = arith.mulf %101, %99 : vector<8x128xf32>
    %138 = arith.subf %136, %137 : vector<8x128xf32>
    %139 = arith.addf %40, %138 : vector<8x128xf32>
    %140 = arith.mulf %93, %109 : vector<8x128xf32>
    %141 = arith.mulf %101, %111 : vector<8x128xf32>
    %142 = arith.addf %140, %141 : vector<8x128xf32>
    %143 = arith.mulf %93, %111 : vector<8x128xf32>
    %144 = arith.mulf %101, %109 : vector<8x128xf32>
    %145 = arith.subf %143, %144 : vector<8x128xf32>
    %146 = arith.addf %43, %142 : vector<8x128xf32>
    %147 = arith.addf %46, %145 : vector<8x128xf32>
    %148 = arith.mulf %95, %95 : vector<8x128xf32>
    %149 = arith.mulf %103, %103 : vector<8x128xf32>
    %150 = arith.addf %148, %149 : vector<8x128xf32>
    %151 = arith.addf %49, %150 : vector<8x128xf32>
    %152 = arith.mulf %95, %97 : vector<8x128xf32>
    %153 = arith.mulf %103, %105 : vector<8x128xf32>
    %154 = arith.addf %152, %153 : vector<8x128xf32>
    %155 = arith.addf %52, %154 : vector<8x128xf32>
    %156 = arith.mulf %95, %105 : vector<8x128xf32>
    %157 = arith.mulf %103, %97 : vector<8x128xf32>
    %158 = arith.subf %156, %157 : vector<8x128xf32>
    %159 = arith.addf %55, %158 : vector<8x128xf32>
    %160 = arith.mulf %95, %99 : vector<8x128xf32>
    %161 = arith.mulf %103, %107 : vector<8x128xf32>
    %162 = arith.addf %160, %161 : vector<8x128xf32>
    %163 = arith.addf %58, %162 : vector<8x128xf32>
    %164 = arith.mulf %95, %107 : vector<8x128xf32>
    %165 = arith.mulf %103, %99 : vector<8x128xf32>
    %166 = arith.subf %164, %165 : vector<8x128xf32>
    %167 = arith.addf %61, %166 : vector<8x128xf32>
    %168 = arith.mulf %95, %109 : vector<8x128xf32>
    %169 = arith.mulf %103, %111 : vector<8x128xf32>
    %170 = arith.addf %168, %169 : vector<8x128xf32>
    %171 = arith.mulf %95, %111 : vector<8x128xf32>
    %172 = arith.mulf %103, %109 : vector<8x128xf32>
    %173 = arith.subf %171, %172 : vector<8x128xf32>
    %174 = arith.addf %64, %170 : vector<8x128xf32>
    %175 = arith.addf %67, %173 : vector<8x128xf32>
    %176 = arith.mulf %97, %97 : vector<8x128xf32>
    %177 = arith.mulf %105, %105 : vector<8x128xf32>
    %178 = arith.addf %176, %177 : vector<8x128xf32>
    %179 = arith.addf %70, %178 : vector<8x128xf32>
    %180 = arith.mulf %97, %99 : vector<8x128xf32>
    %181 = arith.mulf %105, %107 : vector<8x128xf32>
    %182 = arith.addf %180, %181 : vector<8x128xf32>
    %183 = arith.addf %73, %182 : vector<8x128xf32>
    %184 = arith.mulf %97, %107 : vector<8x128xf32>
    %185 = arith.mulf %105, %99 : vector<8x128xf32>
    %186 = arith.subf %184, %185 : vector<8x128xf32>
    %187 = arith.addf %76, %186 : vector<8x128xf32>
    %188 = arith.mulf %97, %109 : vector<8x128xf32>
    %189 = arith.mulf %105, %111 : vector<8x128xf32>
    %190 = arith.addf %188, %189 : vector<8x128xf32>
    %191 = arith.mulf %97, %111 : vector<8x128xf32>
    %192 = arith.mulf %105, %109 : vector<8x128xf32>
    %193 = arith.subf %191, %192 : vector<8x128xf32>
    %194 = arith.addf %79, %190 : vector<8x128xf32>
    %195 = arith.addf %82, %193 : vector<8x128xf32>
    %196 = arith.mulf %99, %99 : vector<8x128xf32>
    %197 = arith.mulf %107, %107 : vector<8x128xf32>
    %198 = arith.addf %196, %197 : vector<8x128xf32>
    %199 = arith.addf %85, %198 : vector<8x128xf32>
    %200 = arith.mulf %99, %109 : vector<8x128xf32>
    %201 = arith.mulf %107, %111 : vector<8x128xf32>
    %202 = arith.addf %200, %201 : vector<8x128xf32>
    %203 = arith.mulf %99, %111 : vector<8x128xf32>
    %204 = arith.mulf %107, %109 : vector<8x128xf32>
    %205 = arith.subf %203, %204 : vector<8x128xf32>
    %206 = arith.addf %88, %202 : vector<8x128xf32>
    %207 = arith.addf %91, %205 : vector<8x128xf32>
    %c0_72 = arith.constant 0 : index
    %c2_73 = arith.constant 2 : index
    %c0_74 = arith.constant 0 : index
    %c0_75 = arith.constant 0 : index
    %208 = vector.load %arg1[%c0_72, %c2_73, %c0_74, %c0_75] : memref<8x16x8x128xf32, #tpu.memory_space<vmem>>, vector<1x1x8x128xf32>
    %209 = vector.shape_cast %208 : vector<1x1x8x128xf32> to vector<8x128xf32>
    %c1_76 = arith.constant 1 : index
    %c2_77 = arith.constant 2 : index
    %c0_78 = arith.constant 0 : index
    %c0_79 = arith.constant 0 : index
    %210 = vector.load %arg1[%c1_76, %c2_77, %c0_78, %c0_79] : memref<8x16x8x128xf32, #tpu.memory_space<vmem>>, vector<1x1x8x128xf32>
    %211 = vector.shape_cast %210 : vector<1x1x8x128xf32> to vector<8x128xf32>
    %c2_80 = arith.constant 2 : index
    %c2_81 = arith.constant 2 : index
    %c0_82 = arith.constant 0 : index
    %c0_83 = arith.constant 0 : index
    %212 = vector.load %arg1[%c2_80, %c2_81, %c0_82, %c0_83] : memref<8x16x8x128xf32, #tpu.memory_space<vmem>>, vector<1x1x8x128xf32>
    %213 = vector.shape_cast %212 : vector<1x1x8x128xf32> to vector<8x128xf32>
    %c3_84 = arith.constant 3 : index
    %c2_85 = arith.constant 2 : index
    %c0_86 = arith.constant 0 : index
    %c0_87 = arith.constant 0 : index
    %214 = vector.load %arg1[%c3_84, %c2_85, %c0_86, %c0_87] : memref<8x16x8x128xf32, #tpu.memory_space<vmem>>, vector<1x1x8x128xf32>
    %215 = vector.shape_cast %214 : vector<1x1x8x128xf32> to vector<8x128xf32>
    %c4_88 = arith.constant 4 : index
    %c2_89 = arith.constant 2 : index
    %c0_90 = arith.constant 0 : index
    %c0_91 = arith.constant 0 : index
    %216 = vector.load %arg1[%c4_88, %c2_89, %c0_90, %c0_91] : memref<8x16x8x128xf32, #tpu.memory_space<vmem>>, vector<1x1x8x128xf32>
    %217 = vector.shape_cast %216 : vector<1x1x8x128xf32> to vector<8x128xf32>
    %c5_92 = arith.constant 5 : index
    %c2_93 = arith.constant 2 : index
    %c0_94 = arith.constant 0 : index
    %c0_95 = arith.constant 0 : index
    %218 = vector.load %arg1[%c5_92, %c2_93, %c0_94, %c0_95] : memref<8x16x8x128xf32, #tpu.memory_space<vmem>>, vector<1x1x8x128xf32>
    %219 = vector.shape_cast %218 : vector<1x1x8x128xf32> to vector<8x128xf32>
    %c6_96 = arith.constant 6 : index
    %c2_97 = arith.constant 2 : index
    %c0_98 = arith.constant 0 : index
    %c0_99 = arith.constant 0 : index
    %220 = vector.load %arg1[%c6_96, %c2_97, %c0_98, %c0_99] : memref<8x16x8x128xf32, #tpu.memory_space<vmem>>, vector<1x1x8x128xf32>
    %221 = vector.shape_cast %220 : vector<1x1x8x128xf32> to vector<8x128xf32>
    %c7_100 = arith.constant 7 : index
    %c2_101 = arith.constant 2 : index
    %c0_102 = arith.constant 0 : index
    %c0_103 = arith.constant 0 : index
    %222 = vector.load %arg1[%c7_100, %c2_101, %c0_102, %c0_103] : memref<8x16x8x128xf32, #tpu.memory_space<vmem>>, vector<1x1x8x128xf32>
    %223 = vector.shape_cast %222 : vector<1x1x8x128xf32> to vector<8x128xf32>
    %c0_104 = arith.constant 0 : index
    %c2_105 = arith.constant 2 : index
    %c0_106 = arith.constant 0 : index
    %c0_107 = arith.constant 0 : index
    %224 = vector.load %arg2[%c0_104, %c2_105, %c0_106, %c0_107] : memref<2x16x8x128xf32, #tpu.memory_space<vmem>>, vector<1x1x8x128xf32>
    %225 = vector.shape_cast %224 : vector<1x1x8x128xf32> to vector<8x128xf32>
    %c1_108 = arith.constant 1 : index
    %c2_109 = arith.constant 2 : index
    %c0_110 = arith.constant 0 : index
    %c0_111 = arith.constant 0 : index
    %226 = vector.load %arg2[%c1_108, %c2_109, %c0_110, %c0_111] : memref<2x16x8x128xf32, #tpu.memory_space<vmem>>, vector<1x1x8x128xf32>
    %227 = vector.shape_cast %226 : vector<1x1x8x128xf32> to vector<8x128xf32>
    %228 = arith.mulf %209, %209 : vector<8x128xf32>
    %229 = arith.mulf %217, %217 : vector<8x128xf32>
    %230 = arith.addf %228, %229 : vector<8x128xf32>
    %231 = arith.addf %115, %230 : vector<8x128xf32>
    %232 = arith.mulf %209, %211 : vector<8x128xf32>
    %233 = arith.mulf %217, %219 : vector<8x128xf32>
    %234 = arith.addf %232, %233 : vector<8x128xf32>
    %235 = arith.addf %119, %234 : vector<8x128xf32>
    %236 = arith.mulf %209, %219 : vector<8x128xf32>
    %237 = arith.mulf %217, %211 : vector<8x128xf32>
    %238 = arith.subf %236, %237 : vector<8x128xf32>
    %239 = arith.addf %123, %238 : vector<8x128xf32>
    %240 = arith.mulf %209, %213 : vector<8x128xf32>
    %241 = arith.mulf %217, %221 : vector<8x128xf32>
    %242 = arith.addf %240, %241 : vector<8x128xf32>
    %243 = arith.addf %127, %242 : vector<8x128xf32>
    %244 = arith.mulf %209, %221 : vector<8x128xf32>
    %245 = arith.mulf %217, %213 : vector<8x128xf32>
    %246 = arith.subf %244, %245 : vector<8x128xf32>
    %247 = arith.addf %131, %246 : vector<8x128xf32>
    %248 = arith.mulf %209, %215 : vector<8x128xf32>
    %249 = arith.mulf %217, %223 : vector<8x128xf32>
    %250 = arith.addf %248, %249 : vector<8x128xf32>
    %251 = arith.addf %135, %250 : vector<8x128xf32>
    %252 = arith.mulf %209, %223 : vector<8x128xf32>
    %253 = arith.mulf %217, %215 : vector<8x128xf32>
    %254 = arith.subf %252, %253 : vector<8x128xf32>
    %255 = arith.addf %139, %254 : vector<8x128xf32>
    %256 = arith.mulf %209, %225 : vector<8x128xf32>
    %257 = arith.mulf %217, %227 : vector<8x128xf32>
    %258 = arith.addf %256, %257 : vector<8x128xf32>
    %259 = arith.mulf %209, %227 : vector<8x128xf32>
    %260 = arith.mulf %217, %225 : vector<8x128xf32>
    %261 = arith.subf %259, %260 : vector<8x128xf32>
    %262 = arith.addf %146, %258 : vector<8x128xf32>
    %263 = arith.addf %147, %261 : vector<8x128xf32>
    %264 = arith.mulf %211, %211 : vector<8x128xf32>
    %265 = arith.mulf %219, %219 : vector<8x128xf32>
    %266 = arith.addf %264, %265 : vector<8x128xf32>
    %267 = arith.addf %151, %266 : vector<8x128xf32>
    %268 = arith.mulf %211, %213 : vector<8x128xf32>
    %269 = arith.mulf %219, %221 : vector<8x128xf32>
    %270 = arith.addf %268, %269 : vector<8x128xf32>
    %271 = arith.addf %155, %270 : vector<8x128xf32>
    %272 = arith.mulf %211, %221 : vector<8x128xf32>
    %273 = arith.mulf %219, %213 : vector<8x128xf32>
    %274 = arith.subf %272, %273 : vector<8x128xf32>
    %275 = arith.addf %159, %274 : vector<8x128xf32>
    %276 = arith.mulf %211, %215 : vector<8x128xf32>
    %277 = arith.mulf %219, %223 : vector<8x128xf32>
    %278 = arith.addf %276, %277 : vector<8x128xf32>
    %279 = arith.addf %163, %278 : vector<8x128xf32>
    %280 = arith.mulf %211, %223 : vector<8x128xf32>
    %281 = arith.mulf %219, %215 : vector<8x128xf32>
    %282 = arith.subf %280, %281 : vector<8x128xf32>
    %283 = arith.addf %167, %282 : vector<8x128xf32>
    %284 = arith.mulf %211, %225 : vector<8x128xf32>
    %285 = arith.mulf %219, %227 : vector<8x128xf32>
    %286 = arith.addf %284, %285 : vector<8x128xf32>
    %287 = arith.mulf %211, %227 : vector<8x128xf32>
    %288 = arith.mulf %219, %225 : vector<8x128xf32>
    %289 = arith.subf %287, %288 : vector<8x128xf32>
    %290 = arith.addf %174, %286 : vector<8x128xf32>
    %291 = arith.addf %175, %289 : vector<8x128xf32>
    %292 = arith.mulf %213, %213 : vector<8x128xf32>
    %293 = arith.mulf %221, %221 : vector<8x128xf32>
    %294 = arith.addf %292, %293 : vector<8x128xf32>
    %295 = arith.addf %179, %294 : vector<8x128xf32>
    %296 = arith.mulf %213, %215 : vector<8x128xf32>
    %297 = arith.mulf %221, %223 : vector<8x128xf32>
    %298 = arith.addf %296, %297 : vector<8x128xf32>
    %299 = arith.addf %183, %298 : vector<8x128xf32>
    %300 = arith.mulf %213, %223 : vector<8x128xf32>
    %301 = arith.mulf %221, %215 : vector<8x128xf32>
    %302 = arith.subf %300, %301 : vector<8x128xf32>
    %303 = arith.addf %187, %302 : vector<8x128xf32>
    %304 = arith.mulf %213, %225 : vector<8x128xf32>
    %305 = arith.mulf %221, %227 : vector<8x128xf32>
    %306 = arith.addf %304, %305 : vector<8x128xf32>
    %307 = arith.mulf %213, %227 : vector<8x128xf32>
    %308 = arith.mulf %221, %225 : vector<8x128xf32>
    %309 = arith.subf %307, %308 : vector<8x128xf32>
    %310 = arith.addf %194, %306 : vector<8x128xf32>
    %311 = arith.addf %195, %309 : vector<8x128xf32>
    %312 = arith.mulf %215, %215 : vector<8x128xf32>
    %313 = arith.mulf %223, %223 : vector<8x128xf32>
    %314 = arith.addf %312, %313 : vector<8x128xf32>
    %315 = arith.addf %199, %314 : vector<8x128xf32>
    %316 = arith.mulf %215, %225 : vector<8x128xf32>
    %317 = arith.mulf %223, %227 : vector<8x128xf32>
    %318 = arith.addf %316, %317 : vector<8x128xf32>
    %319 = arith.mulf %215, %227 : vector<8x128xf32>
    %320 = arith.mulf %223, %225 : vector<8x128xf32>
    %321 = arith.subf %319, %320 : vector<8x128xf32>
    %322 = arith.addf %206, %318 : vector<8x128xf32>
    %323 = arith.addf %207, %321 : vector<8x128xf32>
    %c0_112 = arith.constant 0 : index
    %c3_113 = arith.constant 3 : index
    %c0_114 = arith.constant 0 : index
    %c0_115 = arith.constant 0 : index
    %324 = vector.load %arg1[%c0_112, %c3_113, %c0_114, %c0_115] : memref<8x16x8x128xf32, #tpu.memory_space<vmem>>, vector<1x1x8x128xf32>
    %325 = vector.shape_cast %324 : vector<1x1x8x128xf32> to vector<8x128xf32>
    %c1_116 = arith.constant 1 : index
    %c3_117 = arith.constant 3 : index
    %c0_118 = arith.constant 0 : index
    %c0_119 = arith.constant 0 : index
    %326 = vector.load %arg1[%c1_116, %c3_117, %c0_118, %c0_119] : memref<8x16x8x128xf32, #tpu.memory_space<vmem>>, vector<1x1x8x128xf32>
    %327 = vector.shape_cast %326 : vector<1x1x8x128xf32> to vector<8x128xf32>
    %c2_120 = arith.constant 2 : index
    %c3_121 = arith.constant 3 : index
    %c0_122 = arith.constant 0 : index
    %c0_123 = arith.constant 0 : index
    %328 = vector.load %arg1[%c2_120, %c3_121, %c0_122, %c0_123] : memref<8x16x8x128xf32, #tpu.memory_space<vmem>>, vector<1x1x8x128xf32>
    %329 = vector.shape_cast %328 : vector<1x1x8x128xf32> to vector<8x128xf32>
    %c3_124 = arith.constant 3 : index
    %c3_125 = arith.constant 3 : index
    %c0_126 = arith.constant 0 : index
    %c0_127 = arith.constant 0 : index
    %330 = vector.load %arg1[%c3_124, %c3_125, %c0_126, %c0_127] : memref<8x16x8x128xf32, #tpu.memory_space<vmem>>, vector<1x1x8x128xf32>
    %331 = vector.shape_cast %330 : vector<1x1x8x128xf32> to vector<8x128xf32>
    %c4_128 = arith.constant 4 : index
    %c3_129 = arith.constant 3 : index
    %c0_130 = arith.constant 0 : index
    %c0_131 = arith.constant 0 : index
    %332 = vector.load %arg1[%c4_128, %c3_129, %c0_130, %c0_131] : memref<8x16x8x128xf32, #tpu.memory_space<vmem>>, vector<1x1x8x128xf32>
    %333 = vector.shape_cast %332 : vector<1x1x8x128xf32> to vector<8x128xf32>
    %c5_132 = arith.constant 5 : index
    %c3_133 = arith.constant 3 : index
    %c0_134 = arith.constant 0 : index
    %c0_135 = arith.constant 0 : index
    %334 = vector.load %arg1[%c5_132, %c3_133, %c0_134, %c0_135] : memref<8x16x8x128xf32, #tpu.memory_space<vmem>>, vector<1x1x8x128xf32>
    %335 = vector.shape_cast %334 : vector<1x1x8x128xf32> to vector<8x128xf32>
    %c6_136 = arith.constant 6 : index
    %c3_137 = arith.constant 3 : index
    %c0_138 = arith.constant 0 : index
    %c0_139 = arith.constant 0 : index
    %336 = vector.load %arg1[%c6_136, %c3_137, %c0_138, %c0_139] : memref<8x16x8x128xf32, #tpu.memory_space<vmem>>, vector<1x1x8x128xf32>
    %337 = vector.shape_cast %336 : vector<1x1x8x128xf32> to vector<8x128xf32>
    %c7_140 = arith.constant 7 : index
    %c3_141 = arith.constant 3 : index
    %c0_142 = arith.constant 0 : index
    %c0_143 = arith.constant 0 : index
    %338 = vector.load %arg1[%c7_140, %c3_141, %c0_142, %c0_143] : memref<8x16x8x128xf32, #tpu.memory_space<vmem>>, vector<1x1x8x128xf32>
    %339 = vector.shape_cast %338 : vector<1x1x8x128xf32> to vector<8x128xf32>
    %c0_144 = arith.constant 0 : index
    %c3_145 = arith.constant 3 : index
    %c0_146 = arith.constant 0 : index
    %c0_147 = arith.constant 0 : index
    %340 = vector.load %arg2[%c0_144, %c3_145, %c0_146, %c0_147] : memref<2x16x8x128xf32, #tpu.memory_space<vmem>>, vector<1x1x8x128xf32>
    %341 = vector.shape_cast %340 : vector<1x1x8x128xf32> to vector<8x128xf32>
    %c1_148 = arith.constant 1 : index
    %c3_149 = arith.constant 3 : index
    %c0_150 = arith.constant 0 : index
    %c0_151 = arith.constant 0 : index
    %342 = vector.load %arg2[%c1_148, %c3_149, %c0_150, %c0_151] : memref<2x16x8x128xf32, #tpu.memory_space<vmem>>, vector<1x1x8x128xf32>
    %343 = vector.shape_cast %342 : vector<1x1x8x128xf32> to vector<8x128xf32>
    %344 = arith.mulf %325, %325 : vector<8x128xf32>
    %345 = arith.mulf %333, %333 : vector<8x128xf32>
    %346 = arith.addf %344, %345 : vector<8x128xf32>
    %347 = arith.addf %231, %346 : vector<8x128xf32>
    %348 = arith.mulf %325, %327 : vector<8x128xf32>
    %349 = arith.mulf %333, %335 : vector<8x128xf32>
    %350 = arith.addf %348, %349 : vector<8x128xf32>
    %351 = arith.addf %235, %350 : vector<8x128xf32>
    %352 = arith.mulf %325, %335 : vector<8x128xf32>
    %353 = arith.mulf %333, %327 : vector<8x128xf32>
    %354 = arith.subf %352, %353 : vector<8x128xf32>
    %355 = arith.addf %239, %354 : vector<8x128xf32>
    %356 = arith.mulf %325, %329 : vector<8x128xf32>
    %357 = arith.mulf %333, %337 : vector<8x128xf32>
    %358 = arith.addf %356, %357 : vector<8x128xf32>
    %359 = arith.addf %243, %358 : vector<8x128xf32>
    %360 = arith.mulf %325, %337 : vector<8x128xf32>
    %361 = arith.mulf %333, %329 : vector<8x128xf32>
    %362 = arith.subf %360, %361 : vector<8x128xf32>
    %363 = arith.addf %247, %362 : vector<8x128xf32>
    %364 = arith.mulf %325, %331 : vector<8x128xf32>
    %365 = arith.mulf %333, %339 : vector<8x128xf32>
    %366 = arith.addf %364, %365 : vector<8x128xf32>
    %367 = arith.addf %251, %366 : vector<8x128xf32>
    %368 = arith.mulf %325, %339 : vector<8x128xf32>
    %369 = arith.mulf %333, %331 : vector<8x128xf32>
    %370 = arith.subf %368, %369 : vector<8x128xf32>
    %371 = arith.addf %255, %370 : vector<8x128xf32>
    %372 = arith.mulf %325, %341 : vector<8x128xf32>
    %373 = arith.mulf %333, %343 : vector<8x128xf32>
    %374 = arith.addf %372, %373 : vector<8x128xf32>
    %375 = arith.mulf %325, %343 : vector<8x128xf32>
    %376 = arith.mulf %333, %341 : vector<8x128xf32>
    %377 = arith.subf %375, %376 : vector<8x128xf32>
    %378 = arith.addf %262, %374 : vector<8x128xf32>
    %379 = arith.addf %263, %377 : vector<8x128xf32>
    %380 = arith.mulf %327, %327 : vector<8x128xf32>
    %381 = arith.mulf %335, %335 : vector<8x128xf32>
    %382 = arith.addf %380, %381 : vector<8x128xf32>
    %383 = arith.addf %267, %382 : vector<8x128xf32>
    %384 = arith.mulf %327, %329 : vector<8x128xf32>
    %385 = arith.mulf %335, %337 : vector<8x128xf32>
    %386 = arith.addf %384, %385 : vector<8x128xf32>
    %387 = arith.addf %271, %386 : vector<8x128xf32>
    %388 = arith.mulf %327, %337 : vector<8x128xf32>
    %389 = arith.mulf %335, %329 : vector<8x128xf32>
    %390 = arith.subf %388, %389 : vector<8x128xf32>
    %391 = arith.addf %275, %390 : vector<8x128xf32>
    %392 = arith.mulf %327, %331 : vector<8x128xf32>
    %393 = arith.mulf %335, %339 : vector<8x128xf32>
    %394 = arith.addf %392, %393 : vector<8x128xf32>
    %395 = arith.addf %279, %394 : vector<8x128xf32>
    %396 = arith.mulf %327, %339 : vector<8x128xf32>
    %397 = arith.mulf %335, %331 : vector<8x128xf32>
    %398 = arith.subf %396, %397 : vector<8x128xf32>
    %399 = arith.addf %283, %398 : vector<8x128xf32>
    %400 = arith.mulf %327, %341 : vector<8x128xf32>
    %401 = arith.mulf %335, %343 : vector<8x128xf32>
    %402 = arith.addf %400, %401 : vector<8x128xf32>
    %403 = arith.mulf %327, %343 : vector<8x128xf32>
    %404 = arith.mulf %335, %341 : vector<8x128xf32>
    %405 = arith.subf %403, %404 : vector<8x128xf32>
    %406 = arith.addf %290, %402 : vector<8x128xf32>
    %407 = arith.addf %291, %405 : vector<8x128xf32>
    %408 = arith.mulf %329, %329 : vector<8x128xf32>
    %409 = arith.mulf %337, %337 : vector<8x128xf32>
    %410 = arith.addf %408, %409 : vector<8x128xf32>
    %411 = arith.addf %295, %410 : vector<8x128xf32>
    %412 = arith.mulf %329, %331 : vector<8x128xf32>
    %413 = arith.mulf %337, %339 : vector<8x128xf32>
    %414 = arith.addf %412, %413 : vector<8x128xf32>
    %415 = arith.addf %299, %414 : vector<8x128xf32>
    %416 = arith.mulf %329, %339 : vector<8x128xf32>
    %417 = arith.mulf %337, %331 : vector<8x128xf32>
    %418 = arith.subf %416, %417 : vector<8x128xf32>
    %419 = arith.addf %303, %418 : vector<8x128xf32>
    %420 = arith.mulf %329, %341 : vector<8x128xf32>
    %421 = arith.mulf %337, %343 : vector<8x128xf32>
    %422 = arith.addf %420, %421 : vector<8x128xf32>
    %423 = arith.mulf %329, %343 : vector<8x128xf32>
    %424 = arith.mulf %337, %341 : vector<8x128xf32>
    %425 = arith.subf %423, %424 : vector<8x128xf32>
    %426 = arith.addf %310, %422 : vector<8x128xf32>
    %427 = arith.addf %311, %425 : vector<8x128xf32>
    %428 = arith.mulf %331, %331 : vector<8x128xf32>
    %429 = arith.mulf %339, %339 : vector<8x128xf32>
    %430 = arith.addf %428, %429 : vector<8x128xf32>
    %431 = arith.addf %315, %430 : vector<8x128xf32>
    %432 = arith.mulf %331, %341 : vector<8x128xf32>
    %433 = arith.mulf %339, %343 : vector<8x128xf32>
    %434 = arith.addf %432, %433 : vector<8x128xf32>
    %435 = arith.mulf %331, %343 : vector<8x128xf32>
    %436 = arith.mulf %339, %341 : vector<8x128xf32>
    %437 = arith.subf %435, %436 : vector<8x128xf32>
    %438 = arith.addf %322, %434 : vector<8x128xf32>
    %439 = arith.addf %323, %437 : vector<8x128xf32>
    %c0_152 = arith.constant 0 : index
    %c4_153 = arith.constant 4 : index
    %c0_154 = arith.constant 0 : index
    %c0_155 = arith.constant 0 : index
    %440 = vector.load %arg1[%c0_152, %c4_153, %c0_154, %c0_155] : memref<8x16x8x128xf32, #tpu.memory_space<vmem>>, vector<1x1x8x128xf32>
    %441 = vector.shape_cast %440 : vector<1x1x8x128xf32> to vector<8x128xf32>
    %c1_156 = arith.constant 1 : index
    %c4_157 = arith.constant 4 : index
    %c0_158 = arith.constant 0 : index
    %c0_159 = arith.constant 0 : index
    %442 = vector.load %arg1[%c1_156, %c4_157, %c0_158, %c0_159] : memref<8x16x8x128xf32, #tpu.memory_space<vmem>>, vector<1x1x8x128xf32>
    %443 = vector.shape_cast %442 : vector<1x1x8x128xf32> to vector<8x128xf32>
    %c2_160 = arith.constant 2 : index
    %c4_161 = arith.constant 4 : index
    %c0_162 = arith.constant 0 : index
    %c0_163 = arith.constant 0 : index
    %444 = vector.load %arg1[%c2_160, %c4_161, %c0_162, %c0_163] : memref<8x16x8x128xf32, #tpu.memory_space<vmem>>, vector<1x1x8x128xf32>
    %445 = vector.shape_cast %444 : vector<1x1x8x128xf32> to vector<8x128xf32>
    %c3_164 = arith.constant 3 : index
    %c4_165 = arith.constant 4 : index
    %c0_166 = arith.constant 0 : index
    %c0_167 = arith.constant 0 : index
    %446 = vector.load %arg1[%c3_164, %c4_165, %c0_166, %c0_167] : memref<8x16x8x128xf32, #tpu.memory_space<vmem>>, vector<1x1x8x128xf32>
    %447 = vector.shape_cast %446 : vector<1x1x8x128xf32> to vector<8x128xf32>
    %c4_168 = arith.constant 4 : index
    %c4_169 = arith.constant 4 : index
    %c0_170 = arith.constant 0 : index
    %c0_171 = arith.constant 0 : index
    %448 = vector.load %arg1[%c4_168, %c4_169, %c0_170, %c0_171] : memref<8x16x8x128xf32, #tpu.memory_space<vmem>>, vector<1x1x8x128xf32>
    %449 = vector.shape_cast %448 : vector<1x1x8x128xf32> to vector<8x128xf32>
    %c5_172 = arith.constant 5 : index
    %c4_173 = arith.constant 4 : index
    %c0_174 = arith.constant 0 : index
    %c0_175 = arith.constant 0 : index
    %450 = vector.load %arg1[%c5_172, %c4_173, %c0_174, %c0_175] : memref<8x16x8x128xf32, #tpu.memory_space<vmem>>, vector<1x1x8x128xf32>
    %451 = vector.shape_cast %450 : vector<1x1x8x128xf32> to vector<8x128xf32>
    %c6_176 = arith.constant 6 : index
    %c4_177 = arith.constant 4 : index
    %c0_178 = arith.constant 0 : index
    %c0_179 = arith.constant 0 : index
    %452 = vector.load %arg1[%c6_176, %c4_177, %c0_178, %c0_179] : memref<8x16x8x128xf32, #tpu.memory_space<vmem>>, vector<1x1x8x128xf32>
    %453 = vector.shape_cast %452 : vector<1x1x8x128xf32> to vector<8x128xf32>
    %c7_180 = arith.constant 7 : index
    %c4_181 = arith.constant 4 : index
    %c0_182 = arith.constant 0 : index
    %c0_183 = arith.constant 0 : index
    %454 = vector.load %arg1[%c7_180, %c4_181, %c0_182, %c0_183] : memref<8x16x8x128xf32, #tpu.memory_space<vmem>>, vector<1x1x8x128xf32>
    %455 = vector.shape_cast %454 : vector<1x1x8x128xf32> to vector<8x128xf32>
    %c0_184 = arith.constant 0 : index
    %c4_185 = arith.constant 4 : index
    %c0_186 = arith.constant 0 : index
    %c0_187 = arith.constant 0 : index
    %456 = vector.load %arg2[%c0_184, %c4_185, %c0_186, %c0_187] : memref<2x16x8x128xf32, #tpu.memory_space<vmem>>, vector<1x1x8x128xf32>
    %457 = vector.shape_cast %456 : vector<1x1x8x128xf32> to vector<8x128xf32>
    %c1_188 = arith.constant 1 : index
    %c4_189 = arith.constant 4 : index
    %c0_190 = arith.constant 0 : index
    %c0_191 = arith.constant 0 : index
    %458 = vector.load %arg2[%c1_188, %c4_189, %c0_190, %c0_191] : memref<2x16x8x128xf32, #tpu.memory_space<vmem>>, vector<1x1x8x128xf32>
    %459 = vector.shape_cast %458 : vector<1x1x8x128xf32> to vector<8x128xf32>
    %460 = arith.mulf %441, %441 : vector<8x128xf32>
    %461 = arith.mulf %449, %449 : vector<8x128xf32>
    %462 = arith.addf %460, %461 : vector<8x128xf32>
    %463 = arith.addf %347, %462 : vector<8x128xf32>
    %464 = arith.mulf %441, %443 : vector<8x128xf32>
    %465 = arith.mulf %449, %451 : vector<8x128xf32>
    %466 = arith.addf %464, %465 : vector<8x128xf32>
    %467 = arith.addf %351, %466 : vector<8x128xf32>
    %468 = arith.mulf %441, %451 : vector<8x128xf32>
    %469 = arith.mulf %449, %443 : vector<8x128xf32>
    %470 = arith.subf %468, %469 : vector<8x128xf32>
    %471 = arith.addf %355, %470 : vector<8x128xf32>
    %472 = arith.mulf %441, %445 : vector<8x128xf32>
    %473 = arith.mulf %449, %453 : vector<8x128xf32>
    %474 = arith.addf %472, %473 : vector<8x128xf32>
    %475 = arith.addf %359, %474 : vector<8x128xf32>
    %476 = arith.mulf %441, %453 : vector<8x128xf32>
    %477 = arith.mulf %449, %445 : vector<8x128xf32>
    %478 = arith.subf %476, %477 : vector<8x128xf32>
    %479 = arith.addf %363, %478 : vector<8x128xf32>
    %480 = arith.mulf %441, %447 : vector<8x128xf32>
    %481 = arith.mulf %449, %455 : vector<8x128xf32>
    %482 = arith.addf %480, %481 : vector<8x128xf32>
    %483 = arith.addf %367, %482 : vector<8x128xf32>
    %484 = arith.mulf %441, %455 : vector<8x128xf32>
    %485 = arith.mulf %449, %447 : vector<8x128xf32>
    %486 = arith.subf %484, %485 : vector<8x128xf32>
    %487 = arith.addf %371, %486 : vector<8x128xf32>
    %488 = arith.mulf %441, %457 : vector<8x128xf32>
    %489 = arith.mulf %449, %459 : vector<8x128xf32>
    %490 = arith.addf %488, %489 : vector<8x128xf32>
    %491 = arith.mulf %441, %459 : vector<8x128xf32>
    %492 = arith.mulf %449, %457 : vector<8x128xf32>
    %493 = arith.subf %491, %492 : vector<8x128xf32>
    %494 = arith.addf %378, %490 : vector<8x128xf32>
    %495 = arith.addf %379, %493 : vector<8x128xf32>
    %496 = arith.mulf %443, %443 : vector<8x128xf32>
    %497 = arith.mulf %451, %451 : vector<8x128xf32>
    %498 = arith.addf %496, %497 : vector<8x128xf32>
    %499 = arith.addf %383, %498 : vector<8x128xf32>
    %500 = arith.mulf %443, %445 : vector<8x128xf32>
    %501 = arith.mulf %451, %453 : vector<8x128xf32>
    %502 = arith.addf %500, %501 : vector<8x128xf32>
    %503 = arith.addf %387, %502 : vector<8x128xf32>
    %504 = arith.mulf %443, %453 : vector<8x128xf32>
    %505 = arith.mulf %451, %445 : vector<8x128xf32>
    %506 = arith.subf %504, %505 : vector<8x128xf32>
    %507 = arith.addf %391, %506 : vector<8x128xf32>
    %508 = arith.mulf %443, %447 : vector<8x128xf32>
    %509 = arith.mulf %451, %455 : vector<8x128xf32>
    %510 = arith.addf %508, %509 : vector<8x128xf32>
    %511 = arith.addf %395, %510 : vector<8x128xf32>
    %512 = arith.mulf %443, %455 : vector<8x128xf32>
    %513 = arith.mulf %451, %447 : vector<8x128xf32>
    %514 = arith.subf %512, %513 : vector<8x128xf32>
    %515 = arith.addf %399, %514 : vector<8x128xf32>
    %516 = arith.mulf %443, %457 : vector<8x128xf32>
    %517 = arith.mulf %451, %459 : vector<8x128xf32>
    %518 = arith.addf %516, %517 : vector<8x128xf32>
    %519 = arith.mulf %443, %459 : vector<8x128xf32>
    %520 = arith.mulf %451, %457 : vector<8x128xf32>
    %521 = arith.subf %519, %520 : vector<8x128xf32>
    %522 = arith.addf %406, %518 : vector<8x128xf32>
    %523 = arith.addf %407, %521 : vector<8x128xf32>
    %524 = arith.mulf %445, %445 : vector<8x128xf32>
    %525 = arith.mulf %453, %453 : vector<8x128xf32>
    %526 = arith.addf %524, %525 : vector<8x128xf32>
    %527 = arith.addf %411, %526 : vector<8x128xf32>
    %528 = arith.mulf %445, %447 : vector<8x128xf32>
    %529 = arith.mulf %453, %455 : vector<8x128xf32>
    %530 = arith.addf %528, %529 : vector<8x128xf32>
    %531 = arith.addf %415, %530 : vector<8x128xf32>
    %532 = arith.mulf %445, %455 : vector<8x128xf32>
    %533 = arith.mulf %453, %447 : vector<8x128xf32>
    %534 = arith.subf %532, %533 : vector<8x128xf32>
    %535 = arith.addf %419, %534 : vector<8x128xf32>
    %536 = arith.mulf %445, %457 : vector<8x128xf32>
    %537 = arith.mulf %453, %459 : vector<8x128xf32>
    %538 = arith.addf %536, %537 : vector<8x128xf32>
    %539 = arith.mulf %445, %459 : vector<8x128xf32>
    %540 = arith.mulf %453, %457 : vector<8x128xf32>
    %541 = arith.subf %539, %540 : vector<8x128xf32>
    %542 = arith.addf %426, %538 : vector<8x128xf32>
    %543 = arith.addf %427, %541 : vector<8x128xf32>
    %544 = arith.mulf %447, %447 : vector<8x128xf32>
    %545 = arith.mulf %455, %455 : vector<8x128xf32>
    %546 = arith.addf %544, %545 : vector<8x128xf32>
    %547 = arith.addf %431, %546 : vector<8x128xf32>
    %548 = arith.mulf %447, %457 : vector<8x128xf32>
    %549 = arith.mulf %455, %459 : vector<8x128xf32>
    %550 = arith.addf %548, %549 : vector<8x128xf32>
    %551 = arith.mulf %447, %459 : vector<8x128xf32>
    %552 = arith.mulf %455, %457 : vector<8x128xf32>
    %553 = arith.subf %551, %552 : vector<8x128xf32>
    %554 = arith.addf %438, %550 : vector<8x128xf32>
    %555 = arith.addf %439, %553 : vector<8x128xf32>
    %c0_192 = arith.constant 0 : index
    %c5_193 = arith.constant 5 : index
    %c0_194 = arith.constant 0 : index
    %c0_195 = arith.constant 0 : index
    %556 = vector.load %arg1[%c0_192, %c5_193, %c0_194, %c0_195] : memref<8x16x8x128xf32, #tpu.memory_space<vmem>>, vector<1x1x8x128xf32>
    %557 = vector.shape_cast %556 : vector<1x1x8x128xf32> to vector<8x128xf32>
    %c1_196 = arith.constant 1 : index
    %c5_197 = arith.constant 5 : index
    %c0_198 = arith.constant 0 : index
    %c0_199 = arith.constant 0 : index
    %558 = vector.load %arg1[%c1_196, %c5_197, %c0_198, %c0_199] : memref<8x16x8x128xf32, #tpu.memory_space<vmem>>, vector<1x1x8x128xf32>
    %559 = vector.shape_cast %558 : vector<1x1x8x128xf32> to vector<8x128xf32>
    %c2_200 = arith.constant 2 : index
    %c5_201 = arith.constant 5 : index
    %c0_202 = arith.constant 0 : index
    %c0_203 = arith.constant 0 : index
    %560 = vector.load %arg1[%c2_200, %c5_201, %c0_202, %c0_203] : memref<8x16x8x128xf32, #tpu.memory_space<vmem>>, vector<1x1x8x128xf32>
    %561 = vector.shape_cast %560 : vector<1x1x8x128xf32> to vector<8x128xf32>
    %c3_204 = arith.constant 3 : index
    %c5_205 = arith.constant 5 : index
    %c0_206 = arith.constant 0 : index
    %c0_207 = arith.constant 0 : index
    %562 = vector.load %arg1[%c3_204, %c5_205, %c0_206, %c0_207] : memref<8x16x8x128xf32, #tpu.memory_space<vmem>>, vector<1x1x8x128xf32>
    %563 = vector.shape_cast %562 : vector<1x1x8x128xf32> to vector<8x128xf32>
    %c4_208 = arith.constant 4 : index
    %c5_209 = arith.constant 5 : index
    %c0_210 = arith.constant 0 : index
    %c0_211 = arith.constant 0 : index
    %564 = vector.load %arg1[%c4_208, %c5_209, %c0_210, %c0_211] : memref<8x16x8x128xf32, #tpu.memory_space<vmem>>, vector<1x1x8x128xf32>
    %565 = vector.shape_cast %564 : vector<1x1x8x128xf32> to vector<8x128xf32>
    %c5_212 = arith.constant 5 : index
    %c5_213 = arith.constant 5 : index
    %c0_214 = arith.constant 0 : index
    %c0_215 = arith.constant 0 : index
    %566 = vector.load %arg1[%c5_212, %c5_213, %c0_214, %c0_215] : memref<8x16x8x128xf32, #tpu.memory_space<vmem>>, vector<1x1x8x128xf32>
    %567 = vector.shape_cast %566 : vector<1x1x8x128xf32> to vector<8x128xf32>
    %c6_216 = arith.constant 6 : index
    %c5_217 = arith.constant 5 : index
    %c0_218 = arith.constant 0 : index
    %c0_219 = arith.constant 0 : index
    %568 = vector.load %arg1[%c6_216, %c5_217, %c0_218, %c0_219] : memref<8x16x8x128xf32, #tpu.memory_space<vmem>>, vector<1x1x8x128xf32>
    %569 = vector.shape_cast %568 : vector<1x1x8x128xf32> to vector<8x128xf32>
    %c7_220 = arith.constant 7 : index
    %c5_221 = arith.constant 5 : index
    %c0_222 = arith.constant 0 : index
    %c0_223 = arith.constant 0 : index
    %570 = vector.load %arg1[%c7_220, %c5_221, %c0_222, %c0_223] : memref<8x16x8x128xf32, #tpu.memory_space<vmem>>, vector<1x1x8x128xf32>
    %571 = vector.shape_cast %570 : vector<1x1x8x128xf32> to vector<8x128xf32>
    %c0_224 = arith.constant 0 : index
    %c5_225 = arith.constant 5 : index
    %c0_226 = arith.constant 0 : index
    %c0_227 = arith.constant 0 : index
    %572 = vector.load %arg2[%c0_224, %c5_225, %c0_226, %c0_227] : memref<2x16x8x128xf32, #tpu.memory_space<vmem>>, vector<1x1x8x128xf32>
    %573 = vector.shape_cast %572 : vector<1x1x8x128xf32> to vector<8x128xf32>
    %c1_228 = arith.constant 1 : index
    %c5_229 = arith.constant 5 : index
    %c0_230 = arith.constant 0 : index
    %c0_231 = arith.constant 0 : index
    %574 = vector.load %arg2[%c1_228, %c5_229, %c0_230, %c0_231] : memref<2x16x8x128xf32, #tpu.memory_space<vmem>>, vector<1x1x8x128xf32>
    %575 = vector.shape_cast %574 : vector<1x1x8x128xf32> to vector<8x128xf32>
    %576 = arith.mulf %557, %557 : vector<8x128xf32>
    %577 = arith.mulf %565, %565 : vector<8x128xf32>
    %578 = arith.addf %576, %577 : vector<8x128xf32>
    %579 = arith.addf %463, %578 : vector<8x128xf32>
    %580 = arith.mulf %557, %559 : vector<8x128xf32>
    %581 = arith.mulf %565, %567 : vector<8x128xf32>
    %582 = arith.addf %580, %581 : vector<8x128xf32>
    %583 = arith.addf %467, %582 : vector<8x128xf32>
    %584 = arith.mulf %557, %567 : vector<8x128xf32>
    %585 = arith.mulf %565, %559 : vector<8x128xf32>
    %586 = arith.subf %584, %585 : vector<8x128xf32>
    %587 = arith.addf %471, %586 : vector<8x128xf32>
    %588 = arith.mulf %557, %561 : vector<8x128xf32>
    %589 = arith.mulf %565, %569 : vector<8x128xf32>
    %590 = arith.addf %588, %589 : vector<8x128xf32>
    %591 = arith.addf %475, %590 : vector<8x128xf32>
    %592 = arith.mulf %557, %569 : vector<8x128xf32>
    %593 = arith.mulf %565, %561 : vector<8x128xf32>
    %594 = arith.subf %592, %593 : vector<8x128xf32>
    %595 = arith.addf %479, %594 : vector<8x128xf32>
    %596 = arith.mulf %557, %563 : vector<8x128xf32>
    %597 = arith.mulf %565, %571 : vector<8x128xf32>
    %598 = arith.addf %596, %597 : vector<8x128xf32>
    %599 = arith.addf %483, %598 : vector<8x128xf32>
    %600 = arith.mulf %557, %571 : vector<8x128xf32>
    %601 = arith.mulf %565, %563 : vector<8x128xf32>
    %602 = arith.subf %600, %601 : vector<8x128xf32>
    %603 = arith.addf %487, %602 : vector<8x128xf32>
    %604 = arith.mulf %557, %573 : vector<8x128xf32>
    %605 = arith.mulf %565, %575 : vector<8x128xf32>
    %606 = arith.addf %604, %605 : vector<8x128xf32>
    %607 = arith.mulf %557, %575 : vector<8x128xf32>
    %608 = arith.mulf %565, %573 : vector<8x128xf32>
    %609 = arith.subf %607, %608 : vector<8x128xf32>
    %610 = arith.addf %494, %606 : vector<8x128xf32>
    %611 = arith.addf %495, %609 : vector<8x128xf32>
    %612 = arith.mulf %559, %559 : vector<8x128xf32>
    %613 = arith.mulf %567, %567 : vector<8x128xf32>
    %614 = arith.addf %612, %613 : vector<8x128xf32>
    %615 = arith.addf %499, %614 : vector<8x128xf32>
    %616 = arith.mulf %559, %561 : vector<8x128xf32>
    %617 = arith.mulf %567, %569 : vector<8x128xf32>
    %618 = arith.addf %616, %617 : vector<8x128xf32>
    %619 = arith.addf %503, %618 : vector<8x128xf32>
    %620 = arith.mulf %559, %569 : vector<8x128xf32>
    %621 = arith.mulf %567, %561 : vector<8x128xf32>
    %622 = arith.subf %620, %621 : vector<8x128xf32>
    %623 = arith.addf %507, %622 : vector<8x128xf32>
    %624 = arith.mulf %559, %563 : vector<8x128xf32>
    %625 = arith.mulf %567, %571 : vector<8x128xf32>
    %626 = arith.addf %624, %625 : vector<8x128xf32>
    %627 = arith.addf %511, %626 : vector<8x128xf32>
    %628 = arith.mulf %559, %571 : vector<8x128xf32>
    %629 = arith.mulf %567, %563 : vector<8x128xf32>
    %630 = arith.subf %628, %629 : vector<8x128xf32>
    %631 = arith.addf %515, %630 : vector<8x128xf32>
    %632 = arith.mulf %559, %573 : vector<8x128xf32>
    %633 = arith.mulf %567, %575 : vector<8x128xf32>
    %634 = arith.addf %632, %633 : vector<8x128xf32>
    %635 = arith.mulf %559, %575 : vector<8x128xf32>
    %636 = arith.mulf %567, %573 : vector<8x128xf32>
    %637 = arith.subf %635, %636 : vector<8x128xf32>
    %638 = arith.addf %522, %634 : vector<8x128xf32>
    %639 = arith.addf %523, %637 : vector<8x128xf32>
    %640 = arith.mulf %561, %561 : vector<8x128xf32>
    %641 = arith.mulf %569, %569 : vector<8x128xf32>
    %642 = arith.addf %640, %641 : vector<8x128xf32>
    %643 = arith.addf %527, %642 : vector<8x128xf32>
    %644 = arith.mulf %561, %563 : vector<8x128xf32>
    %645 = arith.mulf %569, %571 : vector<8x128xf32>
    %646 = arith.addf %644, %645 : vector<8x128xf32>
    %647 = arith.addf %531, %646 : vector<8x128xf32>
    %648 = arith.mulf %561, %571 : vector<8x128xf32>
    %649 = arith.mulf %569, %563 : vector<8x128xf32>
    %650 = arith.subf %648, %649 : vector<8x128xf32>
    %651 = arith.addf %535, %650 : vector<8x128xf32>
    %652 = arith.mulf %561, %573 : vector<8x128xf32>
    %653 = arith.mulf %569, %575 : vector<8x128xf32>
    %654 = arith.addf %652, %653 : vector<8x128xf32>
    %655 = arith.mulf %561, %575 : vector<8x128xf32>
    %656 = arith.mulf %569, %573 : vector<8x128xf32>
    %657 = arith.subf %655, %656 : vector<8x128xf32>
    %658 = arith.addf %542, %654 : vector<8x128xf32>
    %659 = arith.addf %543, %657 : vector<8x128xf32>
    %660 = arith.mulf %563, %563 : vector<8x128xf32>
    %661 = arith.mulf %571, %571 : vector<8x128xf32>
    %662 = arith.addf %660, %661 : vector<8x128xf32>
    %663 = arith.addf %547, %662 : vector<8x128xf32>
    %664 = arith.mulf %563, %573 : vector<8x128xf32>
    %665 = arith.mulf %571, %575 : vector<8x128xf32>
    %666 = arith.addf %664, %665 : vector<8x128xf32>
    %667 = arith.mulf %563, %575 : vector<8x128xf32>
    %668 = arith.mulf %571, %573 : vector<8x128xf32>
    %669 = arith.subf %667, %668 : vector<8x128xf32>
    %670 = arith.addf %554, %666 : vector<8x128xf32>
    %671 = arith.addf %555, %669 : vector<8x128xf32>
    %c0_232 = arith.constant 0 : index
    %c6_233 = arith.constant 6 : index
    %c0_234 = arith.constant 0 : index
    %c0_235 = arith.constant 0 : index
    %672 = vector.load %arg1[%c0_232, %c6_233, %c0_234, %c0_235] : memref<8x16x8x128xf32, #tpu.memory_space<vmem>>, vector<1x1x8x128xf32>
    %673 = vector.shape_cast %672 : vector<1x1x8x128xf32> to vector<8x128xf32>
    %c1_236 = arith.constant 1 : index
    %c6_237 = arith.constant 6 : index
    %c0_238 = arith.constant 0 : index
    %c0_239 = arith.constant 0 : index
    %674 = vector.load %arg1[%c1_236, %c6_237, %c0_238, %c0_239] : memref<8x16x8x128xf32, #tpu.memory_space<vmem>>, vector<1x1x8x128xf32>
    %675 = vector.shape_cast %674 : vector<1x1x8x128xf32> to vector<8x128xf32>
    %c2_240 = arith.constant 2 : index
    %c6_241 = arith.constant 6 : index
    %c0_242 = arith.constant 0 : index
    %c0_243 = arith.constant 0 : index
    %676 = vector.load %arg1[%c2_240, %c6_241, %c0_242, %c0_243] : memref<8x16x8x128xf32, #tpu.memory_space<vmem>>, vector<1x1x8x128xf32>
    %677 = vector.shape_cast %676 : vector<1x1x8x128xf32> to vector<8x128xf32>
    %c3_244 = arith.constant 3 : index
    %c6_245 = arith.constant 6 : index
    %c0_246 = arith.constant 0 : index
    %c0_247 = arith.constant 0 : index
    %678 = vector.load %arg1[%c3_244, %c6_245, %c0_246, %c0_247] : memref<8x16x8x128xf32, #tpu.memory_space<vmem>>, vector<1x1x8x128xf32>
    %679 = vector.shape_cast %678 : vector<1x1x8x128xf32> to vector<8x128xf32>
    %c4_248 = arith.constant 4 : index
    %c6_249 = arith.constant 6 : index
    %c0_250 = arith.constant 0 : index
    %c0_251 = arith.constant 0 : index
    %680 = vector.load %arg1[%c4_248, %c6_249, %c0_250, %c0_251] : memref<8x16x8x128xf32, #tpu.memory_space<vmem>>, vector<1x1x8x128xf32>
    %681 = vector.shape_cast %680 : vector<1x1x8x128xf32> to vector<8x128xf32>
    %c5_252 = arith.constant 5 : index
    %c6_253 = arith.constant 6 : index
    %c0_254 = arith.constant 0 : index
    %c0_255 = arith.constant 0 : index
    %682 = vector.load %arg1[%c5_252, %c6_253, %c0_254, %c0_255] : memref<8x16x8x128xf32, #tpu.memory_space<vmem>>, vector<1x1x8x128xf32>
    %683 = vector.shape_cast %682 : vector<1x1x8x128xf32> to vector<8x128xf32>
    %c6_256 = arith.constant 6 : index
    %c6_257 = arith.constant 6 : index
    %c0_258 = arith.constant 0 : index
    %c0_259 = arith.constant 0 : index
    %684 = vector.load %arg1[%c6_256, %c6_257, %c0_258, %c0_259] : memref<8x16x8x128xf32, #tpu.memory_space<vmem>>, vector<1x1x8x128xf32>
    %685 = vector.shape_cast %684 : vector<1x1x8x128xf32> to vector<8x128xf32>
    %c7_260 = arith.constant 7 : index
    %c6_261 = arith.constant 6 : index
    %c0_262 = arith.constant 0 : index
    %c0_263 = arith.constant 0 : index
    %686 = vector.load %arg1[%c7_260, %c6_261, %c0_262, %c0_263] : memref<8x16x8x128xf32, #tpu.memory_space<vmem>>, vector<1x1x8x128xf32>
    %687 = vector.shape_cast %686 : vector<1x1x8x128xf32> to vector<8x128xf32>
    %c0_264 = arith.constant 0 : index
    %c6_265 = arith.constant 6 : index
    %c0_266 = arith.constant 0 : index
    %c0_267 = arith.constant 0 : index
    %688 = vector.load %arg2[%c0_264, %c6_265, %c0_266, %c0_267] : memref<2x16x8x128xf32, #tpu.memory_space<vmem>>, vector<1x1x8x128xf32>
    %689 = vector.shape_cast %688 : vector<1x1x8x128xf32> to vector<8x128xf32>
    %c1_268 = arith.constant 1 : index
    %c6_269 = arith.constant 6 : index
    %c0_270 = arith.constant 0 : index
    %c0_271 = arith.constant 0 : index
    %690 = vector.load %arg2[%c1_268, %c6_269, %c0_270, %c0_271] : memref<2x16x8x128xf32, #tpu.memory_space<vmem>>, vector<1x1x8x128xf32>
    %691 = vector.shape_cast %690 : vector<1x1x8x128xf32> to vector<8x128xf32>
    %692 = arith.mulf %673, %673 : vector<8x128xf32>
    %693 = arith.mulf %681, %681 : vector<8x128xf32>
    %694 = arith.addf %692, %693 : vector<8x128xf32>
    %695 = arith.addf %579, %694 : vector<8x128xf32>
    %696 = arith.mulf %673, %675 : vector<8x128xf32>
    %697 = arith.mulf %681, %683 : vector<8x128xf32>
    %698 = arith.addf %696, %697 : vector<8x128xf32>
    %699 = arith.addf %583, %698 : vector<8x128xf32>
    %700 = arith.mulf %673, %683 : vector<8x128xf32>
    %701 = arith.mulf %681, %675 : vector<8x128xf32>
    %702 = arith.subf %700, %701 : vector<8x128xf32>
    %703 = arith.addf %587, %702 : vector<8x128xf32>
    %704 = arith.mulf %673, %677 : vector<8x128xf32>
    %705 = arith.mulf %681, %685 : vector<8x128xf32>
    %706 = arith.addf %704, %705 : vector<8x128xf32>
    %707 = arith.addf %591, %706 : vector<8x128xf32>
    %708 = arith.mulf %673, %685 : vector<8x128xf32>
    %709 = arith.mulf %681, %677 : vector<8x128xf32>
    %710 = arith.subf %708, %709 : vector<8x128xf32>
    %711 = arith.addf %595, %710 : vector<8x128xf32>
    %712 = arith.mulf %673, %679 : vector<8x128xf32>
    %713 = arith.mulf %681, %687 : vector<8x128xf32>
    %714 = arith.addf %712, %713 : vector<8x128xf32>
    %715 = arith.addf %599, %714 : vector<8x128xf32>
    %716 = arith.mulf %673, %687 : vector<8x128xf32>
    %717 = arith.mulf %681, %679 : vector<8x128xf32>
    %718 = arith.subf %716, %717 : vector<8x128xf32>
    %719 = arith.addf %603, %718 : vector<8x128xf32>
    %720 = arith.mulf %673, %689 : vector<8x128xf32>
    %721 = arith.mulf %681, %691 : vector<8x128xf32>
    %722 = arith.addf %720, %721 : vector<8x128xf32>
    %723 = arith.mulf %673, %691 : vector<8x128xf32>
    %724 = arith.mulf %681, %689 : vector<8x128xf32>
    %725 = arith.subf %723, %724 : vector<8x128xf32>
    %726 = arith.addf %610, %722 : vector<8x128xf32>
    %727 = arith.addf %611, %725 : vector<8x128xf32>
    %728 = arith.mulf %675, %675 : vector<8x128xf32>
    %729 = arith.mulf %683, %683 : vector<8x128xf32>
    %730 = arith.addf %728, %729 : vector<8x128xf32>
    %731 = arith.addf %615, %730 : vector<8x128xf32>
    %732 = arith.mulf %675, %677 : vector<8x128xf32>
    %733 = arith.mulf %683, %685 : vector<8x128xf32>
    %734 = arith.addf %732, %733 : vector<8x128xf32>
    %735 = arith.addf %619, %734 : vector<8x128xf32>
    %736 = arith.mulf %675, %685 : vector<8x128xf32>
    %737 = arith.mulf %683, %677 : vector<8x128xf32>
    %738 = arith.subf %736, %737 : vector<8x128xf32>
    %739 = arith.addf %623, %738 : vector<8x128xf32>
    %740 = arith.mulf %675, %679 : vector<8x128xf32>
    %741 = arith.mulf %683, %687 : vector<8x128xf32>
    %742 = arith.addf %740, %741 : vector<8x128xf32>
    %743 = arith.addf %627, %742 : vector<8x128xf32>
    %744 = arith.mulf %675, %687 : vector<8x128xf32>
    %745 = arith.mulf %683, %679 : vector<8x128xf32>
    %746 = arith.subf %744, %745 : vector<8x128xf32>
    %747 = arith.addf %631, %746 : vector<8x128xf32>
    %748 = arith.mulf %675, %689 : vector<8x128xf32>
    %749 = arith.mulf %683, %691 : vector<8x128xf32>
    %750 = arith.addf %748, %749 : vector<8x128xf32>
    %751 = arith.mulf %675, %691 : vector<8x128xf32>
    %752 = arith.mulf %683, %689 : vector<8x128xf32>
    %753 = arith.subf %751, %752 : vector<8x128xf32>
    %754 = arith.addf %638, %750 : vector<8x128xf32>
    %755 = arith.addf %639, %753 : vector<8x128xf32>
    %756 = arith.mulf %677, %677 : vector<8x128xf32>
    %757 = arith.mulf %685, %685 : vector<8x128xf32>
    %758 = arith.addf %756, %757 : vector<8x128xf32>
    %759 = arith.addf %643, %758 : vector<8x128xf32>
    %760 = arith.mulf %677, %679 : vector<8x128xf32>
    %761 = arith.mulf %685, %687 : vector<8x128xf32>
    %762 = arith.addf %760, %761 : vector<8x128xf32>
    %763 = arith.addf %647, %762 : vector<8x128xf32>
    %764 = arith.mulf %677, %687 : vector<8x128xf32>
    %765 = arith.mulf %685, %679 : vector<8x128xf32>
    %766 = arith.subf %764, %765 : vector<8x128xf32>
    %767 = arith.addf %651, %766 : vector<8x128xf32>
    %768 = arith.mulf %677, %689 : vector<8x128xf32>
    %769 = arith.mulf %685, %691 : vector<8x128xf32>
    %770 = arith.addf %768, %769 : vector<8x128xf32>
    %771 = arith.mulf %677, %691 : vector<8x128xf32>
    %772 = arith.mulf %685, %689 : vector<8x128xf32>
    %773 = arith.subf %771, %772 : vector<8x128xf32>
    %774 = arith.addf %658, %770 : vector<8x128xf32>
    %775 = arith.addf %659, %773 : vector<8x128xf32>
    %776 = arith.mulf %679, %679 : vector<8x128xf32>
    %777 = arith.mulf %687, %687 : vector<8x128xf32>
    %778 = arith.addf %776, %777 : vector<8x128xf32>
    %779 = arith.addf %663, %778 : vector<8x128xf32>
    %780 = arith.mulf %679, %689 : vector<8x128xf32>
    %781 = arith.mulf %687, %691 : vector<8x128xf32>
    %782 = arith.addf %780, %781 : vector<8x128xf32>
    %783 = arith.mulf %679, %691 : vector<8x128xf32>
    %784 = arith.mulf %687, %689 : vector<8x128xf32>
    %785 = arith.subf %783, %784 : vector<8x128xf32>
    %786 = arith.addf %670, %782 : vector<8x128xf32>
    %787 = arith.addf %671, %785 : vector<8x128xf32>
    %c0_272 = arith.constant 0 : index
    %c7_273 = arith.constant 7 : index
    %c0_274 = arith.constant 0 : index
    %c0_275 = arith.constant 0 : index
    %788 = vector.load %arg1[%c0_272, %c7_273, %c0_274, %c0_275] : memref<8x16x8x128xf32, #tpu.memory_space<vmem>>, vector<1x1x8x128xf32>
    %789 = vector.shape_cast %788 : vector<1x1x8x128xf32> to vector<8x128xf32>
    %c1_276 = arith.constant 1 : index
    %c7_277 = arith.constant 7 : index
    %c0_278 = arith.constant 0 : index
    %c0_279 = arith.constant 0 : index
    %790 = vector.load %arg1[%c1_276, %c7_277, %c0_278, %c0_279] : memref<8x16x8x128xf32, #tpu.memory_space<vmem>>, vector<1x1x8x128xf32>
    %791 = vector.shape_cast %790 : vector<1x1x8x128xf32> to vector<8x128xf32>
    %c2_280 = arith.constant 2 : index
    %c7_281 = arith.constant 7 : index
    %c0_282 = arith.constant 0 : index
    %c0_283 = arith.constant 0 : index
    %792 = vector.load %arg1[%c2_280, %c7_281, %c0_282, %c0_283] : memref<8x16x8x128xf32, #tpu.memory_space<vmem>>, vector<1x1x8x128xf32>
    %793 = vector.shape_cast %792 : vector<1x1x8x128xf32> to vector<8x128xf32>
    %c3_284 = arith.constant 3 : index
    %c7_285 = arith.constant 7 : index
    %c0_286 = arith.constant 0 : index
    %c0_287 = arith.constant 0 : index
    %794 = vector.load %arg1[%c3_284, %c7_285, %c0_286, %c0_287] : memref<8x16x8x128xf32, #tpu.memory_space<vmem>>, vector<1x1x8x128xf32>
    %795 = vector.shape_cast %794 : vector<1x1x8x128xf32> to vector<8x128xf32>
    %c4_288 = arith.constant 4 : index
    %c7_289 = arith.constant 7 : index
    %c0_290 = arith.constant 0 : index
    %c0_291 = arith.constant 0 : index
    %796 = vector.load %arg1[%c4_288, %c7_289, %c0_290, %c0_291] : memref<8x16x8x128xf32, #tpu.memory_space<vmem>>, vector<1x1x8x128xf32>
    %797 = vector.shape_cast %796 : vector<1x1x8x128xf32> to vector<8x128xf32>
    %c5_292 = arith.constant 5 : index
    %c7_293 = arith.constant 7 : index
    %c0_294 = arith.constant 0 : index
    %c0_295 = arith.constant 0 : index
    %798 = vector.load %arg1[%c5_292, %c7_293, %c0_294, %c0_295] : memref<8x16x8x128xf32, #tpu.memory_space<vmem>>, vector<1x1x8x128xf32>
    %799 = vector.shape_cast %798 : vector<1x1x8x128xf32> to vector<8x128xf32>
    %c6_296 = arith.constant 6 : index
    %c7_297 = arith.constant 7 : index
    %c0_298 = arith.constant 0 : index
    %c0_299 = arith.constant 0 : index
    %800 = vector.load %arg1[%c6_296, %c7_297, %c0_298, %c0_299] : memref<8x16x8x128xf32, #tpu.memory_space<vmem>>, vector<1x1x8x128xf32>
    %801 = vector.shape_cast %800 : vector<1x1x8x128xf32> to vector<8x128xf32>
    %c7_300 = arith.constant 7 : index
    %c7_301 = arith.constant 7 : index
    %c0_302 = arith.constant 0 : index
    %c0_303 = arith.constant 0 : index
    %802 = vector.load %arg1[%c7_300, %c7_301, %c0_302, %c0_303] : memref<8x16x8x128xf32, #tpu.memory_space<vmem>>, vector<1x1x8x128xf32>
    %803 = vector.shape_cast %802 : vector<1x1x8x128xf32> to vector<8x128xf32>
    %c0_304 = arith.constant 0 : index
    %c7_305 = arith.constant 7 : index
    %c0_306 = arith.constant 0 : index
    %c0_307 = arith.constant 0 : index
    %804 = vector.load %arg2[%c0_304, %c7_305, %c0_306, %c0_307] : memref<2x16x8x128xf32, #tpu.memory_space<vmem>>, vector<1x1x8x128xf32>
    %805 = vector.shape_cast %804 : vector<1x1x8x128xf32> to vector<8x128xf32>
    %c1_308 = arith.constant 1 : index
    %c7_309 = arith.constant 7 : index
    %c0_310 = arith.constant 0 : index
    %c0_311 = arith.constant 0 : index
    %806 = vector.load %arg2[%c1_308, %c7_309, %c0_310, %c0_311] : memref<2x16x8x128xf32, #tpu.memory_space<vmem>>, vector<1x1x8x128xf32>
    %807 = vector.shape_cast %806 : vector<1x1x8x128xf32> to vector<8x128xf32>
    %808 = arith.mulf %789, %789 : vector<8x128xf32>
    %809 = arith.mulf %797, %797 : vector<8x128xf32>
    %810 = arith.addf %808, %809 : vector<8x128xf32>
    %811 = arith.addf %695, %810 : vector<8x128xf32>
    %812 = arith.mulf %789, %791 : vector<8x128xf32>
    %813 = arith.mulf %797, %799 : vector<8x128xf32>
    %814 = arith.addf %812, %813 : vector<8x128xf32>
    %815 = arith.addf %699, %814 : vector<8x128xf32>
    %816 = arith.mulf %789, %799 : vector<8x128xf32>
    %817 = arith.mulf %797, %791 : vector<8x128xf32>
    %818 = arith.subf %816, %817 : vector<8x128xf32>
    %819 = arith.addf %703, %818 : vector<8x128xf32>
    %820 = arith.mulf %789, %793 : vector<8x128xf32>
    %821 = arith.mulf %797, %801 : vector<8x128xf32>
    %822 = arith.addf %820, %821 : vector<8x128xf32>
    %823 = arith.addf %707, %822 : vector<8x128xf32>
    %824 = arith.mulf %789, %801 : vector<8x128xf32>
    %825 = arith.mulf %797, %793 : vector<8x128xf32>
    %826 = arith.subf %824, %825 : vector<8x128xf32>
    %827 = arith.addf %711, %826 : vector<8x128xf32>
    %828 = arith.mulf %789, %795 : vector<8x128xf32>
    %829 = arith.mulf %797, %803 : vector<8x128xf32>
    %830 = arith.addf %828, %829 : vector<8x128xf32>
    %831 = arith.addf %715, %830 : vector<8x128xf32>
    %832 = arith.mulf %789, %803 : vector<8x128xf32>
    %833 = arith.mulf %797, %795 : vector<8x128xf32>
    %834 = arith.subf %832, %833 : vector<8x128xf32>
    %835 = arith.addf %719, %834 : vector<8x128xf32>
    %836 = arith.mulf %789, %805 : vector<8x128xf32>
    %837 = arith.mulf %797, %807 : vector<8x128xf32>
    %838 = arith.addf %836, %837 : vector<8x128xf32>
    %839 = arith.mulf %789, %807 : vector<8x128xf32>
    %840 = arith.mulf %797, %805 : vector<8x128xf32>
    %841 = arith.subf %839, %840 : vector<8x128xf32>
    %842 = arith.addf %726, %838 : vector<8x128xf32>
    %843 = arith.addf %727, %841 : vector<8x128xf32>
    %844 = arith.mulf %791, %791 : vector<8x128xf32>
    %845 = arith.mulf %799, %799 : vector<8x128xf32>
    %846 = arith.addf %844, %845 : vector<8x128xf32>
    %847 = arith.addf %731, %846 : vector<8x128xf32>
    %848 = arith.mulf %791, %793 : vector<8x128xf32>
    %849 = arith.mulf %799, %801 : vector<8x128xf32>
    %850 = arith.addf %848, %849 : vector<8x128xf32>
    %851 = arith.addf %735, %850 : vector<8x128xf32>
    %852 = arith.mulf %791, %801 : vector<8x128xf32>
    %853 = arith.mulf %799, %793 : vector<8x128xf32>
    %854 = arith.subf %852, %853 : vector<8x128xf32>
    %855 = arith.addf %739, %854 : vector<8x128xf32>
    %856 = arith.mulf %791, %795 : vector<8x128xf32>
    %857 = arith.mulf %799, %803 : vector<8x128xf32>
    %858 = arith.addf %856, %857 : vector<8x128xf32>
    %859 = arith.addf %743, %858 : vector<8x128xf32>
    %860 = arith.mulf %791, %803 : vector<8x128xf32>
    %861 = arith.mulf %799, %795 : vector<8x128xf32>
    %862 = arith.subf %860, %861 : vector<8x128xf32>
    %863 = arith.addf %747, %862 : vector<8x128xf32>
    %864 = arith.mulf %791, %805 : vector<8x128xf32>
    %865 = arith.mulf %799, %807 : vector<8x128xf32>
    %866 = arith.addf %864, %865 : vector<8x128xf32>
    %867 = arith.mulf %791, %807 : vector<8x128xf32>
    %868 = arith.mulf %799, %805 : vector<8x128xf32>
    %869 = arith.subf %867, %868 : vector<8x128xf32>
    %870 = arith.addf %754, %866 : vector<8x128xf32>
    %871 = arith.addf %755, %869 : vector<8x128xf32>
    %872 = arith.mulf %793, %793 : vector<8x128xf32>
    %873 = arith.mulf %801, %801 : vector<8x128xf32>
    %874 = arith.addf %872, %873 : vector<8x128xf32>
    %875 = arith.addf %759, %874 : vector<8x128xf32>
    %876 = arith.mulf %793, %795 : vector<8x128xf32>
    %877 = arith.mulf %801, %803 : vector<8x128xf32>
    %878 = arith.addf %876, %877 : vector<8x128xf32>
    %879 = arith.addf %763, %878 : vector<8x128xf32>
    %880 = arith.mulf %793, %803 : vector<8x128xf32>
    %881 = arith.mulf %801, %795 : vector<8x128xf32>
    %882 = arith.subf %880, %881 : vector<8x128xf32>
    %883 = arith.addf %767, %882 : vector<8x128xf32>
    %884 = arith.mulf %793, %805 : vector<8x128xf32>
    %885 = arith.mulf %801, %807 : vector<8x128xf32>
    %886 = arith.addf %884, %885 : vector<8x128xf32>
    %887 = arith.mulf %793, %807 : vector<8x128xf32>
    %888 = arith.mulf %801, %805 : vector<8x128xf32>
    %889 = arith.subf %887, %888 : vector<8x128xf32>
    %890 = arith.addf %774, %886 : vector<8x128xf32>
    %891 = arith.addf %775, %889 : vector<8x128xf32>
    %892 = arith.mulf %795, %795 : vector<8x128xf32>
    %893 = arith.mulf %803, %803 : vector<8x128xf32>
    %894 = arith.addf %892, %893 : vector<8x128xf32>
    %895 = arith.addf %779, %894 : vector<8x128xf32>
    %896 = arith.mulf %795, %805 : vector<8x128xf32>
    %897 = arith.mulf %803, %807 : vector<8x128xf32>
    %898 = arith.addf %896, %897 : vector<8x128xf32>
    %899 = arith.mulf %795, %807 : vector<8x128xf32>
    %900 = arith.mulf %803, %805 : vector<8x128xf32>
    %901 = arith.subf %899, %900 : vector<8x128xf32>
    %902 = arith.addf %786, %898 : vector<8x128xf32>
    %903 = arith.addf %787, %901 : vector<8x128xf32>
    %c0_312 = arith.constant 0 : index
    %c8 = arith.constant 8 : index
    %c0_313 = arith.constant 0 : index
    %c0_314 = arith.constant 0 : index
    %904 = vector.load %arg1[%c0_312, %c8, %c0_313, %c0_314] : memref<8x16x8x128xf32, #tpu.memory_space<vmem>>, vector<1x1x8x128xf32>
    %905 = vector.shape_cast %904 : vector<1x1x8x128xf32> to vector<8x128xf32>
    %c1_315 = arith.constant 1 : index
    %c8_316 = arith.constant 8 : index
    %c0_317 = arith.constant 0 : index
    %c0_318 = arith.constant 0 : index
    %906 = vector.load %arg1[%c1_315, %c8_316, %c0_317, %c0_318] : memref<8x16x8x128xf32, #tpu.memory_space<vmem>>, vector<1x1x8x128xf32>
    %907 = vector.shape_cast %906 : vector<1x1x8x128xf32> to vector<8x128xf32>
    %c2_319 = arith.constant 2 : index
    %c8_320 = arith.constant 8 : index
    %c0_321 = arith.constant 0 : index
    %c0_322 = arith.constant 0 : index
    %908 = vector.load %arg1[%c2_319, %c8_320, %c0_321, %c0_322] : memref<8x16x8x128xf32, #tpu.memory_space<vmem>>, vector<1x1x8x128xf32>
    %909 = vector.shape_cast %908 : vector<1x1x8x128xf32> to vector<8x128xf32>
    %c3_323 = arith.constant 3 : index
    %c8_324 = arith.constant 8 : index
    %c0_325 = arith.constant 0 : index
    %c0_326 = arith.constant 0 : index
    %910 = vector.load %arg1[%c3_323, %c8_324, %c0_325, %c0_326] : memref<8x16x8x128xf32, #tpu.memory_space<vmem>>, vector<1x1x8x128xf32>
    %911 = vector.shape_cast %910 : vector<1x1x8x128xf32> to vector<8x128xf32>
    %c4_327 = arith.constant 4 : index
    %c8_328 = arith.constant 8 : index
    %c0_329 = arith.constant 0 : index
    %c0_330 = arith.constant 0 : index
    %912 = vector.load %arg1[%c4_327, %c8_328, %c0_329, %c0_330] : memref<8x16x8x128xf32, #tpu.memory_space<vmem>>, vector<1x1x8x128xf32>
    %913 = vector.shape_cast %912 : vector<1x1x8x128xf32> to vector<8x128xf32>
    %c5_331 = arith.constant 5 : index
    %c8_332 = arith.constant 8 : index
    %c0_333 = arith.constant 0 : index
    %c0_334 = arith.constant 0 : index
    %914 = vector.load %arg1[%c5_331, %c8_332, %c0_333, %c0_334] : memref<8x16x8x128xf32, #tpu.memory_space<vmem>>, vector<1x1x8x128xf32>
    %915 = vector.shape_cast %914 : vector<1x1x8x128xf32> to vector<8x128xf32>
    %c6_335 = arith.constant 6 : index
    %c8_336 = arith.constant 8 : index
    %c0_337 = arith.constant 0 : index
    %c0_338 = arith.constant 0 : index
    %916 = vector.load %arg1[%c6_335, %c8_336, %c0_337, %c0_338] : memref<8x16x8x128xf32, #tpu.memory_space<vmem>>, vector<1x1x8x128xf32>
    %917 = vector.shape_cast %916 : vector<1x1x8x128xf32> to vector<8x128xf32>
    %c7_339 = arith.constant 7 : index
    %c8_340 = arith.constant 8 : index
    %c0_341 = arith.constant 0 : index
    %c0_342 = arith.constant 0 : index
    %918 = vector.load %arg1[%c7_339, %c8_340, %c0_341, %c0_342] : memref<8x16x8x128xf32, #tpu.memory_space<vmem>>, vector<1x1x8x128xf32>
    %919 = vector.shape_cast %918 : vector<1x1x8x128xf32> to vector<8x128xf32>
    %c0_343 = arith.constant 0 : index
    %c8_344 = arith.constant 8 : index
    %c0_345 = arith.constant 0 : index
    %c0_346 = arith.constant 0 : index
    %920 = vector.load %arg2[%c0_343, %c8_344, %c0_345, %c0_346] : memref<2x16x8x128xf32, #tpu.memory_space<vmem>>, vector<1x1x8x128xf32>
    %921 = vector.shape_cast %920 : vector<1x1x8x128xf32> to vector<8x128xf32>
    %c1_347 = arith.constant 1 : index
    %c8_348 = arith.constant 8 : index
    %c0_349 = arith.constant 0 : index
    %c0_350 = arith.constant 0 : index
    %922 = vector.load %arg2[%c1_347, %c8_348, %c0_349, %c0_350] : memref<2x16x8x128xf32, #tpu.memory_space<vmem>>, vector<1x1x8x128xf32>
    %923 = vector.shape_cast %922 : vector<1x1x8x128xf32> to vector<8x128xf32>
    %924 = arith.mulf %905, %905 : vector<8x128xf32>
    %925 = arith.mulf %913, %913 : vector<8x128xf32>
    %926 = arith.addf %924, %925 : vector<8x128xf32>
    %927 = arith.addf %811, %926 : vector<8x128xf32>
    %928 = arith.mulf %905, %907 : vector<8x128xf32>
    %929 = arith.mulf %913, %915 : vector<8x128xf32>
    %930 = arith.addf %928, %929 : vector<8x128xf32>
    %931 = arith.addf %815, %930 : vector<8x128xf32>
    %932 = arith.mulf %905, %915 : vector<8x128xf32>
    %933 = arith.mulf %913, %907 : vector<8x128xf32>
    %934 = arith.subf %932, %933 : vector<8x128xf32>
    %935 = arith.addf %819, %934 : vector<8x128xf32>
    %936 = arith.mulf %905, %909 : vector<8x128xf32>
    %937 = arith.mulf %913, %917 : vector<8x128xf32>
    %938 = arith.addf %936, %937 : vector<8x128xf32>
    %939 = arith.addf %823, %938 : vector<8x128xf32>
    %940 = arith.mulf %905, %917 : vector<8x128xf32>
    %941 = arith.mulf %913, %909 : vector<8x128xf32>
    %942 = arith.subf %940, %941 : vector<8x128xf32>
    %943 = arith.addf %827, %942 : vector<8x128xf32>
    %944 = arith.mulf %905, %911 : vector<8x128xf32>
    %945 = arith.mulf %913, %919 : vector<8x128xf32>
    %946 = arith.addf %944, %945 : vector<8x128xf32>
    %947 = arith.addf %831, %946 : vector<8x128xf32>
    %948 = arith.mulf %905, %919 : vector<8x128xf32>
    %949 = arith.mulf %913, %911 : vector<8x128xf32>
    %950 = arith.subf %948, %949 : vector<8x128xf32>
    %951 = arith.addf %835, %950 : vector<8x128xf32>
    %952 = arith.mulf %905, %921 : vector<8x128xf32>
    %953 = arith.mulf %913, %923 : vector<8x128xf32>
    %954 = arith.addf %952, %953 : vector<8x128xf32>
    %955 = arith.mulf %905, %923 : vector<8x128xf32>
    %956 = arith.mulf %913, %921 : vector<8x128xf32>
    %957 = arith.subf %955, %956 : vector<8x128xf32>
    %958 = arith.addf %842, %954 : vector<8x128xf32>
    %959 = arith.addf %843, %957 : vector<8x128xf32>
    %960 = arith.mulf %907, %907 : vector<8x128xf32>
    %961 = arith.mulf %915, %915 : vector<8x128xf32>
    %962 = arith.addf %960, %961 : vector<8x128xf32>
    %963 = arith.addf %847, %962 : vector<8x128xf32>
    %964 = arith.mulf %907, %909 : vector<8x128xf32>
    %965 = arith.mulf %915, %917 : vector<8x128xf32>
    %966 = arith.addf %964, %965 : vector<8x128xf32>
    %967 = arith.addf %851, %966 : vector<8x128xf32>
    %968 = arith.mulf %907, %917 : vector<8x128xf32>
    %969 = arith.mulf %915, %909 : vector<8x128xf32>
    %970 = arith.subf %968, %969 : vector<8x128xf32>
    %971 = arith.addf %855, %970 : vector<8x128xf32>
    %972 = arith.mulf %907, %911 : vector<8x128xf32>
    %973 = arith.mulf %915, %919 : vector<8x128xf32>
    %974 = arith.addf %972, %973 : vector<8x128xf32>
    %975 = arith.addf %859, %974 : vector<8x128xf32>
    %976 = arith.mulf %907, %919 : vector<8x128xf32>
    %977 = arith.mulf %915, %911 : vector<8x128xf32>
    %978 = arith.subf %976, %977 : vector<8x128xf32>
    %979 = arith.addf %863, %978 : vector<8x128xf32>
    %980 = arith.mulf %907, %921 : vector<8x128xf32>
    %981 = arith.mulf %915, %923 : vector<8x128xf32>
    %982 = arith.addf %980, %981 : vector<8x128xf32>
    %983 = arith.mulf %907, %923 : vector<8x128xf32>
    %984 = arith.mulf %915, %921 : vector<8x128xf32>
    %985 = arith.subf %983, %984 : vector<8x128xf32>
    %986 = arith.addf %870, %982 : vector<8x128xf32>
    %987 = arith.addf %871, %985 : vector<8x128xf32>
    %988 = arith.mulf %909, %909 : vector<8x128xf32>
    %989 = arith.mulf %917, %917 : vector<8x128xf32>
    %990 = arith.addf %988, %989 : vector<8x128xf32>
    %991 = arith.addf %875, %990 : vector<8x128xf32>
    %992 = arith.mulf %909, %911 : vector<8x128xf32>
    %993 = arith.mulf %917, %919 : vector<8x128xf32>
    %994 = arith.addf %992, %993 : vector<8x128xf32>
    %995 = arith.addf %879, %994 : vector<8x128xf32>
    %996 = arith.mulf %909, %919 : vector<8x128xf32>
    %997 = arith.mulf %917, %911 : vector<8x128xf32>
    %998 = arith.subf %996, %997 : vector<8x128xf32>
    %999 = arith.addf %883, %998 : vector<8x128xf32>
    %1000 = arith.mulf %909, %921 : vector<8x128xf32>
    %1001 = arith.mulf %917, %923 : vector<8x128xf32>
    %1002 = arith.addf %1000, %1001 : vector<8x128xf32>
    %1003 = arith.mulf %909, %923 : vector<8x128xf32>
    %1004 = arith.mulf %917, %921 : vector<8x128xf32>
    %1005 = arith.subf %1003, %1004 : vector<8x128xf32>
    %1006 = arith.addf %890, %1002 : vector<8x128xf32>
    %1007 = arith.addf %891, %1005 : vector<8x128xf32>
    %1008 = arith.mulf %911, %911 : vector<8x128xf32>
    %1009 = arith.mulf %919, %919 : vector<8x128xf32>
    %1010 = arith.addf %1008, %1009 : vector<8x128xf32>
    %1011 = arith.addf %895, %1010 : vector<8x128xf32>
    %1012 = arith.mulf %911, %921 : vector<8x128xf32>
    %1013 = arith.mulf %919, %923 : vector<8x128xf32>
    %1014 = arith.addf %1012, %1013 : vector<8x128xf32>
    %1015 = arith.mulf %911, %923 : vector<8x128xf32>
    %1016 = arith.mulf %919, %921 : vector<8x128xf32>
    %1017 = arith.subf %1015, %1016 : vector<8x128xf32>
    %1018 = arith.addf %902, %1014 : vector<8x128xf32>
    %1019 = arith.addf %903, %1017 : vector<8x128xf32>
    %c0_351 = arith.constant 0 : index
    %c9 = arith.constant 9 : index
    %c0_352 = arith.constant 0 : index
    %c0_353 = arith.constant 0 : index
    %1020 = vector.load %arg1[%c0_351, %c9, %c0_352, %c0_353] : memref<8x16x8x128xf32, #tpu.memory_space<vmem>>, vector<1x1x8x128xf32>
    %1021 = vector.shape_cast %1020 : vector<1x1x8x128xf32> to vector<8x128xf32>
    %c1_354 = arith.constant 1 : index
    %c9_355 = arith.constant 9 : index
    %c0_356 = arith.constant 0 : index
    %c0_357 = arith.constant 0 : index
    %1022 = vector.load %arg1[%c1_354, %c9_355, %c0_356, %c0_357] : memref<8x16x8x128xf32, #tpu.memory_space<vmem>>, vector<1x1x8x128xf32>
    %1023 = vector.shape_cast %1022 : vector<1x1x8x128xf32> to vector<8x128xf32>
    %c2_358 = arith.constant 2 : index
    %c9_359 = arith.constant 9 : index
    %c0_360 = arith.constant 0 : index
    %c0_361 = arith.constant 0 : index
    %1024 = vector.load %arg1[%c2_358, %c9_359, %c0_360, %c0_361] : memref<8x16x8x128xf32, #tpu.memory_space<vmem>>, vector<1x1x8x128xf32>
    %1025 = vector.shape_cast %1024 : vector<1x1x8x128xf32> to vector<8x128xf32>
    %c3_362 = arith.constant 3 : index
    %c9_363 = arith.constant 9 : index
    %c0_364 = arith.constant 0 : index
    %c0_365 = arith.constant 0 : index
    %1026 = vector.load %arg1[%c3_362, %c9_363, %c0_364, %c0_365] : memref<8x16x8x128xf32, #tpu.memory_space<vmem>>, vector<1x1x8x128xf32>
    %1027 = vector.shape_cast %1026 : vector<1x1x8x128xf32> to vector<8x128xf32>
    %c4_366 = arith.constant 4 : index
    %c9_367 = arith.constant 9 : index
    %c0_368 = arith.constant 0 : index
    %c0_369 = arith.constant 0 : index
    %1028 = vector.load %arg1[%c4_366, %c9_367, %c0_368, %c0_369] : memref<8x16x8x128xf32, #tpu.memory_space<vmem>>, vector<1x1x8x128xf32>
    %1029 = vector.shape_cast %1028 : vector<1x1x8x128xf32> to vector<8x128xf32>
    %c5_370 = arith.constant 5 : index
    %c9_371 = arith.constant 9 : index
    %c0_372 = arith.constant 0 : index
    %c0_373 = arith.constant 0 : index
    %1030 = vector.load %arg1[%c5_370, %c9_371, %c0_372, %c0_373] : memref<8x16x8x128xf32, #tpu.memory_space<vmem>>, vector<1x1x8x128xf32>
    %1031 = vector.shape_cast %1030 : vector<1x1x8x128xf32> to vector<8x128xf32>
    %c6_374 = arith.constant 6 : index
    %c9_375 = arith.constant 9 : index
    %c0_376 = arith.constant 0 : index
    %c0_377 = arith.constant 0 : index
    %1032 = vector.load %arg1[%c6_374, %c9_375, %c0_376, %c0_377] : memref<8x16x8x128xf32, #tpu.memory_space<vmem>>, vector<1x1x8x128xf32>
    %1033 = vector.shape_cast %1032 : vector<1x1x8x128xf32> to vector<8x128xf32>
    %c7_378 = arith.constant 7 : index
    %c9_379 = arith.constant 9 : index
    %c0_380 = arith.constant 0 : index
    %c0_381 = arith.constant 0 : index
    %1034 = vector.load %arg1[%c7_378, %c9_379, %c0_380, %c0_381] : memref<8x16x8x128xf32, #tpu.memory_space<vmem>>, vector<1x1x8x128xf32>
    %1035 = vector.shape_cast %1034 : vector<1x1x8x128xf32> to vector<8x128xf32>
    %c0_382 = arith.constant 0 : index
    %c9_383 = arith.constant 9 : index
    %c0_384 = arith.constant 0 : index
    %c0_385 = arith.constant 0 : index
    %1036 = vector.load %arg2[%c0_382, %c9_383, %c0_384, %c0_385] : memref<2x16x8x128xf32, #tpu.memory_space<vmem>>, vector<1x1x8x128xf32>
    %1037 = vector.shape_cast %1036 : vector<1x1x8x128xf32> to vector<8x128xf32>
    %c1_386 = arith.constant 1 : index
    %c9_387 = arith.constant 9 : index
    %c0_388 = arith.constant 0 : index
    %c0_389 = arith.constant 0 : index
    %1038 = vector.load %arg2[%c1_386, %c9_387, %c0_388, %c0_389] : memref<2x16x8x128xf32, #tpu.memory_space<vmem>>, vector<1x1x8x128xf32>
    %1039 = vector.shape_cast %1038 : vector<1x1x8x128xf32> to vector<8x128xf32>
    %1040 = arith.mulf %1021, %1021 : vector<8x128xf32>
    %1041 = arith.mulf %1029, %1029 : vector<8x128xf32>
    %1042 = arith.addf %1040, %1041 : vector<8x128xf32>
    %1043 = arith.addf %927, %1042 : vector<8x128xf32>
    %1044 = arith.mulf %1021, %1023 : vector<8x128xf32>
    %1045 = arith.mulf %1029, %1031 : vector<8x128xf32>
    %1046 = arith.addf %1044, %1045 : vector<8x128xf32>
    %1047 = arith.addf %931, %1046 : vector<8x128xf32>
    %1048 = arith.mulf %1021, %1031 : vector<8x128xf32>
    %1049 = arith.mulf %1029, %1023 : vector<8x128xf32>
    %1050 = arith.subf %1048, %1049 : vector<8x128xf32>
    %1051 = arith.addf %935, %1050 : vector<8x128xf32>
    %1052 = arith.mulf %1021, %1025 : vector<8x128xf32>
    %1053 = arith.mulf %1029, %1033 : vector<8x128xf32>
    %1054 = arith.addf %1052, %1053 : vector<8x128xf32>
    %1055 = arith.addf %939, %1054 : vector<8x128xf32>
    %1056 = arith.mulf %1021, %1033 : vector<8x128xf32>
    %1057 = arith.mulf %1029, %1025 : vector<8x128xf32>
    %1058 = arith.subf %1056, %1057 : vector<8x128xf32>
    %1059 = arith.addf %943, %1058 : vector<8x128xf32>
    %1060 = arith.mulf %1021, %1027 : vector<8x128xf32>
    %1061 = arith.mulf %1029, %1035 : vector<8x128xf32>
    %1062 = arith.addf %1060, %1061 : vector<8x128xf32>
    %1063 = arith.addf %947, %1062 : vector<8x128xf32>
    %1064 = arith.mulf %1021, %1035 : vector<8x128xf32>
    %1065 = arith.mulf %1029, %1027 : vector<8x128xf32>
    %1066 = arith.subf %1064, %1065 : vector<8x128xf32>
    %1067 = arith.addf %951, %1066 : vector<8x128xf32>
    %1068 = arith.mulf %1021, %1037 : vector<8x128xf32>
    %1069 = arith.mulf %1029, %1039 : vector<8x128xf32>
    %1070 = arith.addf %1068, %1069 : vector<8x128xf32>
    %1071 = arith.mulf %1021, %1039 : vector<8x128xf32>
    %1072 = arith.mulf %1029, %1037 : vector<8x128xf32>
    %1073 = arith.subf %1071, %1072 : vector<8x128xf32>
    %1074 = arith.addf %958, %1070 : vector<8x128xf32>
    %1075 = arith.addf %959, %1073 : vector<8x128xf32>
    %1076 = arith.mulf %1023, %1023 : vector<8x128xf32>
    %1077 = arith.mulf %1031, %1031 : vector<8x128xf32>
    %1078 = arith.addf %1076, %1077 : vector<8x128xf32>
    %1079 = arith.addf %963, %1078 : vector<8x128xf32>
    %1080 = arith.mulf %1023, %1025 : vector<8x128xf32>
    %1081 = arith.mulf %1031, %1033 : vector<8x128xf32>
    %1082 = arith.addf %1080, %1081 : vector<8x128xf32>
    %1083 = arith.addf %967, %1082 : vector<8x128xf32>
    %1084 = arith.mulf %1023, %1033 : vector<8x128xf32>
    %1085 = arith.mulf %1031, %1025 : vector<8x128xf32>
    %1086 = arith.subf %1084, %1085 : vector<8x128xf32>
    %1087 = arith.addf %971, %1086 : vector<8x128xf32>
    %1088 = arith.mulf %1023, %1027 : vector<8x128xf32>
    %1089 = arith.mulf %1031, %1035 : vector<8x128xf32>
    %1090 = arith.addf %1088, %1089 : vector<8x128xf32>
    %1091 = arith.addf %975, %1090 : vector<8x128xf32>
    %1092 = arith.mulf %1023, %1035 : vector<8x128xf32>
    %1093 = arith.mulf %1031, %1027 : vector<8x128xf32>
    %1094 = arith.subf %1092, %1093 : vector<8x128xf32>
    %1095 = arith.addf %979, %1094 : vector<8x128xf32>
    %1096 = arith.mulf %1023, %1037 : vector<8x128xf32>
    %1097 = arith.mulf %1031, %1039 : vector<8x128xf32>
    %1098 = arith.addf %1096, %1097 : vector<8x128xf32>
    %1099 = arith.mulf %1023, %1039 : vector<8x128xf32>
    %1100 = arith.mulf %1031, %1037 : vector<8x128xf32>
    %1101 = arith.subf %1099, %1100 : vector<8x128xf32>
    %1102 = arith.addf %986, %1098 : vector<8x128xf32>
    %1103 = arith.addf %987, %1101 : vector<8x128xf32>
    %1104 = arith.mulf %1025, %1025 : vector<8x128xf32>
    %1105 = arith.mulf %1033, %1033 : vector<8x128xf32>
    %1106 = arith.addf %1104, %1105 : vector<8x128xf32>
    %1107 = arith.addf %991, %1106 : vector<8x128xf32>
    %1108 = arith.mulf %1025, %1027 : vector<8x128xf32>
    %1109 = arith.mulf %1033, %1035 : vector<8x128xf32>
    %1110 = arith.addf %1108, %1109 : vector<8x128xf32>
    %1111 = arith.addf %995, %1110 : vector<8x128xf32>
    %1112 = arith.mulf %1025, %1035 : vector<8x128xf32>
    %1113 = arith.mulf %1033, %1027 : vector<8x128xf32>
    %1114 = arith.subf %1112, %1113 : vector<8x128xf32>
    %1115 = arith.addf %999, %1114 : vector<8x128xf32>
    %1116 = arith.mulf %1025, %1037 : vector<8x128xf32>
    %1117 = arith.mulf %1033, %1039 : vector<8x128xf32>
    %1118 = arith.addf %1116, %1117 : vector<8x128xf32>
    %1119 = arith.mulf %1025, %1039 : vector<8x128xf32>
    %1120 = arith.mulf %1033, %1037 : vector<8x128xf32>
    %1121 = arith.subf %1119, %1120 : vector<8x128xf32>
    %1122 = arith.addf %1006, %1118 : vector<8x128xf32>
    %1123 = arith.addf %1007, %1121 : vector<8x128xf32>
    %1124 = arith.mulf %1027, %1027 : vector<8x128xf32>
    %1125 = arith.mulf %1035, %1035 : vector<8x128xf32>
    %1126 = arith.addf %1124, %1125 : vector<8x128xf32>
    %1127 = arith.addf %1011, %1126 : vector<8x128xf32>
    %1128 = arith.mulf %1027, %1037 : vector<8x128xf32>
    %1129 = arith.mulf %1035, %1039 : vector<8x128xf32>
    %1130 = arith.addf %1128, %1129 : vector<8x128xf32>
    %1131 = arith.mulf %1027, %1039 : vector<8x128xf32>
    %1132 = arith.mulf %1035, %1037 : vector<8x128xf32>
    %1133 = arith.subf %1131, %1132 : vector<8x128xf32>
    %1134 = arith.addf %1018, %1130 : vector<8x128xf32>
    %1135 = arith.addf %1019, %1133 : vector<8x128xf32>
    %c0_390 = arith.constant 0 : index
    %c10 = arith.constant 10 : index
    %c0_391 = arith.constant 0 : index
    %c0_392 = arith.constant 0 : index
    %1136 = vector.load %arg1[%c0_390, %c10, %c0_391, %c0_392] : memref<8x16x8x128xf32, #tpu.memory_space<vmem>>, vector<1x1x8x128xf32>
    %1137 = vector.shape_cast %1136 : vector<1x1x8x128xf32> to vector<8x128xf32>
    %c1_393 = arith.constant 1 : index
    %c10_394 = arith.constant 10 : index
    %c0_395 = arith.constant 0 : index
    %c0_396 = arith.constant 0 : index
    %1138 = vector.load %arg1[%c1_393, %c10_394, %c0_395, %c0_396] : memref<8x16x8x128xf32, #tpu.memory_space<vmem>>, vector<1x1x8x128xf32>
    %1139 = vector.shape_cast %1138 : vector<1x1x8x128xf32> to vector<8x128xf32>
    %c2_397 = arith.constant 2 : index
    %c10_398 = arith.constant 10 : index
    %c0_399 = arith.constant 0 : index
    %c0_400 = arith.constant 0 : index
    %1140 = vector.load %arg1[%c2_397, %c10_398, %c0_399, %c0_400] : memref<8x16x8x128xf32, #tpu.memory_space<vmem>>, vector<1x1x8x128xf32>
    %1141 = vector.shape_cast %1140 : vector<1x1x8x128xf32> to vector<8x128xf32>
    %c3_401 = arith.constant 3 : index
    %c10_402 = arith.constant 10 : index
    %c0_403 = arith.constant 0 : index
    %c0_404 = arith.constant 0 : index
    %1142 = vector.load %arg1[%c3_401, %c10_402, %c0_403, %c0_404] : memref<8x16x8x128xf32, #tpu.memory_space<vmem>>, vector<1x1x8x128xf32>
    %1143 = vector.shape_cast %1142 : vector<1x1x8x128xf32> to vector<8x128xf32>
    %c4_405 = arith.constant 4 : index
    %c10_406 = arith.constant 10 : index
    %c0_407 = arith.constant 0 : index
    %c0_408 = arith.constant 0 : index
    %1144 = vector.load %arg1[%c4_405, %c10_406, %c0_407, %c0_408] : memref<8x16x8x128xf32, #tpu.memory_space<vmem>>, vector<1x1x8x128xf32>
    %1145 = vector.shape_cast %1144 : vector<1x1x8x128xf32> to vector<8x128xf32>
    %c5_409 = arith.constant 5 : index
    %c10_410 = arith.constant 10 : index
    %c0_411 = arith.constant 0 : index
    %c0_412 = arith.constant 0 : index
    %1146 = vector.load %arg1[%c5_409, %c10_410, %c0_411, %c0_412] : memref<8x16x8x128xf32, #tpu.memory_space<vmem>>, vector<1x1x8x128xf32>
    %1147 = vector.shape_cast %1146 : vector<1x1x8x128xf32> to vector<8x128xf32>
    %c6_413 = arith.constant 6 : index
    %c10_414 = arith.constant 10 : index
    %c0_415 = arith.constant 0 : index
    %c0_416 = arith.constant 0 : index
    %1148 = vector.load %arg1[%c6_413, %c10_414, %c0_415, %c0_416] : memref<8x16x8x128xf32, #tpu.memory_space<vmem>>, vector<1x1x8x128xf32>
    %1149 = vector.shape_cast %1148 : vector<1x1x8x128xf32> to vector<8x128xf32>
    %c7_417 = arith.constant 7 : index
    %c10_418 = arith.constant 10 : index
    %c0_419 = arith.constant 0 : index
    %c0_420 = arith.constant 0 : index
    %1150 = vector.load %arg1[%c7_417, %c10_418, %c0_419, %c0_420] : memref<8x16x8x128xf32, #tpu.memory_space<vmem>>, vector<1x1x8x128xf32>
    %1151 = vector.shape_cast %1150 : vector<1x1x8x128xf32> to vector<8x128xf32>
    %c0_421 = arith.constant 0 : index
    %c10_422 = arith.constant 10 : index
    %c0_423 = arith.constant 0 : index
    %c0_424 = arith.constant 0 : index
    %1152 = vector.load %arg2[%c0_421, %c10_422, %c0_423, %c0_424] : memref<2x16x8x128xf32, #tpu.memory_space<vmem>>, vector<1x1x8x128xf32>
    %1153 = vector.shape_cast %1152 : vector<1x1x8x128xf32> to vector<8x128xf32>
    %c1_425 = arith.constant 1 : index
    %c10_426 = arith.constant 10 : index
    %c0_427 = arith.constant 0 : index
    %c0_428 = arith.constant 0 : index
    %1154 = vector.load %arg2[%c1_425, %c10_426, %c0_427, %c0_428] : memref<2x16x8x128xf32, #tpu.memory_space<vmem>>, vector<1x1x8x128xf32>
    %1155 = vector.shape_cast %1154 : vector<1x1x8x128xf32> to vector<8x128xf32>
    %1156 = arith.mulf %1137, %1137 : vector<8x128xf32>
    %1157 = arith.mulf %1145, %1145 : vector<8x128xf32>
    %1158 = arith.addf %1156, %1157 : vector<8x128xf32>
    %1159 = arith.addf %1043, %1158 : vector<8x128xf32>
    %1160 = arith.mulf %1137, %1139 : vector<8x128xf32>
    %1161 = arith.mulf %1145, %1147 : vector<8x128xf32>
    %1162 = arith.addf %1160, %1161 : vector<8x128xf32>
    %1163 = arith.addf %1047, %1162 : vector<8x128xf32>
    %1164 = arith.mulf %1137, %1147 : vector<8x128xf32>
    %1165 = arith.mulf %1145, %1139 : vector<8x128xf32>
    %1166 = arith.subf %1164, %1165 : vector<8x128xf32>
    %1167 = arith.addf %1051, %1166 : vector<8x128xf32>
    %1168 = arith.mulf %1137, %1141 : vector<8x128xf32>
    %1169 = arith.mulf %1145, %1149 : vector<8x128xf32>
    %1170 = arith.addf %1168, %1169 : vector<8x128xf32>
    %1171 = arith.addf %1055, %1170 : vector<8x128xf32>
    %1172 = arith.mulf %1137, %1149 : vector<8x128xf32>
    %1173 = arith.mulf %1145, %1141 : vector<8x128xf32>
    %1174 = arith.subf %1172, %1173 : vector<8x128xf32>
    %1175 = arith.addf %1059, %1174 : vector<8x128xf32>
    %1176 = arith.mulf %1137, %1143 : vector<8x128xf32>
    %1177 = arith.mulf %1145, %1151 : vector<8x128xf32>
    %1178 = arith.addf %1176, %1177 : vector<8x128xf32>
    %1179 = arith.addf %1063, %1178 : vector<8x128xf32>
    %1180 = arith.mulf %1137, %1151 : vector<8x128xf32>
    %1181 = arith.mulf %1145, %1143 : vector<8x128xf32>
    %1182 = arith.subf %1180, %1181 : vector<8x128xf32>
    %1183 = arith.addf %1067, %1182 : vector<8x128xf32>
    %1184 = arith.mulf %1137, %1153 : vector<8x128xf32>
    %1185 = arith.mulf %1145, %1155 : vector<8x128xf32>
    %1186 = arith.addf %1184, %1185 : vector<8x128xf32>
    %1187 = arith.mulf %1137, %1155 : vector<8x128xf32>
    %1188 = arith.mulf %1145, %1153 : vector<8x128xf32>
    %1189 = arith.subf %1187, %1188 : vector<8x128xf32>
    %1190 = arith.addf %1074, %1186 : vector<8x128xf32>
    %1191 = arith.addf %1075, %1189 : vector<8x128xf32>
    %1192 = arith.mulf %1139, %1139 : vector<8x128xf32>
    %1193 = arith.mulf %1147, %1147 : vector<8x128xf32>
    %1194 = arith.addf %1192, %1193 : vector<8x128xf32>
    %1195 = arith.addf %1079, %1194 : vector<8x128xf32>
    %1196 = arith.mulf %1139, %1141 : vector<8x128xf32>
    %1197 = arith.mulf %1147, %1149 : vector<8x128xf32>
    %1198 = arith.addf %1196, %1197 : vector<8x128xf32>
    %1199 = arith.addf %1083, %1198 : vector<8x128xf32>
    %1200 = arith.mulf %1139, %1149 : vector<8x128xf32>
    %1201 = arith.mulf %1147, %1141 : vector<8x128xf32>
    %1202 = arith.subf %1200, %1201 : vector<8x128xf32>
    %1203 = arith.addf %1087, %1202 : vector<8x128xf32>
    %1204 = arith.mulf %1139, %1143 : vector<8x128xf32>
    %1205 = arith.mulf %1147, %1151 : vector<8x128xf32>
    %1206 = arith.addf %1204, %1205 : vector<8x128xf32>
    %1207 = arith.addf %1091, %1206 : vector<8x128xf32>
    %1208 = arith.mulf %1139, %1151 : vector<8x128xf32>
    %1209 = arith.mulf %1147, %1143 : vector<8x128xf32>
    %1210 = arith.subf %1208, %1209 : vector<8x128xf32>
    %1211 = arith.addf %1095, %1210 : vector<8x128xf32>
    %1212 = arith.mulf %1139, %1153 : vector<8x128xf32>
    %1213 = arith.mulf %1147, %1155 : vector<8x128xf32>
    %1214 = arith.addf %1212, %1213 : vector<8x128xf32>
    %1215 = arith.mulf %1139, %1155 : vector<8x128xf32>
    %1216 = arith.mulf %1147, %1153 : vector<8x128xf32>
    %1217 = arith.subf %1215, %1216 : vector<8x128xf32>
    %1218 = arith.addf %1102, %1214 : vector<8x128xf32>
    %1219 = arith.addf %1103, %1217 : vector<8x128xf32>
    %1220 = arith.mulf %1141, %1141 : vector<8x128xf32>
    %1221 = arith.mulf %1149, %1149 : vector<8x128xf32>
    %1222 = arith.addf %1220, %1221 : vector<8x128xf32>
    %1223 = arith.addf %1107, %1222 : vector<8x128xf32>
    %1224 = arith.mulf %1141, %1143 : vector<8x128xf32>
    %1225 = arith.mulf %1149, %1151 : vector<8x128xf32>
    %1226 = arith.addf %1224, %1225 : vector<8x128xf32>
    %1227 = arith.addf %1111, %1226 : vector<8x128xf32>
    %1228 = arith.mulf %1141, %1151 : vector<8x128xf32>
    %1229 = arith.mulf %1149, %1143 : vector<8x128xf32>
    %1230 = arith.subf %1228, %1229 : vector<8x128xf32>
    %1231 = arith.addf %1115, %1230 : vector<8x128xf32>
    %1232 = arith.mulf %1141, %1153 : vector<8x128xf32>
    %1233 = arith.mulf %1149, %1155 : vector<8x128xf32>
    %1234 = arith.addf %1232, %1233 : vector<8x128xf32>
    %1235 = arith.mulf %1141, %1155 : vector<8x128xf32>
    %1236 = arith.mulf %1149, %1153 : vector<8x128xf32>
    %1237 = arith.subf %1235, %1236 : vector<8x128xf32>
    %1238 = arith.addf %1122, %1234 : vector<8x128xf32>
    %1239 = arith.addf %1123, %1237 : vector<8x128xf32>
    %1240 = arith.mulf %1143, %1143 : vector<8x128xf32>
    %1241 = arith.mulf %1151, %1151 : vector<8x128xf32>
    %1242 = arith.addf %1240, %1241 : vector<8x128xf32>
    %1243 = arith.addf %1127, %1242 : vector<8x128xf32>
    %1244 = arith.mulf %1143, %1153 : vector<8x128xf32>
    %1245 = arith.mulf %1151, %1155 : vector<8x128xf32>
    %1246 = arith.addf %1244, %1245 : vector<8x128xf32>
    %1247 = arith.mulf %1143, %1155 : vector<8x128xf32>
    %1248 = arith.mulf %1151, %1153 : vector<8x128xf32>
    %1249 = arith.subf %1247, %1248 : vector<8x128xf32>
    %1250 = arith.addf %1134, %1246 : vector<8x128xf32>
    %1251 = arith.addf %1135, %1249 : vector<8x128xf32>
    %c0_429 = arith.constant 0 : index
    %c11 = arith.constant 11 : index
    %c0_430 = arith.constant 0 : index
    %c0_431 = arith.constant 0 : index
    %1252 = vector.load %arg1[%c0_429, %c11, %c0_430, %c0_431] : memref<8x16x8x128xf32, #tpu.memory_space<vmem>>, vector<1x1x8x128xf32>
    %1253 = vector.shape_cast %1252 : vector<1x1x8x128xf32> to vector<8x128xf32>
    %c1_432 = arith.constant 1 : index
    %c11_433 = arith.constant 11 : index
    %c0_434 = arith.constant 0 : index
    %c0_435 = arith.constant 0 : index
    %1254 = vector.load %arg1[%c1_432, %c11_433, %c0_434, %c0_435] : memref<8x16x8x128xf32, #tpu.memory_space<vmem>>, vector<1x1x8x128xf32>
    %1255 = vector.shape_cast %1254 : vector<1x1x8x128xf32> to vector<8x128xf32>
    %c2_436 = arith.constant 2 : index
    %c11_437 = arith.constant 11 : index
    %c0_438 = arith.constant 0 : index
    %c0_439 = arith.constant 0 : index
    %1256 = vector.load %arg1[%c2_436, %c11_437, %c0_438, %c0_439] : memref<8x16x8x128xf32, #tpu.memory_space<vmem>>, vector<1x1x8x128xf32>
    %1257 = vector.shape_cast %1256 : vector<1x1x8x128xf32> to vector<8x128xf32>
    %c3_440 = arith.constant 3 : index
    %c11_441 = arith.constant 11 : index
    %c0_442 = arith.constant 0 : index
    %c0_443 = arith.constant 0 : index
    %1258 = vector.load %arg1[%c3_440, %c11_441, %c0_442, %c0_443] : memref<8x16x8x128xf32, #tpu.memory_space<vmem>>, vector<1x1x8x128xf32>
    %1259 = vector.shape_cast %1258 : vector<1x1x8x128xf32> to vector<8x128xf32>
    %c4_444 = arith.constant 4 : index
    %c11_445 = arith.constant 11 : index
    %c0_446 = arith.constant 0 : index
    %c0_447 = arith.constant 0 : index
    %1260 = vector.load %arg1[%c4_444, %c11_445, %c0_446, %c0_447] : memref<8x16x8x128xf32, #tpu.memory_space<vmem>>, vector<1x1x8x128xf32>
    %1261 = vector.shape_cast %1260 : vector<1x1x8x128xf32> to vector<8x128xf32>
    %c5_448 = arith.constant 5 : index
    %c11_449 = arith.constant 11 : index
    %c0_450 = arith.constant 0 : index
    %c0_451 = arith.constant 0 : index
    %1262 = vector.load %arg1[%c5_448, %c11_449, %c0_450, %c0_451] : memref<8x16x8x128xf32, #tpu.memory_space<vmem>>, vector<1x1x8x128xf32>
    %1263 = vector.shape_cast %1262 : vector<1x1x8x128xf32> to vector<8x128xf32>
    %c6_452 = arith.constant 6 : index
    %c11_453 = arith.constant 11 : index
    %c0_454 = arith.constant 0 : index
    %c0_455 = arith.constant 0 : index
    %1264 = vector.load %arg1[%c6_452, %c11_453, %c0_454, %c0_455] : memref<8x16x8x128xf32, #tpu.memory_space<vmem>>, vector<1x1x8x128xf32>
    %1265 = vector.shape_cast %1264 : vector<1x1x8x128xf32> to vector<8x128xf32>
    %c7_456 = arith.constant 7 : index
    %c11_457 = arith.constant 11 : index
    %c0_458 = arith.constant 0 : index
    %c0_459 = arith.constant 0 : index
    %1266 = vector.load %arg1[%c7_456, %c11_457, %c0_458, %c0_459] : memref<8x16x8x128xf32, #tpu.memory_space<vmem>>, vector<1x1x8x128xf32>
    %1267 = vector.shape_cast %1266 : vector<1x1x8x128xf32> to vector<8x128xf32>
    %c0_460 = arith.constant 0 : index
    %c11_461 = arith.constant 11 : index
    %c0_462 = arith.constant 0 : index
    %c0_463 = arith.constant 0 : index
    %1268 = vector.load %arg2[%c0_460, %c11_461, %c0_462, %c0_463] : memref<2x16x8x128xf32, #tpu.memory_space<vmem>>, vector<1x1x8x128xf32>
    %1269 = vector.shape_cast %1268 : vector<1x1x8x128xf32> to vector<8x128xf32>
    %c1_464 = arith.constant 1 : index
    %c11_465 = arith.constant 11 : index
    %c0_466 = arith.constant 0 : index
    %c0_467 = arith.constant 0 : index
    %1270 = vector.load %arg2[%c1_464, %c11_465, %c0_466, %c0_467] : memref<2x16x8x128xf32, #tpu.memory_space<vmem>>, vector<1x1x8x128xf32>
    %1271 = vector.shape_cast %1270 : vector<1x1x8x128xf32> to vector<8x128xf32>
    %1272 = arith.mulf %1253, %1253 : vector<8x128xf32>
    %1273 = arith.mulf %1261, %1261 : vector<8x128xf32>
    %1274 = arith.addf %1272, %1273 : vector<8x128xf32>
    %1275 = arith.addf %1159, %1274 : vector<8x128xf32>
    %1276 = arith.mulf %1253, %1255 : vector<8x128xf32>
    %1277 = arith.mulf %1261, %1263 : vector<8x128xf32>
    %1278 = arith.addf %1276, %1277 : vector<8x128xf32>
    %1279 = arith.addf %1163, %1278 : vector<8x128xf32>
    %1280 = arith.mulf %1253, %1263 : vector<8x128xf32>
    %1281 = arith.mulf %1261, %1255 : vector<8x128xf32>
    %1282 = arith.subf %1280, %1281 : vector<8x128xf32>
    %1283 = arith.addf %1167, %1282 : vector<8x128xf32>
    %1284 = arith.mulf %1253, %1257 : vector<8x128xf32>
    %1285 = arith.mulf %1261, %1265 : vector<8x128xf32>
    %1286 = arith.addf %1284, %1285 : vector<8x128xf32>
    %1287 = arith.addf %1171, %1286 : vector<8x128xf32>
    %1288 = arith.mulf %1253, %1265 : vector<8x128xf32>
    %1289 = arith.mulf %1261, %1257 : vector<8x128xf32>
    %1290 = arith.subf %1288, %1289 : vector<8x128xf32>
    %1291 = arith.addf %1175, %1290 : vector<8x128xf32>
    %1292 = arith.mulf %1253, %1259 : vector<8x128xf32>
    %1293 = arith.mulf %1261, %1267 : vector<8x128xf32>
    %1294 = arith.addf %1292, %1293 : vector<8x128xf32>
    %1295 = arith.addf %1179, %1294 : vector<8x128xf32>
    %1296 = arith.mulf %1253, %1267 : vector<8x128xf32>
    %1297 = arith.mulf %1261, %1259 : vector<8x128xf32>
    %1298 = arith.subf %1296, %1297 : vector<8x128xf32>
    %1299 = arith.addf %1183, %1298 : vector<8x128xf32>
    %1300 = arith.mulf %1253, %1269 : vector<8x128xf32>
    %1301 = arith.mulf %1261, %1271 : vector<8x128xf32>
    %1302 = arith.addf %1300, %1301 : vector<8x128xf32>
    %1303 = arith.mulf %1253, %1271 : vector<8x128xf32>
    %1304 = arith.mulf %1261, %1269 : vector<8x128xf32>
    %1305 = arith.subf %1303, %1304 : vector<8x128xf32>
    %1306 = arith.addf %1190, %1302 : vector<8x128xf32>
    %1307 = arith.addf %1191, %1305 : vector<8x128xf32>
    %1308 = arith.mulf %1255, %1255 : vector<8x128xf32>
    %1309 = arith.mulf %1263, %1263 : vector<8x128xf32>
    %1310 = arith.addf %1308, %1309 : vector<8x128xf32>
    %1311 = arith.addf %1195, %1310 : vector<8x128xf32>
    %1312 = arith.mulf %1255, %1257 : vector<8x128xf32>
    %1313 = arith.mulf %1263, %1265 : vector<8x128xf32>
    %1314 = arith.addf %1312, %1313 : vector<8x128xf32>
    %1315 = arith.addf %1199, %1314 : vector<8x128xf32>
    %1316 = arith.mulf %1255, %1265 : vector<8x128xf32>
    %1317 = arith.mulf %1263, %1257 : vector<8x128xf32>
    %1318 = arith.subf %1316, %1317 : vector<8x128xf32>
    %1319 = arith.addf %1203, %1318 : vector<8x128xf32>
    %1320 = arith.mulf %1255, %1259 : vector<8x128xf32>
    %1321 = arith.mulf %1263, %1267 : vector<8x128xf32>
    %1322 = arith.addf %1320, %1321 : vector<8x128xf32>
    %1323 = arith.addf %1207, %1322 : vector<8x128xf32>
    %1324 = arith.mulf %1255, %1267 : vector<8x128xf32>
    %1325 = arith.mulf %1263, %1259 : vector<8x128xf32>
    %1326 = arith.subf %1324, %1325 : vector<8x128xf32>
    %1327 = arith.addf %1211, %1326 : vector<8x128xf32>
    %1328 = arith.mulf %1255, %1269 : vector<8x128xf32>
    %1329 = arith.mulf %1263, %1271 : vector<8x128xf32>
    %1330 = arith.addf %1328, %1329 : vector<8x128xf32>
    %1331 = arith.mulf %1255, %1271 : vector<8x128xf32>
    %1332 = arith.mulf %1263, %1269 : vector<8x128xf32>
    %1333 = arith.subf %1331, %1332 : vector<8x128xf32>
    %1334 = arith.addf %1218, %1330 : vector<8x128xf32>
    %1335 = arith.addf %1219, %1333 : vector<8x128xf32>
    %1336 = arith.mulf %1257, %1257 : vector<8x128xf32>
    %1337 = arith.mulf %1265, %1265 : vector<8x128xf32>
    %1338 = arith.addf %1336, %1337 : vector<8x128xf32>
    %1339 = arith.addf %1223, %1338 : vector<8x128xf32>
    %1340 = arith.mulf %1257, %1259 : vector<8x128xf32>
    %1341 = arith.mulf %1265, %1267 : vector<8x128xf32>
    %1342 = arith.addf %1340, %1341 : vector<8x128xf32>
    %1343 = arith.addf %1227, %1342 : vector<8x128xf32>
    %1344 = arith.mulf %1257, %1267 : vector<8x128xf32>
    %1345 = arith.mulf %1265, %1259 : vector<8x128xf32>
    %1346 = arith.subf %1344, %1345 : vector<8x128xf32>
    %1347 = arith.addf %1231, %1346 : vector<8x128xf32>
    %1348 = arith.mulf %1257, %1269 : vector<8x128xf32>
    %1349 = arith.mulf %1265, %1271 : vector<8x128xf32>
    %1350 = arith.addf %1348, %1349 : vector<8x128xf32>
    %1351 = arith.mulf %1257, %1271 : vector<8x128xf32>
    %1352 = arith.mulf %1265, %1269 : vector<8x128xf32>
    %1353 = arith.subf %1351, %1352 : vector<8x128xf32>
    %1354 = arith.addf %1238, %1350 : vector<8x128xf32>
    %1355 = arith.addf %1239, %1353 : vector<8x128xf32>
    %1356 = arith.mulf %1259, %1259 : vector<8x128xf32>
    %1357 = arith.mulf %1267, %1267 : vector<8x128xf32>
    %1358 = arith.addf %1356, %1357 : vector<8x128xf32>
    %1359 = arith.addf %1243, %1358 : vector<8x128xf32>
    %1360 = arith.mulf %1259, %1269 : vector<8x128xf32>
    %1361 = arith.mulf %1267, %1271 : vector<8x128xf32>
    %1362 = arith.addf %1360, %1361 : vector<8x128xf32>
    %1363 = arith.mulf %1259, %1271 : vector<8x128xf32>
    %1364 = arith.mulf %1267, %1269 : vector<8x128xf32>
    %1365 = arith.subf %1363, %1364 : vector<8x128xf32>
    %1366 = arith.addf %1250, %1362 : vector<8x128xf32>
    %1367 = arith.addf %1251, %1365 : vector<8x128xf32>
    %c0_468 = arith.constant 0 : index
    %c12 = arith.constant 12 : index
    %c0_469 = arith.constant 0 : index
    %c0_470 = arith.constant 0 : index
    %1368 = vector.load %arg1[%c0_468, %c12, %c0_469, %c0_470] : memref<8x16x8x128xf32, #tpu.memory_space<vmem>>, vector<1x1x8x128xf32>
    %1369 = vector.shape_cast %1368 : vector<1x1x8x128xf32> to vector<8x128xf32>
    %c1_471 = arith.constant 1 : index
    %c12_472 = arith.constant 12 : index
    %c0_473 = arith.constant 0 : index
    %c0_474 = arith.constant 0 : index
    %1370 = vector.load %arg1[%c1_471, %c12_472, %c0_473, %c0_474] : memref<8x16x8x128xf32, #tpu.memory_space<vmem>>, vector<1x1x8x128xf32>
    %1371 = vector.shape_cast %1370 : vector<1x1x8x128xf32> to vector<8x128xf32>
    %c2_475 = arith.constant 2 : index
    %c12_476 = arith.constant 12 : index
    %c0_477 = arith.constant 0 : index
    %c0_478 = arith.constant 0 : index
    %1372 = vector.load %arg1[%c2_475, %c12_476, %c0_477, %c0_478] : memref<8x16x8x128xf32, #tpu.memory_space<vmem>>, vector<1x1x8x128xf32>
    %1373 = vector.shape_cast %1372 : vector<1x1x8x128xf32> to vector<8x128xf32>
    %c3_479 = arith.constant 3 : index
    %c12_480 = arith.constant 12 : index
    %c0_481 = arith.constant 0 : index
    %c0_482 = arith.constant 0 : index
    %1374 = vector.load %arg1[%c3_479, %c12_480, %c0_481, %c0_482] : memref<8x16x8x128xf32, #tpu.memory_space<vmem>>, vector<1x1x8x128xf32>
    %1375 = vector.shape_cast %1374 : vector<1x1x8x128xf32> to vector<8x128xf32>
    %c4_483 = arith.constant 4 : index
    %c12_484 = arith.constant 12 : index
    %c0_485 = arith.constant 0 : index
    %c0_486 = arith.constant 0 : index
    %1376 = vector.load %arg1[%c4_483, %c12_484, %c0_485, %c0_486] : memref<8x16x8x128xf32, #tpu.memory_space<vmem>>, vector<1x1x8x128xf32>
    %1377 = vector.shape_cast %1376 : vector<1x1x8x128xf32> to vector<8x128xf32>
    %c5_487 = arith.constant 5 : index
    %c12_488 = arith.constant 12 : index
    %c0_489 = arith.constant 0 : index
    %c0_490 = arith.constant 0 : index
    %1378 = vector.load %arg1[%c5_487, %c12_488, %c0_489, %c0_490] : memref<8x16x8x128xf32, #tpu.memory_space<vmem>>, vector<1x1x8x128xf32>
    %1379 = vector.shape_cast %1378 : vector<1x1x8x128xf32> to vector<8x128xf32>
    %c6_491 = arith.constant 6 : index
    %c12_492 = arith.constant 12 : index
    %c0_493 = arith.constant 0 : index
    %c0_494 = arith.constant 0 : index
    %1380 = vector.load %arg1[%c6_491, %c12_492, %c0_493, %c0_494] : memref<8x16x8x128xf32, #tpu.memory_space<vmem>>, vector<1x1x8x128xf32>
    %1381 = vector.shape_cast %1380 : vector<1x1x8x128xf32> to vector<8x128xf32>
    %c7_495 = arith.constant 7 : index
    %c12_496 = arith.constant 12 : index
    %c0_497 = arith.constant 0 : index
    %c0_498 = arith.constant 0 : index
    %1382 = vector.load %arg1[%c7_495, %c12_496, %c0_497, %c0_498] : memref<8x16x8x128xf32, #tpu.memory_space<vmem>>, vector<1x1x8x128xf32>
    %1383 = vector.shape_cast %1382 : vector<1x1x8x128xf32> to vector<8x128xf32>
    %c0_499 = arith.constant 0 : index
    %c12_500 = arith.constant 12 : index
    %c0_501 = arith.constant 0 : index
    %c0_502 = arith.constant 0 : index
    %1384 = vector.load %arg2[%c0_499, %c12_500, %c0_501, %c0_502] : memref<2x16x8x128xf32, #tpu.memory_space<vmem>>, vector<1x1x8x128xf32>
    %1385 = vector.shape_cast %1384 : vector<1x1x8x128xf32> to vector<8x128xf32>
    %c1_503 = arith.constant 1 : index
    %c12_504 = arith.constant 12 : index
    %c0_505 = arith.constant 0 : index
    %c0_506 = arith.constant 0 : index
    %1386 = vector.load %arg2[%c1_503, %c12_504, %c0_505, %c0_506] : memref<2x16x8x128xf32, #tpu.memory_space<vmem>>, vector<1x1x8x128xf32>
    %1387 = vector.shape_cast %1386 : vector<1x1x8x128xf32> to vector<8x128xf32>
    %1388 = arith.mulf %1369, %1369 : vector<8x128xf32>
    %1389 = arith.mulf %1377, %1377 : vector<8x128xf32>
    %1390 = arith.addf %1388, %1389 : vector<8x128xf32>
    %1391 = arith.addf %1275, %1390 : vector<8x128xf32>
    %1392 = arith.mulf %1369, %1371 : vector<8x128xf32>
    %1393 = arith.mulf %1377, %1379 : vector<8x128xf32>
    %1394 = arith.addf %1392, %1393 : vector<8x128xf32>
    %1395 = arith.addf %1279, %1394 : vector<8x128xf32>
    %1396 = arith.mulf %1369, %1379 : vector<8x128xf32>
    %1397 = arith.mulf %1377, %1371 : vector<8x128xf32>
    %1398 = arith.subf %1396, %1397 : vector<8x128xf32>
    %1399 = arith.addf %1283, %1398 : vector<8x128xf32>
    %1400 = arith.mulf %1369, %1373 : vector<8x128xf32>
    %1401 = arith.mulf %1377, %1381 : vector<8x128xf32>
    %1402 = arith.addf %1400, %1401 : vector<8x128xf32>
    %1403 = arith.addf %1287, %1402 : vector<8x128xf32>
    %1404 = arith.mulf %1369, %1381 : vector<8x128xf32>
    %1405 = arith.mulf %1377, %1373 : vector<8x128xf32>
    %1406 = arith.subf %1404, %1405 : vector<8x128xf32>
    %1407 = arith.addf %1291, %1406 : vector<8x128xf32>
    %1408 = arith.mulf %1369, %1375 : vector<8x128xf32>
    %1409 = arith.mulf %1377, %1383 : vector<8x128xf32>
    %1410 = arith.addf %1408, %1409 : vector<8x128xf32>
    %1411 = arith.addf %1295, %1410 : vector<8x128xf32>
    %1412 = arith.mulf %1369, %1383 : vector<8x128xf32>
    %1413 = arith.mulf %1377, %1375 : vector<8x128xf32>
    %1414 = arith.subf %1412, %1413 : vector<8x128xf32>
    %1415 = arith.addf %1299, %1414 : vector<8x128xf32>
    %1416 = arith.mulf %1369, %1385 : vector<8x128xf32>
    %1417 = arith.mulf %1377, %1387 : vector<8x128xf32>
    %1418 = arith.addf %1416, %1417 : vector<8x128xf32>
    %1419 = arith.mulf %1369, %1387 : vector<8x128xf32>
    %1420 = arith.mulf %1377, %1385 : vector<8x128xf32>
    %1421 = arith.subf %1419, %1420 : vector<8x128xf32>
    %1422 = arith.addf %1306, %1418 : vector<8x128xf32>
    %1423 = arith.addf %1307, %1421 : vector<8x128xf32>
    %1424 = arith.mulf %1371, %1371 : vector<8x128xf32>
    %1425 = arith.mulf %1379, %1379 : vector<8x128xf32>
    %1426 = arith.addf %1424, %1425 : vector<8x128xf32>
    %1427 = arith.addf %1311, %1426 : vector<8x128xf32>
    %1428 = arith.mulf %1371, %1373 : vector<8x128xf32>
    %1429 = arith.mulf %1379, %1381 : vector<8x128xf32>
    %1430 = arith.addf %1428, %1429 : vector<8x128xf32>
    %1431 = arith.addf %1315, %1430 : vector<8x128xf32>
    %1432 = arith.mulf %1371, %1381 : vector<8x128xf32>
    %1433 = arith.mulf %1379, %1373 : vector<8x128xf32>
    %1434 = arith.subf %1432, %1433 : vector<8x128xf32>
    %1435 = arith.addf %1319, %1434 : vector<8x128xf32>
    %1436 = arith.mulf %1371, %1375 : vector<8x128xf32>
    %1437 = arith.mulf %1379, %1383 : vector<8x128xf32>
    %1438 = arith.addf %1436, %1437 : vector<8x128xf32>
    %1439 = arith.addf %1323, %1438 : vector<8x128xf32>
    %1440 = arith.mulf %1371, %1383 : vector<8x128xf32>
    %1441 = arith.mulf %1379, %1375 : vector<8x128xf32>
    %1442 = arith.subf %1440, %1441 : vector<8x128xf32>
    %1443 = arith.addf %1327, %1442 : vector<8x128xf32>
    %1444 = arith.mulf %1371, %1385 : vector<8x128xf32>
    %1445 = arith.mulf %1379, %1387 : vector<8x128xf32>
    %1446 = arith.addf %1444, %1445 : vector<8x128xf32>
    %1447 = arith.mulf %1371, %1387 : vector<8x128xf32>
    %1448 = arith.mulf %1379, %1385 : vector<8x128xf32>
    %1449 = arith.subf %1447, %1448 : vector<8x128xf32>
    %1450 = arith.addf %1334, %1446 : vector<8x128xf32>
    %1451 = arith.addf %1335, %1449 : vector<8x128xf32>
    %1452 = arith.mulf %1373, %1373 : vector<8x128xf32>
    %1453 = arith.mulf %1381, %1381 : vector<8x128xf32>
    %1454 = arith.addf %1452, %1453 : vector<8x128xf32>
    %1455 = arith.addf %1339, %1454 : vector<8x128xf32>
    %1456 = arith.mulf %1373, %1375 : vector<8x128xf32>
    %1457 = arith.mulf %1381, %1383 : vector<8x128xf32>
    %1458 = arith.addf %1456, %1457 : vector<8x128xf32>
    %1459 = arith.addf %1343, %1458 : vector<8x128xf32>
    %1460 = arith.mulf %1373, %1383 : vector<8x128xf32>
    %1461 = arith.mulf %1381, %1375 : vector<8x128xf32>
    %1462 = arith.subf %1460, %1461 : vector<8x128xf32>
    %1463 = arith.addf %1347, %1462 : vector<8x128xf32>
    %1464 = arith.mulf %1373, %1385 : vector<8x128xf32>
    %1465 = arith.mulf %1381, %1387 : vector<8x128xf32>
    %1466 = arith.addf %1464, %1465 : vector<8x128xf32>
    %1467 = arith.mulf %1373, %1387 : vector<8x128xf32>
    %1468 = arith.mulf %1381, %1385 : vector<8x128xf32>
    %1469 = arith.subf %1467, %1468 : vector<8x128xf32>
    %1470 = arith.addf %1354, %1466 : vector<8x128xf32>
    %1471 = arith.addf %1355, %1469 : vector<8x128xf32>
    %1472 = arith.mulf %1375, %1375 : vector<8x128xf32>
    %1473 = arith.mulf %1383, %1383 : vector<8x128xf32>
    %1474 = arith.addf %1472, %1473 : vector<8x128xf32>
    %1475 = arith.addf %1359, %1474 : vector<8x128xf32>
    %1476 = arith.mulf %1375, %1385 : vector<8x128xf32>
    %1477 = arith.mulf %1383, %1387 : vector<8x128xf32>
    %1478 = arith.addf %1476, %1477 : vector<8x128xf32>
    %1479 = arith.mulf %1375, %1387 : vector<8x128xf32>
    %1480 = arith.mulf %1383, %1385 : vector<8x128xf32>
    %1481 = arith.subf %1479, %1480 : vector<8x128xf32>
    %1482 = arith.addf %1366, %1478 : vector<8x128xf32>
    %1483 = arith.addf %1367, %1481 : vector<8x128xf32>
    %c0_507 = arith.constant 0 : index
    %c13 = arith.constant 13 : index
    %c0_508 = arith.constant 0 : index
    %c0_509 = arith.constant 0 : index
    %1484 = vector.load %arg1[%c0_507, %c13, %c0_508, %c0_509] : memref<8x16x8x128xf32, #tpu.memory_space<vmem>>, vector<1x1x8x128xf32>
    %1485 = vector.shape_cast %1484 : vector<1x1x8x128xf32> to vector<8x128xf32>
    %c1_510 = arith.constant 1 : index
    %c13_511 = arith.constant 13 : index
    %c0_512 = arith.constant 0 : index
    %c0_513 = arith.constant 0 : index
    %1486 = vector.load %arg1[%c1_510, %c13_511, %c0_512, %c0_513] : memref<8x16x8x128xf32, #tpu.memory_space<vmem>>, vector<1x1x8x128xf32>
    %1487 = vector.shape_cast %1486 : vector<1x1x8x128xf32> to vector<8x128xf32>
    %c2_514 = arith.constant 2 : index
    %c13_515 = arith.constant 13 : index
    %c0_516 = arith.constant 0 : index
    %c0_517 = arith.constant 0 : index
    %1488 = vector.load %arg1[%c2_514, %c13_515, %c0_516, %c0_517] : memref<8x16x8x128xf32, #tpu.memory_space<vmem>>, vector<1x1x8x128xf32>
    %1489 = vector.shape_cast %1488 : vector<1x1x8x128xf32> to vector<8x128xf32>
    %c3_518 = arith.constant 3 : index
    %c13_519 = arith.constant 13 : index
    %c0_520 = arith.constant 0 : index
    %c0_521 = arith.constant 0 : index
    %1490 = vector.load %arg1[%c3_518, %c13_519, %c0_520, %c0_521] : memref<8x16x8x128xf32, #tpu.memory_space<vmem>>, vector<1x1x8x128xf32>
    %1491 = vector.shape_cast %1490 : vector<1x1x8x128xf32> to vector<8x128xf32>
    %c4_522 = arith.constant 4 : index
    %c13_523 = arith.constant 13 : index
    %c0_524 = arith.constant 0 : index
    %c0_525 = arith.constant 0 : index
    %1492 = vector.load %arg1[%c4_522, %c13_523, %c0_524, %c0_525] : memref<8x16x8x128xf32, #tpu.memory_space<vmem>>, vector<1x1x8x128xf32>
    %1493 = vector.shape_cast %1492 : vector<1x1x8x128xf32> to vector<8x128xf32>
    %c5_526 = arith.constant 5 : index
    %c13_527 = arith.constant 13 : index
    %c0_528 = arith.constant 0 : index
    %c0_529 = arith.constant 0 : index
    %1494 = vector.load %arg1[%c5_526, %c13_527, %c0_528, %c0_529] : memref<8x16x8x128xf32, #tpu.memory_space<vmem>>, vector<1x1x8x128xf32>
    %1495 = vector.shape_cast %1494 : vector<1x1x8x128xf32> to vector<8x128xf32>
    %c6_530 = arith.constant 6 : index
    %c13_531 = arith.constant 13 : index
    %c0_532 = arith.constant 0 : index
    %c0_533 = arith.constant 0 : index
    %1496 = vector.load %arg1[%c6_530, %c13_531, %c0_532, %c0_533] : memref<8x16x8x128xf32, #tpu.memory_space<vmem>>, vector<1x1x8x128xf32>
    %1497 = vector.shape_cast %1496 : vector<1x1x8x128xf32> to vector<8x128xf32>
    %c7_534 = arith.constant 7 : index
    %c13_535 = arith.constant 13 : index
    %c0_536 = arith.constant 0 : index
    %c0_537 = arith.constant 0 : index
    %1498 = vector.load %arg1[%c7_534, %c13_535, %c0_536, %c0_537] : memref<8x16x8x128xf32, #tpu.memory_space<vmem>>, vector<1x1x8x128xf32>
    %1499 = vector.shape_cast %1498 : vector<1x1x8x128xf32> to vector<8x128xf32>
    %c0_538 = arith.constant 0 : index
    %c13_539 = arith.constant 13 : index
    %c0_540 = arith.constant 0 : index
    %c0_541 = arith.constant 0 : index
    %1500 = vector.load %arg2[%c0_538, %c13_539, %c0_540, %c0_541] : memref<2x16x8x128xf32, #tpu.memory_space<vmem>>, vector<1x1x8x128xf32>
    %1501 = vector.shape_cast %1500 : vector<1x1x8x128xf32> to vector<8x128xf32>
    %c1_542 = arith.constant 1 : index
    %c13_543 = arith.constant 13 : index
    %c0_544 = arith.constant 0 : index
    %c0_545 = arith.constant 0 : index
    %1502 = vector.load %arg2[%c1_542, %c13_543, %c0_544, %c0_545] : memref<2x16x8x128xf32, #tpu.memory_space<vmem>>, vector<1x1x8x128xf32>
    %1503 = vector.shape_cast %1502 : vector<1x1x8x128xf32> to vector<8x128xf32>
    %1504 = arith.mulf %1485, %1485 : vector<8x128xf32>
    %1505 = arith.mulf %1493, %1493 : vector<8x128xf32>
    %1506 = arith.addf %1504, %1505 : vector<8x128xf32>
    %1507 = arith.addf %1391, %1506 : vector<8x128xf32>
    %1508 = arith.mulf %1485, %1487 : vector<8x128xf32>
    %1509 = arith.mulf %1493, %1495 : vector<8x128xf32>
    %1510 = arith.addf %1508, %1509 : vector<8x128xf32>
    %1511 = arith.addf %1395, %1510 : vector<8x128xf32>
    %1512 = arith.mulf %1485, %1495 : vector<8x128xf32>
    %1513 = arith.mulf %1493, %1487 : vector<8x128xf32>
    %1514 = arith.subf %1512, %1513 : vector<8x128xf32>
    %1515 = arith.addf %1399, %1514 : vector<8x128xf32>
    %1516 = arith.mulf %1485, %1489 : vector<8x128xf32>
    %1517 = arith.mulf %1493, %1497 : vector<8x128xf32>
    %1518 = arith.addf %1516, %1517 : vector<8x128xf32>
    %1519 = arith.addf %1403, %1518 : vector<8x128xf32>
    %1520 = arith.mulf %1485, %1497 : vector<8x128xf32>
    %1521 = arith.mulf %1493, %1489 : vector<8x128xf32>
    %1522 = arith.subf %1520, %1521 : vector<8x128xf32>
    %1523 = arith.addf %1407, %1522 : vector<8x128xf32>
    %1524 = arith.mulf %1485, %1491 : vector<8x128xf32>
    %1525 = arith.mulf %1493, %1499 : vector<8x128xf32>
    %1526 = arith.addf %1524, %1525 : vector<8x128xf32>
    %1527 = arith.addf %1411, %1526 : vector<8x128xf32>
    %1528 = arith.mulf %1485, %1499 : vector<8x128xf32>
    %1529 = arith.mulf %1493, %1491 : vector<8x128xf32>
    %1530 = arith.subf %1528, %1529 : vector<8x128xf32>
    %1531 = arith.addf %1415, %1530 : vector<8x128xf32>
    %1532 = arith.mulf %1485, %1501 : vector<8x128xf32>
    %1533 = arith.mulf %1493, %1503 : vector<8x128xf32>
    %1534 = arith.addf %1532, %1533 : vector<8x128xf32>
    %1535 = arith.mulf %1485, %1503 : vector<8x128xf32>
    %1536 = arith.mulf %1493, %1501 : vector<8x128xf32>
    %1537 = arith.subf %1535, %1536 : vector<8x128xf32>
    %1538 = arith.addf %1422, %1534 : vector<8x128xf32>
    %1539 = arith.addf %1423, %1537 : vector<8x128xf32>
    %1540 = arith.mulf %1487, %1487 : vector<8x128xf32>
    %1541 = arith.mulf %1495, %1495 : vector<8x128xf32>
    %1542 = arith.addf %1540, %1541 : vector<8x128xf32>
    %1543 = arith.addf %1427, %1542 : vector<8x128xf32>
    %1544 = arith.mulf %1487, %1489 : vector<8x128xf32>
    %1545 = arith.mulf %1495, %1497 : vector<8x128xf32>
    %1546 = arith.addf %1544, %1545 : vector<8x128xf32>
    %1547 = arith.addf %1431, %1546 : vector<8x128xf32>
    %1548 = arith.mulf %1487, %1497 : vector<8x128xf32>
    %1549 = arith.mulf %1495, %1489 : vector<8x128xf32>
    %1550 = arith.subf %1548, %1549 : vector<8x128xf32>
    %1551 = arith.addf %1435, %1550 : vector<8x128xf32>
    %1552 = arith.mulf %1487, %1491 : vector<8x128xf32>
    %1553 = arith.mulf %1495, %1499 : vector<8x128xf32>
    %1554 = arith.addf %1552, %1553 : vector<8x128xf32>
    %1555 = arith.addf %1439, %1554 : vector<8x128xf32>
    %1556 = arith.mulf %1487, %1499 : vector<8x128xf32>
    %1557 = arith.mulf %1495, %1491 : vector<8x128xf32>
    %1558 = arith.subf %1556, %1557 : vector<8x128xf32>
    %1559 = arith.addf %1443, %1558 : vector<8x128xf32>
    %1560 = arith.mulf %1487, %1501 : vector<8x128xf32>
    %1561 = arith.mulf %1495, %1503 : vector<8x128xf32>
    %1562 = arith.addf %1560, %1561 : vector<8x128xf32>
    %1563 = arith.mulf %1487, %1503 : vector<8x128xf32>
    %1564 = arith.mulf %1495, %1501 : vector<8x128xf32>
    %1565 = arith.subf %1563, %1564 : vector<8x128xf32>
    %1566 = arith.addf %1450, %1562 : vector<8x128xf32>
    %1567 = arith.addf %1451, %1565 : vector<8x128xf32>
    %1568 = arith.mulf %1489, %1489 : vector<8x128xf32>
    %1569 = arith.mulf %1497, %1497 : vector<8x128xf32>
    %1570 = arith.addf %1568, %1569 : vector<8x128xf32>
    %1571 = arith.addf %1455, %1570 : vector<8x128xf32>
    %1572 = arith.mulf %1489, %1491 : vector<8x128xf32>
    %1573 = arith.mulf %1497, %1499 : vector<8x128xf32>
    %1574 = arith.addf %1572, %1573 : vector<8x128xf32>
    %1575 = arith.addf %1459, %1574 : vector<8x128xf32>
    %1576 = arith.mulf %1489, %1499 : vector<8x128xf32>
    %1577 = arith.mulf %1497, %1491 : vector<8x128xf32>
    %1578 = arith.subf %1576, %1577 : vector<8x128xf32>
    %1579 = arith.addf %1463, %1578 : vector<8x128xf32>
    %1580 = arith.mulf %1489, %1501 : vector<8x128xf32>
    %1581 = arith.mulf %1497, %1503 : vector<8x128xf32>
    %1582 = arith.addf %1580, %1581 : vector<8x128xf32>
    %1583 = arith.mulf %1489, %1503 : vector<8x128xf32>
    %1584 = arith.mulf %1497, %1501 : vector<8x128xf32>
    %1585 = arith.subf %1583, %1584 : vector<8x128xf32>
    %1586 = arith.addf %1470, %1582 : vector<8x128xf32>
    %1587 = arith.addf %1471, %1585 : vector<8x128xf32>
    %1588 = arith.mulf %1491, %1491 : vector<8x128xf32>
    %1589 = arith.mulf %1499, %1499 : vector<8x128xf32>
    %1590 = arith.addf %1588, %1589 : vector<8x128xf32>
    %1591 = arith.addf %1475, %1590 : vector<8x128xf32>
    %1592 = arith.mulf %1491, %1501 : vector<8x128xf32>
    %1593 = arith.mulf %1499, %1503 : vector<8x128xf32>
    %1594 = arith.addf %1592, %1593 : vector<8x128xf32>
    %1595 = arith.mulf %1491, %1503 : vector<8x128xf32>
    %1596 = arith.mulf %1499, %1501 : vector<8x128xf32>
    %1597 = arith.subf %1595, %1596 : vector<8x128xf32>
    %1598 = arith.addf %1482, %1594 : vector<8x128xf32>
    %1599 = arith.addf %1483, %1597 : vector<8x128xf32>
    %c0_546 = arith.constant 0 : index
    %c14 = arith.constant 14 : index
    %c0_547 = arith.constant 0 : index
    %c0_548 = arith.constant 0 : index
    %1600 = vector.load %arg1[%c0_546, %c14, %c0_547, %c0_548] : memref<8x16x8x128xf32, #tpu.memory_space<vmem>>, vector<1x1x8x128xf32>
    %1601 = vector.shape_cast %1600 : vector<1x1x8x128xf32> to vector<8x128xf32>
    %c1_549 = arith.constant 1 : index
    %c14_550 = arith.constant 14 : index
    %c0_551 = arith.constant 0 : index
    %c0_552 = arith.constant 0 : index
    %1602 = vector.load %arg1[%c1_549, %c14_550, %c0_551, %c0_552] : memref<8x16x8x128xf32, #tpu.memory_space<vmem>>, vector<1x1x8x128xf32>
    %1603 = vector.shape_cast %1602 : vector<1x1x8x128xf32> to vector<8x128xf32>
    %c2_553 = arith.constant 2 : index
    %c14_554 = arith.constant 14 : index
    %c0_555 = arith.constant 0 : index
    %c0_556 = arith.constant 0 : index
    %1604 = vector.load %arg1[%c2_553, %c14_554, %c0_555, %c0_556] : memref<8x16x8x128xf32, #tpu.memory_space<vmem>>, vector<1x1x8x128xf32>
    %1605 = vector.shape_cast %1604 : vector<1x1x8x128xf32> to vector<8x128xf32>
    %c3_557 = arith.constant 3 : index
    %c14_558 = arith.constant 14 : index
    %c0_559 = arith.constant 0 : index
    %c0_560 = arith.constant 0 : index
    %1606 = vector.load %arg1[%c3_557, %c14_558, %c0_559, %c0_560] : memref<8x16x8x128xf32, #tpu.memory_space<vmem>>, vector<1x1x8x128xf32>
    %1607 = vector.shape_cast %1606 : vector<1x1x8x128xf32> to vector<8x128xf32>
    %c4_561 = arith.constant 4 : index
    %c14_562 = arith.constant 14 : index
    %c0_563 = arith.constant 0 : index
    %c0_564 = arith.constant 0 : index
    %1608 = vector.load %arg1[%c4_561, %c14_562, %c0_563, %c0_564] : memref<8x16x8x128xf32, #tpu.memory_space<vmem>>, vector<1x1x8x128xf32>
    %1609 = vector.shape_cast %1608 : vector<1x1x8x128xf32> to vector<8x128xf32>
    %c5_565 = arith.constant 5 : index
    %c14_566 = arith.constant 14 : index
    %c0_567 = arith.constant 0 : index
    %c0_568 = arith.constant 0 : index
    %1610 = vector.load %arg1[%c5_565, %c14_566, %c0_567, %c0_568] : memref<8x16x8x128xf32, #tpu.memory_space<vmem>>, vector<1x1x8x128xf32>
    %1611 = vector.shape_cast %1610 : vector<1x1x8x128xf32> to vector<8x128xf32>
    %c6_569 = arith.constant 6 : index
    %c14_570 = arith.constant 14 : index
    %c0_571 = arith.constant 0 : index
    %c0_572 = arith.constant 0 : index
    %1612 = vector.load %arg1[%c6_569, %c14_570, %c0_571, %c0_572] : memref<8x16x8x128xf32, #tpu.memory_space<vmem>>, vector<1x1x8x128xf32>
    %1613 = vector.shape_cast %1612 : vector<1x1x8x128xf32> to vector<8x128xf32>
    %c7_573 = arith.constant 7 : index
    %c14_574 = arith.constant 14 : index
    %c0_575 = arith.constant 0 : index
    %c0_576 = arith.constant 0 : index
    %1614 = vector.load %arg1[%c7_573, %c14_574, %c0_575, %c0_576] : memref<8x16x8x128xf32, #tpu.memory_space<vmem>>, vector<1x1x8x128xf32>
    %1615 = vector.shape_cast %1614 : vector<1x1x8x128xf32> to vector<8x128xf32>
    %c0_577 = arith.constant 0 : index
    %c14_578 = arith.constant 14 : index
    %c0_579 = arith.constant 0 : index
    %c0_580 = arith.constant 0 : index
    %1616 = vector.load %arg2[%c0_577, %c14_578, %c0_579, %c0_580] : memref<2x16x8x128xf32, #tpu.memory_space<vmem>>, vector<1x1x8x128xf32>
    %1617 = vector.shape_cast %1616 : vector<1x1x8x128xf32> to vector<8x128xf32>
    %c1_581 = arith.constant 1 : index
    %c14_582 = arith.constant 14 : index
    %c0_583 = arith.constant 0 : index
    %c0_584 = arith.constant 0 : index
    %1618 = vector.load %arg2[%c1_581, %c14_582, %c0_583, %c0_584] : memref<2x16x8x128xf32, #tpu.memory_space<vmem>>, vector<1x1x8x128xf32>
    %1619 = vector.shape_cast %1618 : vector<1x1x8x128xf32> to vector<8x128xf32>
    %1620 = arith.mulf %1601, %1601 : vector<8x128xf32>
    %1621 = arith.mulf %1609, %1609 : vector<8x128xf32>
    %1622 = arith.addf %1620, %1621 : vector<8x128xf32>
    %1623 = arith.addf %1507, %1622 : vector<8x128xf32>
    %1624 = arith.mulf %1601, %1603 : vector<8x128xf32>
    %1625 = arith.mulf %1609, %1611 : vector<8x128xf32>
    %1626 = arith.addf %1624, %1625 : vector<8x128xf32>
    %1627 = arith.addf %1511, %1626 : vector<8x128xf32>
    %1628 = arith.mulf %1601, %1611 : vector<8x128xf32>
    %1629 = arith.mulf %1609, %1603 : vector<8x128xf32>
    %1630 = arith.subf %1628, %1629 : vector<8x128xf32>
    %1631 = arith.addf %1515, %1630 : vector<8x128xf32>
    %1632 = arith.mulf %1601, %1605 : vector<8x128xf32>
    %1633 = arith.mulf %1609, %1613 : vector<8x128xf32>
    %1634 = arith.addf %1632, %1633 : vector<8x128xf32>
    %1635 = arith.addf %1519, %1634 : vector<8x128xf32>
    %1636 = arith.mulf %1601, %1613 : vector<8x128xf32>
    %1637 = arith.mulf %1609, %1605 : vector<8x128xf32>
    %1638 = arith.subf %1636, %1637 : vector<8x128xf32>
    %1639 = arith.addf %1523, %1638 : vector<8x128xf32>
    %1640 = arith.mulf %1601, %1607 : vector<8x128xf32>
    %1641 = arith.mulf %1609, %1615 : vector<8x128xf32>
    %1642 = arith.addf %1640, %1641 : vector<8x128xf32>
    %1643 = arith.addf %1527, %1642 : vector<8x128xf32>
    %1644 = arith.mulf %1601, %1615 : vector<8x128xf32>
    %1645 = arith.mulf %1609, %1607 : vector<8x128xf32>
    %1646 = arith.subf %1644, %1645 : vector<8x128xf32>
    %1647 = arith.addf %1531, %1646 : vector<8x128xf32>
    %1648 = arith.mulf %1601, %1617 : vector<8x128xf32>
    %1649 = arith.mulf %1609, %1619 : vector<8x128xf32>
    %1650 = arith.addf %1648, %1649 : vector<8x128xf32>
    %1651 = arith.mulf %1601, %1619 : vector<8x128xf32>
    %1652 = arith.mulf %1609, %1617 : vector<8x128xf32>
    %1653 = arith.subf %1651, %1652 : vector<8x128xf32>
    %1654 = arith.addf %1538, %1650 : vector<8x128xf32>
    %1655 = arith.addf %1539, %1653 : vector<8x128xf32>
    %1656 = arith.mulf %1603, %1603 : vector<8x128xf32>
    %1657 = arith.mulf %1611, %1611 : vector<8x128xf32>
    %1658 = arith.addf %1656, %1657 : vector<8x128xf32>
    %1659 = arith.addf %1543, %1658 : vector<8x128xf32>
    %1660 = arith.mulf %1603, %1605 : vector<8x128xf32>
    %1661 = arith.mulf %1611, %1613 : vector<8x128xf32>
    %1662 = arith.addf %1660, %1661 : vector<8x128xf32>
    %1663 = arith.addf %1547, %1662 : vector<8x128xf32>
    %1664 = arith.mulf %1603, %1613 : vector<8x128xf32>
    %1665 = arith.mulf %1611, %1605 : vector<8x128xf32>
    %1666 = arith.subf %1664, %1665 : vector<8x128xf32>
    %1667 = arith.addf %1551, %1666 : vector<8x128xf32>
    %1668 = arith.mulf %1603, %1607 : vector<8x128xf32>
    %1669 = arith.mulf %1611, %1615 : vector<8x128xf32>
    %1670 = arith.addf %1668, %1669 : vector<8x128xf32>
    %1671 = arith.addf %1555, %1670 : vector<8x128xf32>
    %1672 = arith.mulf %1603, %1615 : vector<8x128xf32>
    %1673 = arith.mulf %1611, %1607 : vector<8x128xf32>
    %1674 = arith.subf %1672, %1673 : vector<8x128xf32>
    %1675 = arith.addf %1559, %1674 : vector<8x128xf32>
    %1676 = arith.mulf %1603, %1617 : vector<8x128xf32>
    %1677 = arith.mulf %1611, %1619 : vector<8x128xf32>
    %1678 = arith.addf %1676, %1677 : vector<8x128xf32>
    %1679 = arith.mulf %1603, %1619 : vector<8x128xf32>
    %1680 = arith.mulf %1611, %1617 : vector<8x128xf32>
    %1681 = arith.subf %1679, %1680 : vector<8x128xf32>
    %1682 = arith.addf %1566, %1678 : vector<8x128xf32>
    %1683 = arith.addf %1567, %1681 : vector<8x128xf32>
    %1684 = arith.mulf %1605, %1605 : vector<8x128xf32>
    %1685 = arith.mulf %1613, %1613 : vector<8x128xf32>
    %1686 = arith.addf %1684, %1685 : vector<8x128xf32>
    %1687 = arith.addf %1571, %1686 : vector<8x128xf32>
    %1688 = arith.mulf %1605, %1607 : vector<8x128xf32>
    %1689 = arith.mulf %1613, %1615 : vector<8x128xf32>
    %1690 = arith.addf %1688, %1689 : vector<8x128xf32>
    %1691 = arith.addf %1575, %1690 : vector<8x128xf32>
    %1692 = arith.mulf %1605, %1615 : vector<8x128xf32>
    %1693 = arith.mulf %1613, %1607 : vector<8x128xf32>
    %1694 = arith.subf %1692, %1693 : vector<8x128xf32>
    %1695 = arith.addf %1579, %1694 : vector<8x128xf32>
    %1696 = arith.mulf %1605, %1617 : vector<8x128xf32>
    %1697 = arith.mulf %1613, %1619 : vector<8x128xf32>
    %1698 = arith.addf %1696, %1697 : vector<8x128xf32>
    %1699 = arith.mulf %1605, %1619 : vector<8x128xf32>
    %1700 = arith.mulf %1613, %1617 : vector<8x128xf32>
    %1701 = arith.subf %1699, %1700 : vector<8x128xf32>
    %1702 = arith.addf %1586, %1698 : vector<8x128xf32>
    %1703 = arith.addf %1587, %1701 : vector<8x128xf32>
    %1704 = arith.mulf %1607, %1607 : vector<8x128xf32>
    %1705 = arith.mulf %1615, %1615 : vector<8x128xf32>
    %1706 = arith.addf %1704, %1705 : vector<8x128xf32>
    %1707 = arith.addf %1591, %1706 : vector<8x128xf32>
    %1708 = arith.mulf %1607, %1617 : vector<8x128xf32>
    %1709 = arith.mulf %1615, %1619 : vector<8x128xf32>
    %1710 = arith.addf %1708, %1709 : vector<8x128xf32>
    %1711 = arith.mulf %1607, %1619 : vector<8x128xf32>
    %1712 = arith.mulf %1615, %1617 : vector<8x128xf32>
    %1713 = arith.subf %1711, %1712 : vector<8x128xf32>
    %1714 = arith.addf %1598, %1710 : vector<8x128xf32>
    %1715 = arith.addf %1599, %1713 : vector<8x128xf32>
    %c0_585 = arith.constant 0 : index
    %c15 = arith.constant 15 : index
    %c0_586 = arith.constant 0 : index
    %c0_587 = arith.constant 0 : index
    %1716 = vector.load %arg1[%c0_585, %c15, %c0_586, %c0_587] : memref<8x16x8x128xf32, #tpu.memory_space<vmem>>, vector<1x1x8x128xf32>
    %1717 = vector.shape_cast %1716 : vector<1x1x8x128xf32> to vector<8x128xf32>
    %c1_588 = arith.constant 1 : index
    %c15_589 = arith.constant 15 : index
    %c0_590 = arith.constant 0 : index
    %c0_591 = arith.constant 0 : index
    %1718 = vector.load %arg1[%c1_588, %c15_589, %c0_590, %c0_591] : memref<8x16x8x128xf32, #tpu.memory_space<vmem>>, vector<1x1x8x128xf32>
    %1719 = vector.shape_cast %1718 : vector<1x1x8x128xf32> to vector<8x128xf32>
    %c2_592 = arith.constant 2 : index
    %c15_593 = arith.constant 15 : index
    %c0_594 = arith.constant 0 : index
    %c0_595 = arith.constant 0 : index
    %1720 = vector.load %arg1[%c2_592, %c15_593, %c0_594, %c0_595] : memref<8x16x8x128xf32, #tpu.memory_space<vmem>>, vector<1x1x8x128xf32>
    %1721 = vector.shape_cast %1720 : vector<1x1x8x128xf32> to vector<8x128xf32>
    %c3_596 = arith.constant 3 : index
    %c15_597 = arith.constant 15 : index
    %c0_598 = arith.constant 0 : index
    %c0_599 = arith.constant 0 : index
    %1722 = vector.load %arg1[%c3_596, %c15_597, %c0_598, %c0_599] : memref<8x16x8x128xf32, #tpu.memory_space<vmem>>, vector<1x1x8x128xf32>
    %1723 = vector.shape_cast %1722 : vector<1x1x8x128xf32> to vector<8x128xf32>
    %c4_600 = arith.constant 4 : index
    %c15_601 = arith.constant 15 : index
    %c0_602 = arith.constant 0 : index
    %c0_603 = arith.constant 0 : index
    %1724 = vector.load %arg1[%c4_600, %c15_601, %c0_602, %c0_603] : memref<8x16x8x128xf32, #tpu.memory_space<vmem>>, vector<1x1x8x128xf32>
    %1725 = vector.shape_cast %1724 : vector<1x1x8x128xf32> to vector<8x128xf32>
    %c5_604 = arith.constant 5 : index
    %c15_605 = arith.constant 15 : index
    %c0_606 = arith.constant 0 : index
    %c0_607 = arith.constant 0 : index
    %1726 = vector.load %arg1[%c5_604, %c15_605, %c0_606, %c0_607] : memref<8x16x8x128xf32, #tpu.memory_space<vmem>>, vector<1x1x8x128xf32>
    %1727 = vector.shape_cast %1726 : vector<1x1x8x128xf32> to vector<8x128xf32>
    %c6_608 = arith.constant 6 : index
    %c15_609 = arith.constant 15 : index
    %c0_610 = arith.constant 0 : index
    %c0_611 = arith.constant 0 : index
    %1728 = vector.load %arg1[%c6_608, %c15_609, %c0_610, %c0_611] : memref<8x16x8x128xf32, #tpu.memory_space<vmem>>, vector<1x1x8x128xf32>
    %1729 = vector.shape_cast %1728 : vector<1x1x8x128xf32> to vector<8x128xf32>
    %c7_612 = arith.constant 7 : index
    %c15_613 = arith.constant 15 : index
    %c0_614 = arith.constant 0 : index
    %c0_615 = arith.constant 0 : index
    %1730 = vector.load %arg1[%c7_612, %c15_613, %c0_614, %c0_615] : memref<8x16x8x128xf32, #tpu.memory_space<vmem>>, vector<1x1x8x128xf32>
    %1731 = vector.shape_cast %1730 : vector<1x1x8x128xf32> to vector<8x128xf32>
    %c0_616 = arith.constant 0 : index
    %c15_617 = arith.constant 15 : index
    %c0_618 = arith.constant 0 : index
    %c0_619 = arith.constant 0 : index
    %1732 = vector.load %arg2[%c0_616, %c15_617, %c0_618, %c0_619] : memref<2x16x8x128xf32, #tpu.memory_space<vmem>>, vector<1x1x8x128xf32>
    %1733 = vector.shape_cast %1732 : vector<1x1x8x128xf32> to vector<8x128xf32>
    %c1_620 = arith.constant 1 : index
    %c15_621 = arith.constant 15 : index
    %c0_622 = arith.constant 0 : index
    %c0_623 = arith.constant 0 : index
    %1734 = vector.load %arg2[%c1_620, %c15_621, %c0_622, %c0_623] : memref<2x16x8x128xf32, #tpu.memory_space<vmem>>, vector<1x1x8x128xf32>
    %1735 = vector.shape_cast %1734 : vector<1x1x8x128xf32> to vector<8x128xf32>
    %1736 = arith.mulf %1717, %1717 : vector<8x128xf32>
    %1737 = arith.mulf %1725, %1725 : vector<8x128xf32>
    %1738 = arith.addf %1736, %1737 : vector<8x128xf32>
    %1739 = arith.addf %1623, %1738 : vector<8x128xf32>
    %1740 = arith.mulf %1717, %1719 : vector<8x128xf32>
    %1741 = arith.mulf %1725, %1727 : vector<8x128xf32>
    %1742 = arith.addf %1740, %1741 : vector<8x128xf32>
    %1743 = arith.addf %1627, %1742 : vector<8x128xf32>
    %1744 = arith.mulf %1717, %1727 : vector<8x128xf32>
    %1745 = arith.mulf %1725, %1719 : vector<8x128xf32>
    %1746 = arith.subf %1744, %1745 : vector<8x128xf32>
    %1747 = arith.addf %1631, %1746 : vector<8x128xf32>
    %1748 = arith.mulf %1717, %1721 : vector<8x128xf32>
    %1749 = arith.mulf %1725, %1729 : vector<8x128xf32>
    %1750 = arith.addf %1748, %1749 : vector<8x128xf32>
    %1751 = arith.addf %1635, %1750 : vector<8x128xf32>
    %1752 = arith.mulf %1717, %1729 : vector<8x128xf32>
    %1753 = arith.mulf %1725, %1721 : vector<8x128xf32>
    %1754 = arith.subf %1752, %1753 : vector<8x128xf32>
    %1755 = arith.addf %1639, %1754 : vector<8x128xf32>
    %1756 = arith.mulf %1717, %1723 : vector<8x128xf32>
    %1757 = arith.mulf %1725, %1731 : vector<8x128xf32>
    %1758 = arith.addf %1756, %1757 : vector<8x128xf32>
    %1759 = arith.addf %1643, %1758 : vector<8x128xf32>
    %1760 = arith.mulf %1717, %1731 : vector<8x128xf32>
    %1761 = arith.mulf %1725, %1723 : vector<8x128xf32>
    %1762 = arith.subf %1760, %1761 : vector<8x128xf32>
    %1763 = arith.addf %1647, %1762 : vector<8x128xf32>
    %1764 = arith.mulf %1717, %1733 : vector<8x128xf32>
    %1765 = arith.mulf %1725, %1735 : vector<8x128xf32>
    %1766 = arith.addf %1764, %1765 : vector<8x128xf32>
    %1767 = arith.mulf %1717, %1735 : vector<8x128xf32>
    %1768 = arith.mulf %1725, %1733 : vector<8x128xf32>
    %1769 = arith.subf %1767, %1768 : vector<8x128xf32>
    %1770 = arith.addf %1654, %1766 : vector<8x128xf32>
    %1771 = arith.addf %1655, %1769 : vector<8x128xf32>
    %1772 = arith.mulf %1719, %1719 : vector<8x128xf32>
    %1773 = arith.mulf %1727, %1727 : vector<8x128xf32>
    %1774 = arith.addf %1772, %1773 : vector<8x128xf32>
    %1775 = arith.addf %1659, %1774 : vector<8x128xf32>
    %1776 = arith.mulf %1719, %1721 : vector<8x128xf32>
    %1777 = arith.mulf %1727, %1729 : vector<8x128xf32>
    %1778 = arith.addf %1776, %1777 : vector<8x128xf32>
    %1779 = arith.addf %1663, %1778 : vector<8x128xf32>
    %1780 = arith.mulf %1719, %1729 : vector<8x128xf32>
    %1781 = arith.mulf %1727, %1721 : vector<8x128xf32>
    %1782 = arith.subf %1780, %1781 : vector<8x128xf32>
    %1783 = arith.addf %1667, %1782 : vector<8x128xf32>
    %1784 = arith.mulf %1719, %1723 : vector<8x128xf32>
    %1785 = arith.mulf %1727, %1731 : vector<8x128xf32>
    %1786 = arith.addf %1784, %1785 : vector<8x128xf32>
    %1787 = arith.addf %1671, %1786 : vector<8x128xf32>
    %1788 = arith.mulf %1719, %1731 : vector<8x128xf32>
    %1789 = arith.mulf %1727, %1723 : vector<8x128xf32>
    %1790 = arith.subf %1788, %1789 : vector<8x128xf32>
    %1791 = arith.addf %1675, %1790 : vector<8x128xf32>
    %1792 = arith.mulf %1719, %1733 : vector<8x128xf32>
    %1793 = arith.mulf %1727, %1735 : vector<8x128xf32>
    %1794 = arith.addf %1792, %1793 : vector<8x128xf32>
    %1795 = arith.mulf %1719, %1735 : vector<8x128xf32>
    %1796 = arith.mulf %1727, %1733 : vector<8x128xf32>
    %1797 = arith.subf %1795, %1796 : vector<8x128xf32>
    %1798 = arith.addf %1682, %1794 : vector<8x128xf32>
    %1799 = arith.addf %1683, %1797 : vector<8x128xf32>
    %1800 = arith.mulf %1721, %1721 : vector<8x128xf32>
    %1801 = arith.mulf %1729, %1729 : vector<8x128xf32>
    %1802 = arith.addf %1800, %1801 : vector<8x128xf32>
    %1803 = arith.addf %1687, %1802 : vector<8x128xf32>
    %1804 = arith.mulf %1721, %1723 : vector<8x128xf32>
    %1805 = arith.mulf %1729, %1731 : vector<8x128xf32>
    %1806 = arith.addf %1804, %1805 : vector<8x128xf32>
    %1807 = arith.addf %1691, %1806 : vector<8x128xf32>
    %1808 = arith.mulf %1721, %1731 : vector<8x128xf32>
    %1809 = arith.mulf %1729, %1723 : vector<8x128xf32>
    %1810 = arith.subf %1808, %1809 : vector<8x128xf32>
    %1811 = arith.addf %1695, %1810 : vector<8x128xf32>
    %1812 = arith.mulf %1721, %1733 : vector<8x128xf32>
    %1813 = arith.mulf %1729, %1735 : vector<8x128xf32>
    %1814 = arith.addf %1812, %1813 : vector<8x128xf32>
    %1815 = arith.mulf %1721, %1735 : vector<8x128xf32>
    %1816 = arith.mulf %1729, %1733 : vector<8x128xf32>
    %1817 = arith.subf %1815, %1816 : vector<8x128xf32>
    %1818 = arith.addf %1702, %1814 : vector<8x128xf32>
    %1819 = arith.addf %1703, %1817 : vector<8x128xf32>
    %1820 = arith.mulf %1723, %1723 : vector<8x128xf32>
    %1821 = arith.mulf %1731, %1731 : vector<8x128xf32>
    %1822 = arith.addf %1820, %1821 : vector<8x128xf32>
    %1823 = arith.addf %1707, %1822 : vector<8x128xf32>
    %1824 = arith.mulf %1723, %1733 : vector<8x128xf32>
    %1825 = arith.mulf %1731, %1735 : vector<8x128xf32>
    %1826 = arith.addf %1824, %1825 : vector<8x128xf32>
    %1827 = arith.mulf %1723, %1735 : vector<8x128xf32>
    %1828 = arith.mulf %1731, %1733 : vector<8x128xf32>
    %1829 = arith.subf %1827, %1828 : vector<8x128xf32>
    %1830 = arith.addf %1714, %1826 : vector<8x128xf32>
    %1831 = arith.addf %1715, %1829 : vector<8x128xf32>
    %cst = arith.constant 1.000000e+00 : f32
    %1832 = vector.broadcast %cst : f32 to vector<8x128xf32>
    %1833 = arith.addf %1739, %1832 : vector<8x128xf32>
    %cst_624 = arith.constant 1.000000e+00 : f32
    %1834 = vector.broadcast %cst_624 : f32 to vector<8x128xf32>
    %1835 = arith.addf %1775, %1834 : vector<8x128xf32>
    %cst_625 = arith.constant 1.000000e+00 : f32
    %1836 = vector.broadcast %cst_625 : f32 to vector<8x128xf32>
    %1837 = arith.addf %1803, %1836 : vector<8x128xf32>
    %cst_626 = arith.constant 1.000000e+00 : f32
    %1838 = vector.broadcast %cst_626 : f32 to vector<8x128xf32>
    %1839 = arith.addf %1823, %1838 : vector<8x128xf32>
    %cst_627 = arith.constant 9.99999996E-13 : f32
    %1840 = vector.broadcast %cst_627 : f32 to vector<8x128xf32>
    %1841 = arith.maximumf %1833, %1840 : vector<8x128xf32>
    %1842 = math.rsqrt %1841 : vector<8x128xf32>
    %cst_628 = arith.constant 0.000000e+00 : f32
    %1843 = vector.broadcast %cst_628 : f32 to vector<8x128xf32>
    %1844 = arith.subf %1843, %1747 : vector<8x128xf32>
    %1845 = arith.mulf %1743, %1842 : vector<8x128xf32>
    %1846 = arith.mulf %1844, %1842 : vector<8x128xf32>
    %cst_629 = arith.constant 0.000000e+00 : f32
    %1847 = vector.broadcast %cst_629 : f32 to vector<8x128xf32>
    %1848 = arith.subf %1847, %1755 : vector<8x128xf32>
    %1849 = arith.mulf %1751, %1842 : vector<8x128xf32>
    %1850 = arith.mulf %1848, %1842 : vector<8x128xf32>
    %cst_630 = arith.constant 0.000000e+00 : f32
    %1851 = vector.broadcast %cst_630 : f32 to vector<8x128xf32>
    %1852 = arith.subf %1851, %1763 : vector<8x128xf32>
    %1853 = arith.mulf %1759, %1842 : vector<8x128xf32>
    %1854 = arith.mulf %1852, %1842 : vector<8x128xf32>
    %1855 = arith.mulf %1845, %1845 : vector<8x128xf32>
    %1856 = arith.mulf %1846, %1846 : vector<8x128xf32>
    %1857 = arith.addf %1855, %1856 : vector<8x128xf32>
    %1858 = arith.subf %1835, %1857 : vector<8x128xf32>
    %cst_631 = arith.constant 9.99999996E-13 : f32
    %1859 = vector.broadcast %cst_631 : f32 to vector<8x128xf32>
    %1860 = arith.maximumf %1858, %1859 : vector<8x128xf32>
    %1861 = math.rsqrt %1860 : vector<8x128xf32>
    %cst_632 = arith.constant 0.000000e+00 : f32
    %1862 = vector.broadcast %cst_632 : f32 to vector<8x128xf32>
    %1863 = arith.subf %1862, %1783 : vector<8x128xf32>
    %1864 = arith.mulf %1849, %1845 : vector<8x128xf32>
    %1865 = arith.mulf %1850, %1846 : vector<8x128xf32>
    %1866 = arith.addf %1864, %1865 : vector<8x128xf32>
    %1867 = arith.subf %1779, %1866 : vector<8x128xf32>
    %1868 = arith.mulf %1850, %1845 : vector<8x128xf32>
    %1869 = arith.mulf %1849, %1846 : vector<8x128xf32>
    %1870 = arith.subf %1868, %1869 : vector<8x128xf32>
    %1871 = arith.subf %1863, %1870 : vector<8x128xf32>
    %1872 = arith.mulf %1867, %1861 : vector<8x128xf32>
    %1873 = arith.mulf %1871, %1861 : vector<8x128xf32>
    %cst_633 = arith.constant 0.000000e+00 : f32
    %1874 = vector.broadcast %cst_633 : f32 to vector<8x128xf32>
    %1875 = arith.subf %1874, %1791 : vector<8x128xf32>
    %1876 = arith.mulf %1853, %1845 : vector<8x128xf32>
    %1877 = arith.mulf %1854, %1846 : vector<8x128xf32>
    %1878 = arith.addf %1876, %1877 : vector<8x128xf32>
    %1879 = arith.subf %1787, %1878 : vector<8x128xf32>
    %1880 = arith.mulf %1854, %1845 : vector<8x128xf32>
    %1881 = arith.mulf %1853, %1846 : vector<8x128xf32>
    %1882 = arith.subf %1880, %1881 : vector<8x128xf32>
    %1883 = arith.subf %1875, %1882 : vector<8x128xf32>
    %1884 = arith.mulf %1879, %1861 : vector<8x128xf32>
    %1885 = arith.mulf %1883, %1861 : vector<8x128xf32>
    %1886 = arith.mulf %1849, %1849 : vector<8x128xf32>
    %1887 = arith.mulf %1850, %1850 : vector<8x128xf32>
    %1888 = arith.addf %1886, %1887 : vector<8x128xf32>
    %1889 = arith.subf %1837, %1888 : vector<8x128xf32>
    %1890 = arith.mulf %1872, %1872 : vector<8x128xf32>
    %1891 = arith.mulf %1873, %1873 : vector<8x128xf32>
    %1892 = arith.addf %1890, %1891 : vector<8x128xf32>
    %1893 = arith.subf %1889, %1892 : vector<8x128xf32>
    %cst_634 = arith.constant 9.99999996E-13 : f32
    %1894 = vector.broadcast %cst_634 : f32 to vector<8x128xf32>
    %1895 = arith.maximumf %1893, %1894 : vector<8x128xf32>
    %1896 = math.rsqrt %1895 : vector<8x128xf32>
    %cst_635 = arith.constant 0.000000e+00 : f32
    %1897 = vector.broadcast %cst_635 : f32 to vector<8x128xf32>
    %1898 = arith.subf %1897, %1811 : vector<8x128xf32>
    %1899 = arith.mulf %1853, %1849 : vector<8x128xf32>
    %1900 = arith.mulf %1854, %1850 : vector<8x128xf32>
    %1901 = arith.addf %1899, %1900 : vector<8x128xf32>
    %1902 = arith.subf %1807, %1901 : vector<8x128xf32>
    %1903 = arith.mulf %1854, %1849 : vector<8x128xf32>
    %1904 = arith.mulf %1853, %1850 : vector<8x128xf32>
    %1905 = arith.subf %1903, %1904 : vector<8x128xf32>
    %1906 = arith.subf %1898, %1905 : vector<8x128xf32>
    %1907 = arith.mulf %1884, %1872 : vector<8x128xf32>
    %1908 = arith.mulf %1885, %1873 : vector<8x128xf32>
    %1909 = arith.addf %1907, %1908 : vector<8x128xf32>
    %1910 = arith.subf %1902, %1909 : vector<8x128xf32>
    %1911 = arith.mulf %1885, %1872 : vector<8x128xf32>
    %1912 = arith.mulf %1884, %1873 : vector<8x128xf32>
    %1913 = arith.subf %1911, %1912 : vector<8x128xf32>
    %1914 = arith.subf %1906, %1913 : vector<8x128xf32>
    %1915 = arith.mulf %1910, %1896 : vector<8x128xf32>
    %1916 = arith.mulf %1914, %1896 : vector<8x128xf32>
    %1917 = arith.mulf %1853, %1853 : vector<8x128xf32>
    %1918 = arith.mulf %1854, %1854 : vector<8x128xf32>
    %1919 = arith.addf %1917, %1918 : vector<8x128xf32>
    %1920 = arith.subf %1839, %1919 : vector<8x128xf32>
    %1921 = arith.mulf %1884, %1884 : vector<8x128xf32>
    %1922 = arith.mulf %1885, %1885 : vector<8x128xf32>
    %1923 = arith.addf %1921, %1922 : vector<8x128xf32>
    %1924 = arith.subf %1920, %1923 : vector<8x128xf32>
    %1925 = arith.mulf %1915, %1915 : vector<8x128xf32>
    %1926 = arith.mulf %1916, %1916 : vector<8x128xf32>
    %1927 = arith.addf %1925, %1926 : vector<8x128xf32>
    %1928 = arith.subf %1924, %1927 : vector<8x128xf32>
    %cst_636 = arith.constant 9.99999996E-13 : f32
    %1929 = vector.broadcast %cst_636 : f32 to vector<8x128xf32>
    %1930 = arith.maximumf %1928, %1929 : vector<8x128xf32>
    %1931 = math.rsqrt %1930 : vector<8x128xf32>
    %1932 = arith.mulf %1770, %1842 : vector<8x128xf32>
    %1933 = arith.mulf %1771, %1842 : vector<8x128xf32>
    %1934 = arith.mulf %1845, %1932 : vector<8x128xf32>
    %1935 = arith.mulf %1846, %1933 : vector<8x128xf32>
    %1936 = arith.subf %1934, %1935 : vector<8x128xf32>
    %1937 = arith.subf %1798, %1936 : vector<8x128xf32>
    %1938 = arith.mulf %1845, %1933 : vector<8x128xf32>
    %1939 = arith.mulf %1846, %1932 : vector<8x128xf32>
    %1940 = arith.addf %1938, %1939 : vector<8x128xf32>
    %1941 = arith.subf %1799, %1940 : vector<8x128xf32>
    %1942 = arith.mulf %1937, %1861 : vector<8x128xf32>
    %1943 = arith.mulf %1941, %1861 : vector<8x128xf32>
    %1944 = arith.mulf %1849, %1932 : vector<8x128xf32>
    %1945 = arith.mulf %1850, %1933 : vector<8x128xf32>
    %1946 = arith.subf %1944, %1945 : vector<8x128xf32>
    %1947 = arith.subf %1818, %1946 : vector<8x128xf32>
    %1948 = arith.mulf %1849, %1933 : vector<8x128xf32>
    %1949 = arith.mulf %1850, %1932 : vector<8x128xf32>
    %1950 = arith.addf %1948, %1949 : vector<8x128xf32>
    %1951 = arith.subf %1819, %1950 : vector<8x128xf32>
    %1952 = arith.mulf %1872, %1942 : vector<8x128xf32>
    %1953 = arith.mulf %1873, %1943 : vector<8x128xf32>
    %1954 = arith.subf %1952, %1953 : vector<8x128xf32>
    %1955 = arith.subf %1947, %1954 : vector<8x128xf32>
    %1956 = arith.mulf %1872, %1943 : vector<8x128xf32>
    %1957 = arith.mulf %1873, %1942 : vector<8x128xf32>
    %1958 = arith.addf %1956, %1957 : vector<8x128xf32>
    %1959 = arith.subf %1951, %1958 : vector<8x128xf32>
    %1960 = arith.mulf %1955, %1896 : vector<8x128xf32>
    %1961 = arith.mulf %1959, %1896 : vector<8x128xf32>
    %1962 = arith.mulf %1853, %1932 : vector<8x128xf32>
    %1963 = arith.mulf %1854, %1933 : vector<8x128xf32>
    %1964 = arith.subf %1962, %1963 : vector<8x128xf32>
    %1965 = arith.subf %1830, %1964 : vector<8x128xf32>
    %1966 = arith.mulf %1853, %1933 : vector<8x128xf32>
    %1967 = arith.mulf %1854, %1932 : vector<8x128xf32>
    %1968 = arith.addf %1966, %1967 : vector<8x128xf32>
    %1969 = arith.subf %1831, %1968 : vector<8x128xf32>
    %1970 = arith.mulf %1884, %1942 : vector<8x128xf32>
    %1971 = arith.mulf %1885, %1943 : vector<8x128xf32>
    %1972 = arith.subf %1970, %1971 : vector<8x128xf32>
    %1973 = arith.subf %1965, %1972 : vector<8x128xf32>
    %1974 = arith.mulf %1884, %1943 : vector<8x128xf32>
    %1975 = arith.mulf %1885, %1942 : vector<8x128xf32>
    %1976 = arith.addf %1974, %1975 : vector<8x128xf32>
    %1977 = arith.subf %1969, %1976 : vector<8x128xf32>
    %1978 = arith.mulf %1915, %1960 : vector<8x128xf32>
    %1979 = arith.mulf %1916, %1961 : vector<8x128xf32>
    %1980 = arith.subf %1978, %1979 : vector<8x128xf32>
    %1981 = arith.subf %1973, %1980 : vector<8x128xf32>
    %1982 = arith.mulf %1915, %1961 : vector<8x128xf32>
    %1983 = arith.mulf %1916, %1960 : vector<8x128xf32>
    %1984 = arith.addf %1982, %1983 : vector<8x128xf32>
    %1985 = arith.subf %1977, %1984 : vector<8x128xf32>
    %1986 = arith.mulf %1981, %1931 : vector<8x128xf32>
    %1987 = arith.mulf %1985, %1931 : vector<8x128xf32>
    %1988 = arith.mulf %1986, %1931 : vector<8x128xf32>
    %1989 = arith.mulf %1987, %1931 : vector<8x128xf32>
    %1990 = arith.mulf %1915, %1988 : vector<8x128xf32>
    %1991 = arith.mulf %1916, %1989 : vector<8x128xf32>
    %1992 = arith.addf %1990, %1991 : vector<8x128xf32>
    %1993 = arith.subf %1960, %1992 : vector<8x128xf32>
    %1994 = arith.mulf %1915, %1989 : vector<8x128xf32>
    %1995 = arith.mulf %1916, %1988 : vector<8x128xf32>
    %1996 = arith.subf %1994, %1995 : vector<8x128xf32>
    %1997 = arith.subf %1961, %1996 : vector<8x128xf32>
    %1998 = arith.mulf %1993, %1896 : vector<8x128xf32>
    %1999 = arith.mulf %1997, %1896 : vector<8x128xf32>
    %2000 = arith.mulf %1872, %1998 : vector<8x128xf32>
    %2001 = arith.mulf %1873, %1999 : vector<8x128xf32>
    %2002 = arith.addf %2000, %2001 : vector<8x128xf32>
    %2003 = arith.subf %1942, %2002 : vector<8x128xf32>
    %2004 = arith.mulf %1872, %1999 : vector<8x128xf32>
    %2005 = arith.mulf %1873, %1998 : vector<8x128xf32>
    %2006 = arith.subf %2004, %2005 : vector<8x128xf32>
    %2007 = arith.subf %1943, %2006 : vector<8x128xf32>
    %2008 = arith.mulf %1884, %1988 : vector<8x128xf32>
    %2009 = arith.mulf %1885, %1989 : vector<8x128xf32>
    %2010 = arith.addf %2008, %2009 : vector<8x128xf32>
    %2011 = arith.subf %2003, %2010 : vector<8x128xf32>
    %2012 = arith.mulf %1884, %1989 : vector<8x128xf32>
    %2013 = arith.mulf %1885, %1988 : vector<8x128xf32>
    %2014 = arith.subf %2012, %2013 : vector<8x128xf32>
    %2015 = arith.subf %2007, %2014 : vector<8x128xf32>
    %2016 = arith.mulf %2011, %1861 : vector<8x128xf32>
    %2017 = arith.mulf %2015, %1861 : vector<8x128xf32>
    %2018 = arith.mulf %1845, %2016 : vector<8x128xf32>
    %2019 = arith.mulf %1846, %2017 : vector<8x128xf32>
    %2020 = arith.addf %2018, %2019 : vector<8x128xf32>
    %2021 = arith.subf %1932, %2020 : vector<8x128xf32>
    %2022 = arith.mulf %1845, %2017 : vector<8x128xf32>
    %2023 = arith.mulf %1846, %2016 : vector<8x128xf32>
    %2024 = arith.subf %2022, %2023 : vector<8x128xf32>
    %2025 = arith.subf %1933, %2024 : vector<8x128xf32>
    %2026 = arith.mulf %1849, %1998 : vector<8x128xf32>
    %2027 = arith.mulf %1850, %1999 : vector<8x128xf32>
    %2028 = arith.addf %2026, %2027 : vector<8x128xf32>
    %2029 = arith.subf %2021, %2028 : vector<8x128xf32>
    %2030 = arith.mulf %1849, %1999 : vector<8x128xf32>
    %2031 = arith.mulf %1850, %1998 : vector<8x128xf32>
    %2032 = arith.subf %2030, %2031 : vector<8x128xf32>
    %2033 = arith.subf %2025, %2032 : vector<8x128xf32>
    %2034 = arith.mulf %1853, %1988 : vector<8x128xf32>
    %2035 = arith.mulf %1854, %1989 : vector<8x128xf32>
    %2036 = arith.addf %2034, %2035 : vector<8x128xf32>
    %2037 = arith.subf %2029, %2036 : vector<8x128xf32>
    %2038 = arith.mulf %1853, %1989 : vector<8x128xf32>
    %2039 = arith.mulf %1854, %1988 : vector<8x128xf32>
    %2040 = arith.subf %2038, %2039 : vector<8x128xf32>
    %2041 = arith.subf %2033, %2040 : vector<8x128xf32>
    %2042 = arith.mulf %2037, %1842 : vector<8x128xf32>
    %2043 = arith.mulf %2041, %1842 : vector<8x128xf32>
    %2044 = arith.mulf %1842, %1842 : vector<8x128xf32>
    %2045 = arith.mulf %1845, %1842 : vector<8x128xf32>
    %2046 = arith.mulf %1846, %1842 : vector<8x128xf32>
    %cst_637 = arith.constant 0.000000e+00 : f32
    %2047 = vector.broadcast %cst_637 : f32 to vector<8x128xf32>
    %2048 = arith.subf %2047, %2045 : vector<8x128xf32>
    %2049 = arith.mulf %2048, %1861 : vector<8x128xf32>
    %cst_638 = arith.constant 0.000000e+00 : f32
    %2050 = vector.broadcast %cst_638 : f32 to vector<8x128xf32>
    %2051 = arith.subf %2050, %2046 : vector<8x128xf32>
    %2052 = arith.mulf %2051, %1861 : vector<8x128xf32>
    %2053 = arith.mulf %2049, %2049 : vector<8x128xf32>
    %2054 = arith.addf %2044, %2053 : vector<8x128xf32>
    %2055 = arith.mulf %2052, %2052 : vector<8x128xf32>
    %2056 = arith.addf %2054, %2055 : vector<8x128xf32>
    %2057 = arith.mulf %1849, %1842 : vector<8x128xf32>
    %2058 = arith.mulf %1850, %1842 : vector<8x128xf32>
    %2059 = arith.mulf %1872, %2049 : vector<8x128xf32>
    %2060 = arith.addf %2057, %2059 : vector<8x128xf32>
    %2061 = arith.mulf %1873, %2052 : vector<8x128xf32>
    %2062 = arith.subf %2060, %2061 : vector<8x128xf32>
    %2063 = arith.mulf %1872, %2052 : vector<8x128xf32>
    %2064 = arith.addf %2058, %2063 : vector<8x128xf32>
    %2065 = arith.mulf %1873, %2049 : vector<8x128xf32>
    %2066 = arith.addf %2064, %2065 : vector<8x128xf32>
    %cst_639 = arith.constant 0.000000e+00 : f32
    %2067 = vector.broadcast %cst_639 : f32 to vector<8x128xf32>
    %2068 = arith.subf %2067, %2062 : vector<8x128xf32>
    %2069 = arith.mulf %2068, %1896 : vector<8x128xf32>
    %cst_640 = arith.constant 0.000000e+00 : f32
    %2070 = vector.broadcast %cst_640 : f32 to vector<8x128xf32>
    %2071 = arith.subf %2070, %2066 : vector<8x128xf32>
    %2072 = arith.mulf %2071, %1896 : vector<8x128xf32>
    %2073 = arith.mulf %2069, %2069 : vector<8x128xf32>
    %2074 = arith.addf %2056, %2073 : vector<8x128xf32>
    %2075 = arith.mulf %2072, %2072 : vector<8x128xf32>
    %2076 = arith.addf %2074, %2075 : vector<8x128xf32>
    %2077 = arith.mulf %1853, %1842 : vector<8x128xf32>
    %2078 = arith.mulf %1854, %1842 : vector<8x128xf32>
    %2079 = arith.mulf %1884, %2049 : vector<8x128xf32>
    %2080 = arith.addf %2077, %2079 : vector<8x128xf32>
    %2081 = arith.mulf %1885, %2052 : vector<8x128xf32>
    %2082 = arith.subf %2080, %2081 : vector<8x128xf32>
    %2083 = arith.mulf %1884, %2052 : vector<8x128xf32>
    %2084 = arith.addf %2078, %2083 : vector<8x128xf32>
    %2085 = arith.mulf %1885, %2049 : vector<8x128xf32>
    %2086 = arith.addf %2084, %2085 : vector<8x128xf32>
    %2087 = arith.mulf %1915, %2069 : vector<8x128xf32>
    %2088 = arith.addf %2082, %2087 : vector<8x128xf32>
    %2089 = arith.mulf %1916, %2072 : vector<8x128xf32>
    %2090 = arith.subf %2088, %2089 : vector<8x128xf32>
    %2091 = arith.mulf %1915, %2072 : vector<8x128xf32>
    %2092 = arith.addf %2086, %2091 : vector<8x128xf32>
    %2093 = arith.mulf %1916, %2069 : vector<8x128xf32>
    %2094 = arith.addf %2092, %2093 : vector<8x128xf32>
    %cst_641 = arith.constant 0.000000e+00 : f32
    %2095 = vector.broadcast %cst_641 : f32 to vector<8x128xf32>
    %2096 = arith.subf %2095, %2090 : vector<8x128xf32>
    %2097 = arith.mulf %2096, %1931 : vector<8x128xf32>
    %cst_642 = arith.constant 0.000000e+00 : f32
    %2098 = vector.broadcast %cst_642 : f32 to vector<8x128xf32>
    %2099 = arith.subf %2098, %2094 : vector<8x128xf32>
    %2100 = arith.mulf %2099, %1931 : vector<8x128xf32>
    %2101 = arith.mulf %2097, %2097 : vector<8x128xf32>
    %2102 = arith.addf %2076, %2101 : vector<8x128xf32>
    %2103 = arith.mulf %2100, %2100 : vector<8x128xf32>
    %2104 = arith.addf %2102, %2103 : vector<8x128xf32>
    %2105 = arith.mulf %1861, %1861 : vector<8x128xf32>
    %2106 = arith.mulf %1872, %1861 : vector<8x128xf32>
    %2107 = arith.mulf %1873, %1861 : vector<8x128xf32>
    %cst_643 = arith.constant 0.000000e+00 : f32
    %2108 = vector.broadcast %cst_643 : f32 to vector<8x128xf32>
    %2109 = arith.subf %2108, %2106 : vector<8x128xf32>
    %2110 = arith.mulf %2109, %1896 : vector<8x128xf32>
    %cst_644 = arith.constant 0.000000e+00 : f32
    %2111 = vector.broadcast %cst_644 : f32 to vector<8x128xf32>
    %2112 = arith.subf %2111, %2107 : vector<8x128xf32>
    %2113 = arith.mulf %2112, %1896 : vector<8x128xf32>
    %2114 = arith.mulf %2110, %2110 : vector<8x128xf32>
    %2115 = arith.addf %2105, %2114 : vector<8x128xf32>
    %2116 = arith.mulf %2113, %2113 : vector<8x128xf32>
    %2117 = arith.addf %2115, %2116 : vector<8x128xf32>
    %2118 = arith.mulf %1884, %1861 : vector<8x128xf32>
    %2119 = arith.mulf %1885, %1861 : vector<8x128xf32>
    %2120 = arith.mulf %1915, %2110 : vector<8x128xf32>
    %2121 = arith.addf %2118, %2120 : vector<8x128xf32>
    %2122 = arith.mulf %1916, %2113 : vector<8x128xf32>
    %2123 = arith.subf %2121, %2122 : vector<8x128xf32>
    %2124 = arith.mulf %1915, %2113 : vector<8x128xf32>
    %2125 = arith.addf %2119, %2124 : vector<8x128xf32>
    %2126 = arith.mulf %1916, %2110 : vector<8x128xf32>
    %2127 = arith.addf %2125, %2126 : vector<8x128xf32>
    %cst_645 = arith.constant 0.000000e+00 : f32
    %2128 = vector.broadcast %cst_645 : f32 to vector<8x128xf32>
    %2129 = arith.subf %2128, %2123 : vector<8x128xf32>
    %2130 = arith.mulf %2129, %1931 : vector<8x128xf32>
    %cst_646 = arith.constant 0.000000e+00 : f32
    %2131 = vector.broadcast %cst_646 : f32 to vector<8x128xf32>
    %2132 = arith.subf %2131, %2127 : vector<8x128xf32>
    %2133 = arith.mulf %2132, %1931 : vector<8x128xf32>
    %2134 = arith.mulf %2130, %2130 : vector<8x128xf32>
    %2135 = arith.addf %2117, %2134 : vector<8x128xf32>
    %2136 = arith.mulf %2133, %2133 : vector<8x128xf32>
    %2137 = arith.addf %2135, %2136 : vector<8x128xf32>
    %2138 = arith.mulf %1896, %1896 : vector<8x128xf32>
    %2139 = arith.mulf %1915, %1896 : vector<8x128xf32>
    %2140 = arith.mulf %1916, %1896 : vector<8x128xf32>
    %cst_647 = arith.constant 0.000000e+00 : f32
    %2141 = vector.broadcast %cst_647 : f32 to vector<8x128xf32>
    %2142 = arith.subf %2141, %2139 : vector<8x128xf32>
    %2143 = arith.mulf %2142, %1931 : vector<8x128xf32>
    %cst_648 = arith.constant 0.000000e+00 : f32
    %2144 = vector.broadcast %cst_648 : f32 to vector<8x128xf32>
    %2145 = arith.subf %2144, %2140 : vector<8x128xf32>
    %2146 = arith.mulf %2145, %1931 : vector<8x128xf32>
    %2147 = arith.mulf %2143, %2143 : vector<8x128xf32>
    %2148 = arith.addf %2138, %2147 : vector<8x128xf32>
    %2149 = arith.mulf %2146, %2146 : vector<8x128xf32>
    %2150 = arith.addf %2148, %2149 : vector<8x128xf32>
    %2151 = arith.mulf %1931, %1931 : vector<8x128xf32>
    %cst_649 = arith.constant 9.99999968E-21 : f32
    %2152 = vector.broadcast %cst_649 : f32 to vector<8x128xf32>
    %2153 = arith.maximumf %2104, %2152 : vector<8x128xf32>
    %cst_650 = arith.constant 1.000000e+00 : f32
    %2154 = vector.broadcast %cst_650 : f32 to vector<8x128xf32>
    %2155 = arith.subf %2154, %2153 : vector<8x128xf32>
    %cst_651 = arith.constant 9.99999968E-21 : f32
    %2156 = vector.broadcast %cst_651 : f32 to vector<8x128xf32>
    %2157 = arith.maximumf %2155, %2156 : vector<8x128xf32>
    %2158 = tpu.reciprocal %2157 {approx = true} : vector<8x128xf32> -> vector<8x128xf32>
    %2159 = arith.mulf %2157, %2158 : vector<8x128xf32>
    %cst_652 = arith.constant 2.000000e+00 : f32
    %2160 = vector.broadcast %cst_652 : f32 to vector<8x128xf32>
    %2161 = arith.subf %2160, %2159 : vector<8x128xf32>
    %2162 = arith.mulf %2158, %2161 : vector<8x128xf32>
    %2163 = arith.mulf %2042, %2162 : vector<8x128xf32>
    %2164 = arith.mulf %2043, %2162 : vector<8x128xf32>
    %2165 = tpu.reciprocal %2153 {approx = true} : vector<8x128xf32> -> vector<8x128xf32>
    %2166 = arith.mulf %2153, %2165 : vector<8x128xf32>
    %cst_653 = arith.constant 2.000000e+00 : f32
    %2167 = vector.broadcast %cst_653 : f32 to vector<8x128xf32>
    %2168 = arith.subf %2167, %2166 : vector<8x128xf32>
    %2169 = arith.mulf %2165, %2168 : vector<8x128xf32>
    %2170 = arith.mulf %2157, %2169 : vector<8x128xf32>
    %cst_654 = arith.constant -2.82842708 : f32
    %2171 = vector.broadcast %cst_654 : f32 to vector<8x128xf32>
    %2172 = arith.mulf %2171, %2163 : vector<8x128xf32>
    %cst_655 = arith.constant -2.82842708 : f32
    %2173 = vector.broadcast %cst_655 : f32 to vector<8x128xf32>
    %2174 = arith.mulf %2173, %2164 : vector<8x128xf32>
    %2175 = arith.mulf %2172, %2170 : vector<8x128xf32>
    %c0_656 = arith.constant 0 : index
    %c0_657 = arith.constant 0 : index
    %c0_658 = arith.constant 0 : index
    %2176 = vector.load %arg3[%c0_656, %c0_657, %c0_658] : memref<8x8x128xf32, #tpu.memory_space<vmem>>, vector<1x8x128xf32>
    %2177 = vector.shape_cast %2176 : vector<1x8x128xf32> to vector<8x128xf32>
    %2178 = vector.shape_cast %2175 : vector<8x128xf32> to vector<1x8x128xf32>
    tpu.vector_store %arg3[%c0_656, %c0_657, %c0_658], %2178 {strides = array<i32>} : memref<8x8x128xf32, #tpu.memory_space<vmem>>, vector<1x8x128xf32>,
    %2179 = arith.mulf %2174, %2170 : vector<8x128xf32>
    %c1_659 = arith.constant 1 : index
    %c0_660 = arith.constant 0 : index
    %c0_661 = arith.constant 0 : index
    %2180 = vector.load %arg3[%c1_659, %c0_660, %c0_661] : memref<8x8x128xf32, #tpu.memory_space<vmem>>, vector<1x8x128xf32>
    %2181 = vector.shape_cast %2180 : vector<1x8x128xf32> to vector<8x128xf32>
    %2182 = vector.shape_cast %2179 : vector<8x128xf32> to vector<1x8x128xf32>
    tpu.vector_store %arg3[%c1_659, %c0_660, %c0_661], %2182 {strides = array<i32>} : memref<8x8x128xf32, #tpu.memory_space<vmem>>, vector<1x8x128xf32>,
    %cst_662 = arith.constant 9.99999968E-21 : f32
    %2183 = vector.broadcast %cst_662 : f32 to vector<8x128xf32>
    %2184 = arith.maximumf %2137, %2183 : vector<8x128xf32>
    %cst_663 = arith.constant 1.000000e+00 : f32
    %2185 = vector.broadcast %cst_663 : f32 to vector<8x128xf32>
    %2186 = arith.subf %2185, %2184 : vector<8x128xf32>
    %cst_664 = arith.constant 9.99999968E-21 : f32
    %2187 = vector.broadcast %cst_664 : f32 to vector<8x128xf32>
    %2188 = arith.maximumf %2186, %2187 : vector<8x128xf32>
    %2189 = tpu.reciprocal %2188 {approx = true} : vector<8x128xf32> -> vector<8x128xf32>
    %2190 = arith.mulf %2188, %2189 : vector<8x128xf32>
    %cst_665 = arith.constant 2.000000e+00 : f32
    %2191 = vector.broadcast %cst_665 : f32 to vector<8x128xf32>
    %2192 = arith.subf %2191, %2190 : vector<8x128xf32>
    %2193 = arith.mulf %2189, %2192 : vector<8x128xf32>
    %2194 = arith.mulf %2016, %2193 : vector<8x128xf32>
    %2195 = arith.mulf %2017, %2193 : vector<8x128xf32>
    %2196 = tpu.reciprocal %2184 {approx = true} : vector<8x128xf32> -> vector<8x128xf32>
    %2197 = arith.mulf %2184, %2196 : vector<8x128xf32>
    %cst_666 = arith.constant 2.000000e+00 : f32
    %2198 = vector.broadcast %cst_666 : f32 to vector<8x128xf32>
    %2199 = arith.subf %2198, %2197 : vector<8x128xf32>
    %2200 = arith.mulf %2196, %2199 : vector<8x128xf32>
    %2201 = arith.mulf %2188, %2200 : vector<8x128xf32>
    %cst_667 = arith.constant -2.82842708 : f32
    %2202 = vector.broadcast %cst_667 : f32 to vector<8x128xf32>
    %2203 = arith.mulf %2202, %2194 : vector<8x128xf32>
    %cst_668 = arith.constant -2.82842708 : f32
    %2204 = vector.broadcast %cst_668 : f32 to vector<8x128xf32>
    %2205 = arith.mulf %2204, %2195 : vector<8x128xf32>
    %2206 = arith.mulf %2203, %2201 : vector<8x128xf32>
    %c2_669 = arith.constant 2 : index
    %c0_670 = arith.constant 0 : index
    %c0_671 = arith.constant 0 : index
    %2207 = vector.load %arg3[%c2_669, %c0_670, %c0_671] : memref<8x8x128xf32, #tpu.memory_space<vmem>>, vector<1x8x128xf32>
    %2208 = vector.shape_cast %2207 : vector<1x8x128xf32> to vector<8x128xf32>
    %2209 = vector.shape_cast %2206 : vector<8x128xf32> to vector<1x8x128xf32>
    tpu.vector_store %arg3[%c2_669, %c0_670, %c0_671], %2209 {strides = array<i32>} : memref<8x8x128xf32, #tpu.memory_space<vmem>>, vector<1x8x128xf32>,
    %2210 = arith.mulf %2205, %2201 : vector<8x128xf32>
    %c3_672 = arith.constant 3 : index
    %c0_673 = arith.constant 0 : index
    %c0_674 = arith.constant 0 : index
    %2211 = vector.load %arg3[%c3_672, %c0_673, %c0_674] : memref<8x8x128xf32, #tpu.memory_space<vmem>>, vector<1x8x128xf32>
    %2212 = vector.shape_cast %2211 : vector<1x8x128xf32> to vector<8x128xf32>
    %2213 = vector.shape_cast %2210 : vector<8x128xf32> to vector<1x8x128xf32>
    tpu.vector_store %arg3[%c3_672, %c0_673, %c0_674], %2213 {strides = array<i32>} : memref<8x8x128xf32, #tpu.memory_space<vmem>>, vector<1x8x128xf32>,
    %cst_675 = arith.constant 9.99999968E-21 : f32
    %2214 = vector.broadcast %cst_675 : f32 to vector<8x128xf32>
    %2215 = arith.maximumf %2150, %2214 : vector<8x128xf32>
    %cst_676 = arith.constant 1.000000e+00 : f32
    %2216 = vector.broadcast %cst_676 : f32 to vector<8x128xf32>
    %2217 = arith.subf %2216, %2215 : vector<8x128xf32>
    %cst_677 = arith.constant 9.99999968E-21 : f32
    %2218 = vector.broadcast %cst_677 : f32 to vector<8x128xf32>
    %2219 = arith.maximumf %2217, %2218 : vector<8x128xf32>
    %2220 = tpu.reciprocal %2219 {approx = true} : vector<8x128xf32> -> vector<8x128xf32>
    %2221 = arith.mulf %2219, %2220 : vector<8x128xf32>
    %cst_678 = arith.constant 2.000000e+00 : f32
    %2222 = vector.broadcast %cst_678 : f32 to vector<8x128xf32>
    %2223 = arith.subf %2222, %2221 : vector<8x128xf32>
    %2224 = arith.mulf %2220, %2223 : vector<8x128xf32>
    %2225 = arith.mulf %1998, %2224 : vector<8x128xf32>
    %2226 = arith.mulf %1999, %2224 : vector<8x128xf32>
    %2227 = tpu.reciprocal %2215 {approx = true} : vector<8x128xf32> -> vector<8x128xf32>
    %2228 = arith.mulf %2215, %2227 : vector<8x128xf32>
    %cst_679 = arith.constant 2.000000e+00 : f32
    %2229 = vector.broadcast %cst_679 : f32 to vector<8x128xf32>
    %2230 = arith.subf %2229, %2228 : vector<8x128xf32>
    %2231 = arith.mulf %2227, %2230 : vector<8x128xf32>
    %2232 = arith.mulf %2219, %2231 : vector<8x128xf32>
    %cst_680 = arith.constant -2.82842708 : f32
    %2233 = vector.broadcast %cst_680 : f32 to vector<8x128xf32>
    %2234 = arith.mulf %2233, %2225 : vector<8x128xf32>
    %cst_681 = arith.constant -2.82842708 : f32
    %2235 = vector.broadcast %cst_681 : f32 to vector<8x128xf32>
    %2236 = arith.mulf %2235, %2226 : vector<8x128xf32>
    %2237 = arith.mulf %2234, %2232 : vector<8x128xf32>
    %c4_682 = arith.constant 4 : index
    %c0_683 = arith.constant 0 : index
    %c0_684 = arith.constant 0 : index
    %2238 = vector.load %arg3[%c4_682, %c0_683, %c0_684] : memref<8x8x128xf32, #tpu.memory_space<vmem>>, vector<1x8x128xf32>
    %2239 = vector.shape_cast %2238 : vector<1x8x128xf32> to vector<8x128xf32>
    %2240 = vector.shape_cast %2237 : vector<8x128xf32> to vector<1x8x128xf32>
    tpu.vector_store %arg3[%c4_682, %c0_683, %c0_684], %2240 {strides = array<i32>} : memref<8x8x128xf32, #tpu.memory_space<vmem>>, vector<1x8x128xf32>,
    %2241 = arith.mulf %2236, %2232 : vector<8x128xf32>
    %c5_685 = arith.constant 5 : index
    %c0_686 = arith.constant 0 : index
    %c0_687 = arith.constant 0 : index
    %2242 = vector.load %arg3[%c5_685, %c0_686, %c0_687] : memref<8x8x128xf32, #tpu.memory_space<vmem>>, vector<1x8x128xf32>
    %2243 = vector.shape_cast %2242 : vector<1x8x128xf32> to vector<8x128xf32>
    %2244 = vector.shape_cast %2241 : vector<8x128xf32> to vector<1x8x128xf32>
    tpu.vector_store %arg3[%c5_685, %c0_686, %c0_687], %2244 {strides = array<i32>} : memref<8x8x128xf32, #tpu.memory_space<vmem>>, vector<1x8x128xf32>,
    %cst_688 = arith.constant 9.99999968E-21 : f32
    %2245 = vector.broadcast %cst_688 : f32 to vector<8x128xf32>
    %2246 = arith.maximumf %2151, %2245 : vector<8x128xf32>
    %cst_689 = arith.constant 1.000000e+00 : f32
    %2247 = vector.broadcast %cst_689 : f32 to vector<8x128xf32>
    %2248 = arith.subf %2247, %2246 : vector<8x128xf32>
    %cst_690 = arith.constant 9.99999968E-21 : f32
    %2249 = vector.broadcast %cst_690 : f32 to vector<8x128xf32>
    %2250 = arith.maximumf %2248, %2249 : vector<8x128xf32>
    %2251 = tpu.reciprocal %2250 {approx = true} : vector<8x128xf32> -> vector<8x128xf32>
    %2252 = arith.mulf %2250, %2251 : vector<8x128xf32>
    %cst_691 = arith.constant 2.000000e+00 : f32
    %2253 = vector.broadcast %cst_691 : f32 to vector<8x128xf32>
    %2254 = arith.subf %2253, %2252 : vector<8x128xf32>
    %2255 = arith.mulf %2251, %2254 : vector<8x128xf32>
    %2256 = arith.mulf %1988, %2255 : vector<8x128xf32>
    %2257 = arith.mulf %1989, %2255 : vector<8x128xf32>
    %2258 = tpu.reciprocal %2246 {approx = true} : vector<8x128xf32> -> vector<8x128xf32>
    %2259 = arith.mulf %2246, %2258 : vector<8x128xf32>
    %cst_692 = arith.constant 2.000000e+00 : f32
    %2260 = vector.broadcast %cst_692 : f32 to vector<8x128xf32>
    %2261 = arith.subf %2260, %2259 : vector<8x128xf32>
    %2262 = arith.mulf %2258, %2261 : vector<8x128xf32>
    %2263 = arith.mulf %2250, %2262 : vector<8x128xf32>
    %cst_693 = arith.constant -2.82842708 : f32
    %2264 = vector.broadcast %cst_693 : f32 to vector<8x128xf32>
    %2265 = arith.mulf %2264, %2256 : vector<8x128xf32>
    %cst_694 = arith.constant -2.82842708 : f32
    %2266 = vector.broadcast %cst_694 : f32 to vector<8x128xf32>
    %2267 = arith.mulf %2266, %2257 : vector<8x128xf32>
    %2268 = arith.mulf %2265, %2263 : vector<8x128xf32>
    %c6_695 = arith.constant 6 : index
    %c0_696 = arith.constant 0 : index
    %c0_697 = arith.constant 0 : index
    %2269 = vector.load %arg3[%c6_695, %c0_696, %c0_697] : memref<8x8x128xf32, #tpu.memory_space<vmem>>, vector<1x8x128xf32>
    %2270 = vector.shape_cast %2269 : vector<1x8x128xf32> to vector<8x128xf32>
    %2271 = vector.shape_cast %2268 : vector<8x128xf32> to vector<1x8x128xf32>
    tpu.vector_store %arg3[%c6_695, %c0_696, %c0_697], %2271 {strides = array<i32>} : memref<8x8x128xf32, #tpu.memory_space<vmem>>, vector<1x8x128xf32>,
    %2272 = arith.mulf %2267, %2263 : vector<8x128xf32>
    %c7_698 = arith.constant 7 : index
    %c0_699 = arith.constant 0 : index
    %c0_700 = arith.constant 0 : index
    %2273 = vector.load %arg3[%c7_698, %c0_699, %c0_700] : memref<8x8x128xf32, #tpu.memory_space<vmem>>, vector<1x8x128xf32>
    %2274 = vector.shape_cast %2273 : vector<1x8x128xf32> to vector<8x128xf32>
    %2275 = vector.shape_cast %2272 : vector<8x128xf32> to vector<1x8x128xf32>
    tpu.vector_store %arg3[%c7_698, %c0_699, %c0_700], %2275 {strides = array<i32>} : memref<8x8x128xf32, #tpu.memory_space<vmem>>, vector<1x8x128xf32>,
    return
  }
  func.func @transform_0(%arg0: i32) -> (i32, i32, i32, i32) {
    %c0_i32 = arith.constant 0 : i32
    %c0_i32_0 = arith.constant 0 : i32
    %c0_i32_1 = arith.constant 0 : i32
    %c0_i32_2 = arith.constant 0 : i32
    return %c0_i32, %c0_i32_0, %arg0, %c0_i32_1 : i32, i32, i32, i32
  }
  func.func @transform_1(%arg0: i32) -> (i32, i32, i32, i32) {
    %c0_i32 = arith.constant 0 : i32
    %c0_i32_0 = arith.constant 0 : i32
    %c0_i32_1 = arith.constant 0 : i32
    %c0_i32_2 = arith.constant 0 : i32
    return %c0_i32, %c0_i32_0, %arg0, %c0_i32_1 : i32, i32, i32, i32
  }
  func.func @transform_2(%arg0: i32) -> (i32, i32, i32) {
    %c0_i32 = arith.constant 0 : i32
    %c0_i32_0 = arith.constant 0 : i32
    %c0_i32_1 = arith.constant 0 : i32
    return %c0_i32, %arg0, %c0_i32_0 : i32, i32, i32
  }
}

</mosaic_0001>

<llo_original>
// kernel: tpu_custom_call.1
$region0: #{tpu_custom_call.1}
  #allocation0 [shape = 'u32[]', space=smem, size = 0x4, offset = 0x4, fixed_abs, tag = 'smem constant byte address 0x4 - core index']
  #allocation1 [shape = 'u32[144,128]{1,0:T(1,128)}', space=vmem, size = 0x12000, scoped, tag = 'internal scratch']
  %s0 = inlined_call_operand.hbm [shape: f32[8,16,8,128], index: 0, kind: input, shape index: {}]
  %s1 = inlined_call_operand.hbm [shape: f32[2,16,8,128], index: 1, kind: input, shape index: {}]
  %s2 = inlined_call_operand.hbm [shape: f32[8,8,128], index: 2, kind: output, shape index: {}]
  %s3 = sld [smem:[#allocation0]]
  $region26: #{tpu_custom_call.1} parent=0
    _
  %s5 = ssub.s32 1, %s3
  %s6 = scalar_select 0, %s5, %s3
  $region1: #{tpu_custom_call.1} parent=0
    #allocation2 [shape = 'u8[524288]{0}', space=vmem, size = 0x80000, scoped, tag = 'input window, operand 0, single buffered']
    #allocation3 [shape = 's32[1]{0}', space=sflag, size = 0x4, scoped, tag = 'scoped memory for tpu_custom_call.1']
    #allocation4 [shape = 's32[1]{0}', space=sflag, size = 0x4, scoped, tag = 'scoped memory for tpu_custom_call.1']
    #allocation5 [shape = 'u8[131072]{0}', space=vmem, size = 0x20000, scoped, tag = 'input window, operand 1, single buffered']
    #allocation6 [shape = 's32[1]{0}', space=sflag, size = 0x4, scoped, tag = 'scoped memory for tpu_custom_call.1']
    #allocation7 [shape = 'u8[32768]{0}', space=vmem, size = 0x8000, scoped, tag = 'output window, operand 0, single buffered']
    %7 = vsyncpa [#allocation3], 0
    %8 = vsyncpa [#allocation6], 0
    %9 = vsyncpa [#allocation4], 0
    // Predicated region
    $region2: #{tpu_custom_call.1} parent=1 // pred_check
      _
    $region3: #{tpu_custom_call.1} parent=1 // pred_check_branch
      %11 = sbr.rel (0) target = $region5
    $region4: #{tpu_custom_call.1} parent=1 // pred_region
      %s13 = ssub.s32 16384, 16384
      %14 = vsyncadd [#allocation3], %s13
      %s15 = sshll.u32 [#allocation2], 4
      %s16 = int_to_ptr.vmem [resolvable:$true] %s15
      %21 = dma.hbm_to_vmem [thread:$0]  %s0, 16384, %s16, [#allocation3], 128, 128, 8
    $region5: #{tpu_custom_call.1} parent=1 // pred_fallthru
      _
    // Predicated region
    $region6: #{tpu_custom_call.1} parent=1 // pred_check
      _
    $region7: #{tpu_custom_call.1} parent=1 // pred_check_branch
      %23 = sbr.rel (0) target = $region9
    $region8: #{tpu_custom_call.1} parent=1 // pred_region
      %s25 = ssub.s32 4096, 4096
      %26 = vsyncadd [#allocation6], %s25
      %s27 = sshll.u32 [#allocation5], 4
      %s28 = int_to_ptr.vmem [resolvable:$true] %s27
      %33 = dma.hbm_to_vmem [thread:$0]  %s1, 4096, %s28, [#allocation6], 128, 128, 8
    $region9: #{tpu_custom_call.1} parent=1 // pred_fallthru
      _
    // Predicated region
    $region10: #{tpu_custom_call.1} parent=1 // pred_check
      _
    $region11: #{tpu_custom_call.1} parent=1 // pred_check_branch
      %35 = sbr.rel (0) target = $region13
    $region12: #{tpu_custom_call.1} parent=1 // pred_region
      %36 = dma.done [#allocation3], 16384
    $region13: #{tpu_custom_call.1} parent=1 // pred_fallthru
      _
    // Predicated region
    $region14: #{tpu_custom_call.1} parent=1 // pred_check
      _
    $region15: #{tpu_custom_call.1} parent=1 // pred_check_branch
      %38 = sbr.rel (0) target = $region17
    $region16: #{tpu_custom_call.1} parent=1 // pred_region
      %39 = dma.done [#allocation6], 4096
    $region17: #{tpu_custom_call.1} parent=1 // pred_fallthru
      _
    %v40 = vld [vmem:[#allocation2] sm:$0xff]
    %s41 = scalar_lea.vmem [#allocation2], 128
    %v42 = vld [vmem:[%s41] sm:$0xff]
    %s43 = scalar_lea.vmem [#allocation2], 256
    %v44 = vld [vmem:[%s43] sm:$0xff]
    %s45 = scalar_lea.vmem [#allocation2], 384
    %v46 = vld [vmem:[%s45] sm:$0xff]
    %s47 = scalar_lea.vmem [#allocation2], 512
    %v48 = vld [vmem:[%s47] sm:$0xff]
    %s49 = scalar_lea.vmem [#allocation2], 640
    %v50 = vld [vmem:[%s49] sm:$0xff]
    %s51 = scalar_lea.vmem [#allocation2], 768
    %v52 = vld [vmem:[%s51] sm:$0xff]
    %s53 = scalar_lea.vmem [#allocation2], 896
    %v54 = vld [vmem:[%s53] sm:$0xff]
    %v55 = vld [vmem:[#allocation5] sm:$0xff]
    %s56 = scalar_lea.vmem [#allocation5], 128
    %v57 = vld [vmem:[%s56] sm:$0xff]
    %v58 = vmul.f32 %v40, %v40
    %v59 = vmul.f32 %v48, %v48
    %v60 = vadd.f32 %v58, %v59
    %v61 = vmul.f32 %v40, %v42
    %v62 = vmul.f32 %v48, %v50
    %v63 = vadd.f32 %v61, %v62
    %v64 = vmul.f32 %v40, %v50
    %v65 = vmul.f32 %v48, %v42
    %v66 = vsub.f32 %v64, %v65
    %v67 = vmul.f32 %v40, %v44
    %v68 = vmul.f32 %v48, %v52
    %v69 = vadd.f32 %v67, %v68
    %v70 = vmul.f32 %v40, %v52
    %v71 = vmul.f32 %v48, %v44
    %v72 = vsub.f32 %v70, %v71
    %v73 = vmul.f32 %v40, %v46
    %v74 = vmul.f32 %v48, %v54
    %v75 = vadd.f32 %v73, %v74
    %v76 = vmul.f32 %v40, %v54
    %v77 = vmul.f32 %v48, %v46
    %v78 = vsub.f32 %v76, %v77
    %v79 = vmul.f32 %v40, %v55
    %v80 = vmul.f32 %v48, %v57
    %v81 = vadd.f32 %v79, %v80
    %v82 = vmul.f32 %v40, %v57
    %v83 = vmul.f32 %v48, %v55
    %v84 = vsub.f32 %v82, %v83
    %v85 = vmul.f32 %v42, %v42
    %v86 = vmul.f32 %v50, %v50
    %v87 = vadd.f32 %v85, %v86
    %v88 = vmul.f32 %v42, %v44
    %v89 = vmul.f32 %v50, %v52
    %v90 = vadd.f32 %v88, %v89
    %v91 = vmul.f32 %v42, %v52
    %v92 = vmul.f32 %v50, %v44
    %v93 = vsub.f32 %v91, %v92
    %v94 = vmul.f32 %v42, %v46
    %v95 = vmul.f32 %v50, %v54
    %v96 = vadd.f32 %v94, %v95
    %v97 = vmul.f32 %v42, %v54
    %v98 = vmul.f32 %v50, %v46
    %v99 = vsub.f32 %v97, %v98
    %v100 = vmul.f32 %v42, %v55
    %v101 = vmul.f32 %v50, %v57
    %v102 = vadd.f32 %v100, %v101
    %v103 = vmul.f32 %v42, %v57
    %v104 = vmul.f32 %v50, %v55
    %v105 = vsub.f32 %v103, %v104
    %v106 = vmul.f32 %v44, %v44
    %v107 = vmul.f32 %v52, %v52
    %v108 = vadd.f32 %v106, %v107
    %v109 = vmul.f32 %v44, %v46
    %v110 = vmul.f32 %v52, %v54
    %v111 = vadd.f32 %v109, %v110
    %v112 = vmul.f32 %v44, %v54
    %v113 = vmul.f32 %v52, %v46
    %v114 = vsub.f32 %v112, %v113
    %v115 = vmul.f32 %v44, %v55
    %v116 = vmul.f32 %v52, %v57
    %v117 = vadd.f32 %v115, %v116
    %v118 = vmul.f32 %v44, %v57
    %v119 = vmul.f32 %v52, %v55
    %v120 = vsub.f32 %v118, %v119
    %v121 = vmul.f32 %v46, %v46
    %v122 = vmul.f32 %v54, %v54
    %v123 = vadd.f32 %v121, %v122
    %v124 = vmul.f32 %v46, %v55
    %v125 = vmul.f32 %v54, %v57
    %v126 = vadd.f32 %v124, %v125
    %v127 = vmul.f32 %v46, %v57
    %v128 = vmul.f32 %v54, %v55
    %v129 = vsub.f32 %v127, %v128
    %s130 = scalar_lea.vmem [#allocation2], 8
    %v131 = vld [vmem:[%s130] sm:$0xff]
    %s132 = scalar_lea.vmem [#allocation2], 136
    %v133 = vld [vmem:[%s132] sm:$0xff]
    %s134 = scalar_lea.vmem [#allocation2], 264
    %v135 = vld [vmem:[%s134] sm:$0xff]
    %s136 = scalar_lea.vmem [#allocation2], 392
    %v137 = vld [vmem:[%s136] sm:$0xff]
    %s138 = scalar_lea.vmem [#allocation2], 520
    %v139 = vld [vmem:[%s138] sm:$0xff]
    %s140 = scalar_lea.vmem [#allocation2], 648
    %v141 = vld [vmem:[%s140] sm:$0xff]
    %s142 = scalar_lea.vmem [#allocation2], 776
    %v143 = vld [vmem:[%s142] sm:$0xff]
    %s144 = scalar_lea.vmem [#allocation2], 904
    %v145 = vld [vmem:[%s144] sm:$0xff]
    %s146 = scalar_lea.vmem [#allocation5], 8
    %v147 = vld [vmem:[%s146] sm:$0xff]
    %s148 = scalar_lea.vmem [#allocation5], 136
    %v149 = vld [vmem:[%s148] sm:$0xff]
    %v150 = vmul.f32 %v131, %v131
    %v151 = vmul.f32 %v139, %v139
    %v152 = vadd.f32 %v150, %v151
    %v153 = vadd.f32 %v60, %v152
    %v154 = vmul.f32 %v131, %v133
    %v155 = vmul.f32 %v139, %v141
    %v156 = vadd.f32 %v154, %v155
    %v157 = vadd.f32 %v63, %v156
    %v158 = vmul.f32 %v131, %v141
    %v159 = vmul.f32 %v139, %v133
    %v160 = vsub.f32 %v158, %v159
    %v161 = vadd.f32 %v66, %v160
    %v162 = vmul.f32 %v131, %v135
    %v163 = vmul.f32 %v139, %v143
    %v164 = vadd.f32 %v162, %v163
    %v165 = vadd.f32 %v69, %v164
    %v166 = vmul.f32 %v131, %v143
    %v167 = vmul.f32 %v139, %v135
    %v168 = vsub.f32 %v166, %v167
    %v169 = vadd.f32 %v72, %v168
    %v170 = vmul.f32 %v131, %v137
    %v171 = vmul.f32 %v139, %v145
    %v172 = vadd.f32 %v170, %v171
    %v173 = vadd.f32 %v75, %v172
    %v174 = vmul.f32 %v131, %v145
    %v175 = vmul.f32 %v139, %v137
    %v176 = vsub.f32 %v174, %v175
    %v177 = vadd.f32 %v78, %v176
    %v178 = vmul.f32 %v131, %v147
    %v179 = vmul.f32 %v139, %v149
    %v180 = vadd.f32 %v178, %v179
    %v181 = vmul.f32 %v131, %v149
    %v182 = vmul.f32 %v139, %v147
    %v183 = vsub.f32 %v181, %v182
    %v184 = vadd.f32 %v81, %v180
    %v185 = vadd.f32 %v84, %v183
    %v186 = vmul.f32 %v133, %v133
    %v187 = vmul.f32 %v141, %v141
    %v188 = vadd.f32 %v186, %v187
    %v189 = vadd.f32 %v87, %v188
    %v190 = vmul.f32 %v133, %v135
    %v191 = vmul.f32 %v141, %v143
    %v192 = vadd.f32 %v190, %v191
    %v193 = vadd.f32 %v90, %v192
    %v194 = vmul.f32 %v133, %v143
    %v195 = vmul.f32 %v141, %v135
    %v196 = vsub.f32 %v194, %v195
    %v197 = vadd.f32 %v93, %v196
    %v198 = vmul.f32 %v133, %v137
    %v199 = vmul.f32 %v141, %v145
    %v200 = vadd.f32 %v198, %v199
    %v201 = vadd.f32 %v96, %v200
    %v202 = vmul.f32 %v133, %v145
    %v203 = vmul.f32 %v141, %v137
    %v204 = vsub.f32 %v202, %v203
    %v205 = vadd.f32 %v99, %v204
    %v206 = vmul.f32 %v133, %v147
    %v207 = vmul.f32 %v141, %v149
    %v208 = vadd.f32 %v206, %v207
    %v209 = vmul.f32 %v133, %v149
    %v210 = vmul.f32 %v141, %v147
    %v211 = vsub.f32 %v209, %v210
    %v212 = vadd.f32 %v102, %v208
    %v213 = vadd.f32 %v105, %v211
    %v214 = vmul.f32 %v135, %v135
    %v215 = vmul.f32 %v143, %v143
    %v216 = vadd.f32 %v214, %v215
    %v217 = vadd.f32 %v108, %v216
    %v218 = vmul.f32 %v135, %v137
    %v219 = vmul.f32 %v143, %v145
    %v220 = vadd.f32 %v218, %v219
    %v221 = vadd.f32 %v111, %v220
    %v222 = vmul.f32 %v135, %v145
    %v223 = vmul.f32 %v143, %v137
    %v224 = vsub.f32 %v222, %v223
    %v225 = vadd.f32 %v114, %v224
    %v226 = vmul.f32 %v135, %v147
    %v227 = vmul.f32 %v143, %v149
    %v228 = vadd.f32 %v226, %v227
    %v229 = vmul.f32 %v135, %v149
    %v230 = vmul.f32 %v143, %v147
    %v231 = vsub.f32 %v229, %v230
    %v232 = vadd.f32 %v117, %v228
    %v233 = vadd.f32 %v120, %v231
    %v234 = vmul.f32 %v137, %v137
    %v235 = vmul.f32 %v145, %v145
    %v236 = vadd.f32 %v234, %v235
    %v237 = vadd.f32 %v123, %v236
    %v238 = vmul.f32 %v137, %v147
    %v239 = vmul.f32 %v145, %v149
    %v240 = vadd.f32 %v238, %v239
    %v241 = vmul.f32 %v137, %v149
    %v242 = vmul.f32 %v145, %v147
    %v243 = vsub.f32 %v241, %v242
    %v244 = vadd.f32 %v126, %v240
    %v245 = vadd.f32 %v129, %v243
    %s246 = scalar_lea.vmem [#allocation2], 16
    %v247 = vld [vmem:[%s246] sm:$0xff]
    %s248 = scalar_lea.vmem [#allocation2], 144
    %v249 = vld [vmem:[%s248] sm:$0xff]
    %s250 = scalar_lea.vmem [#allocation2], 272
    %v251 = vld [vmem:[%s250] sm:$0xff]
    %s252 = scalar_lea.vmem [#allocation2], 400
    %v253 = vld [vmem:[%s252] sm:$0xff]
    %s254 = scalar_lea.vmem [#allocation2], 528
    %v255 = vld [vmem:[%s254] sm:$0xff]
    %s256 = scalar_lea.vmem [#allocation2], 656
    %v257 = vld [vmem:[%s256] sm:$0xff]
    %s258 = scalar_lea.vmem [#allocation2], 784
    %v259 = vld [vmem:[%s258] sm:$0xff]
    %s260 = scalar_lea.vmem [#allocation2], 912
    %v261 = vld [vmem:[%s260] sm:$0xff]
    %s262 = scalar_lea.vmem [#allocation5], 16
    %v263 = vld [vmem:[%s262] sm:$0xff]
    %s264 = scalar_lea.vmem [#allocation5], 144
    %v265 = vld [vmem:[%s264] sm:$0xff]
    %v266 = vmul.f32 %v247, %v247
    %v267 = vmul.f32 %v255, %v255
    %v268 = vadd.f32 %v266, %v267
    %v269 = vadd.f32 %v153, %v268
    %v270 = vmul.f32 %v247, %v249
    %v271 = vmul.f32 %v255, %v257
    %v272 = vadd.f32 %v270, %v271
    %v273 = vadd.f32 %v157, %v272
    %v274 = vmul.f32 %v247, %v257
    %v275 = vmul.f32 %v255, %v249
    %v276 = vsub.f32 %v274, %v275
    %v277 = vadd.f32 %v161, %v276
    %v278 = vmul.f32 %v247, %v251
    %v279 = vmul.f32 %v255, %v259
    %v280 = vadd.f32 %v278, %v279
    %v281 = vadd.f32 %v165, %v280
    %v282 = vmul.f32 %v247, %v259
    %v283 = vmul.f32 %v255, %v251
    %v284 = vsub.f32 %v282, %v283
    %v285 = vadd.f32 %v169, %v284
    %v286 = vmul.f32 %v247, %v253
    %v287 = vmul.f32 %v255, %v261
    %v288 = vadd.f32 %v286, %v287
    %v289 = vadd.f32 %v173, %v288
    %v290 = vmul.f32 %v247, %v261
    %v291 = vmul.f32 %v255, %v253
    %v292 = vsub.f32 %v290, %v291
    %v293 = vadd.f32 %v177, %v292
    %v294 = vmul.f32 %v247, %v263
    %v295 = vmul.f32 %v255, %v265
    %v296 = vadd.f32 %v294, %v295
    %v297 = vmul.f32 %v247, %v265
    %v298 = vmul.f32 %v255, %v263
    %v299 = vsub.f32 %v297, %v298
    %v300 = vadd.f32 %v184, %v296
    %v301 = vadd.f32 %v185, %v299
    %v302 = vmul.f32 %v249, %v249
    %v303 = vmul.f32 %v257, %v257
    %v304 = vadd.f32 %v302, %v303
    %v305 = vadd.f32 %v189, %v304
    %v306 = vmul.f32 %v249, %v251
    %v307 = vmul.f32 %v257, %v259
    %v308 = vadd.f32 %v306, %v307
    %v309 = vadd.f32 %v193, %v308
    %v310 = vmul.f32 %v249, %v259
    %v311 = vmul.f32 %v257, %v251
    %v312 = vsub.f32 %v310, %v311
    %v313 = vadd.f32 %v197, %v312
    %v314 = vmul.f32 %v249, %v253
    %v315 = vmul.f32 %v257, %v261
    %v316 = vadd.f32 %v314, %v315
    %v317 = vadd.f32 %v201, %v316
    %v318 = vmul.f32 %v249, %v261
    %v319 = vmul.f32 %v257, %v253
    %v320 = vsub.f32 %v318, %v319
    %v321 = vadd.f32 %v205, %v320
    %v322 = vmul.f32 %v249, %v263
    %v323 = vmul.f32 %v257, %v265
    %v324 = vadd.f32 %v322, %v323
    %v325 = vmul.f32 %v249, %v265
    %v326 = vmul.f32 %v257, %v263
    %v327 = vsub.f32 %v325, %v326
    %v328 = vadd.f32 %v212, %v324
    %v329 = vadd.f32 %v213, %v327
    %v330 = vmul.f32 %v251, %v251
    %v331 = vmul.f32 %v259, %v259
    %v332 = vadd.f32 %v330, %v331
    %v333 = vadd.f32 %v217, %v332
    %v334 = vmul.f32 %v251, %v253
    %v335 = vmul.f32 %v259, %v261
    %v336 = vadd.f32 %v334, %v335
    %v337 = vadd.f32 %v221, %v336
    %v338 = vmul.f32 %v251, %v261
    %v339 = vmul.f32 %v259, %v253
    %v340 = vsub.f32 %v338, %v339
    %v341 = vadd.f32 %v225, %v340
    %v342 = vmul.f32 %v251, %v263
    %v343 = vmul.f32 %v259, %v265
    %v344 = vadd.f32 %v342, %v343
    %v345 = vmul.f32 %v251, %v265
    %v346 = vmul.f32 %v259, %v263
    %v347 = vsub.f32 %v345, %v346
    %v348 = vadd.f32 %v232, %v344
    %v349 = vadd.f32 %v233, %v347
    %v350 = vmul.f32 %v253, %v253
    %v351 = vmul.f32 %v261, %v261
    %v352 = vadd.f32 %v350, %v351
    %v353 = vadd.f32 %v237, %v352
    %v354 = vmul.f32 %v253, %v263
    %v355 = vmul.f32 %v261, %v265
    %v356 = vadd.f32 %v354, %v355
    %v357 = vmul.f32 %v253, %v265
    %v358 = vmul.f32 %v261, %v263
    %v359 = vsub.f32 %v357, %v358
    %v360 = vadd.f32 %v244, %v356
    %v361 = vadd.f32 %v245, %v359
    %s362 = scalar_lea.vmem [#allocation2], 24
    %v363 = vld [vmem:[%s362] sm:$0xff]
    %s364 = scalar_lea.vmem [#allocation2], 152
    %v365 = vld [vmem:[%s364] sm:$0xff]
    %s366 = scalar_lea.vmem [#allocation2], 280
    %v367 = vld [vmem:[%s366] sm:$0xff]
    %s368 = scalar_lea.vmem [#allocation2], 408
    %v369 = vld [vmem:[%s368] sm:$0xff]
    %s370 = scalar_lea.vmem [#allocation2], 536
    %v371 = vld [vmem:[%s370] sm:$0xff]
    %s372 = scalar_lea.vmem [#allocation2], 664
    %v373 = vld [vmem:[%s372] sm:$0xff]
    %s374 = scalar_lea.vmem [#allocation2], 792
    %v375 = vld [vmem:[%s374] sm:$0xff]
    %s376 = scalar_lea.vmem [#allocation2], 920
    %v377 = vld [vmem:[%s376] sm:$0xff]
    %s378 = scalar_lea.vmem [#allocation5], 24
    %v379 = vld [vmem:[%s378] sm:$0xff]
    %s380 = scalar_lea.vmem [#allocation5], 152
    %v381 = vld [vmem:[%s380] sm:$0xff]
    %v382 = vmul.f32 %v363, %v363
    %v383 = vmul.f32 %v371, %v371
    %v384 = vadd.f32 %v382, %v383
    %v385 = vadd.f32 %v269, %v384
    %v386 = vmul.f32 %v363, %v365
    %v387 = vmul.f32 %v371, %v373
    %v388 = vadd.f32 %v386, %v387
    %v389 = vadd.f32 %v273, %v388
    %v390 = vmul.f32 %v363, %v373
    %v391 = vmul.f32 %v371, %v365
    %v392 = vsub.f32 %v390, %v391
    %v393 = vadd.f32 %v277, %v392
    %v394 = vmul.f32 %v363, %v367
    %v395 = vmul.f32 %v371, %v375
    %v396 = vadd.f32 %v394, %v395
    %v397 = vadd.f32 %v281, %v396
    %v398 = vmul.f32 %v363, %v375
    %v399 = vmul.f32 %v371, %v367
    %v400 = vsub.f32 %v398, %v399
    %v401 = vadd.f32 %v285, %v400
    %v402 = vmul.f32 %v363, %v369
    %v403 = vmul.f32 %v371, %v377
    %v404 = vadd.f32 %v402, %v403
    %v405 = vadd.f32 %v289, %v404
    %v406 = vmul.f32 %v363, %v377
    %v407 = vmul.f32 %v371, %v369
    %v408 = vsub.f32 %v406, %v407
    %v409 = vadd.f32 %v293, %v408
    %v410 = vmul.f32 %v363, %v379
    %v411 = vmul.f32 %v371, %v381
    %v412 = vadd.f32 %v410, %v411
    %v413 = vmul.f32 %v363, %v381
    %v414 = vmul.f32 %v371, %v379
    %v415 = vsub.f32 %v413, %v414
    %v416 = vadd.f32 %v300, %v412
    %v417 = vadd.f32 %v301, %v415
    %v418 = vmul.f32 %v365, %v365
    %v419 = vmul.f32 %v373, %v373
    %v420 = vadd.f32 %v418, %v419
    %v421 = vadd.f32 %v305, %v420
    %v422 = vmul.f32 %v365, %v367
    %v423 = vmul.f32 %v373, %v375
    %v424 = vadd.f32 %v422, %v423
    %v425 = vadd.f32 %v309, %v424
    %v426 = vmul.f32 %v365, %v375
    %v427 = vmul.f32 %v373, %v367
    %v428 = vsub.f32 %v426, %v427
    %v429 = vadd.f32 %v313, %v428
    %v430 = vmul.f32 %v365, %v369
    %v431 = vmul.f32 %v373, %v377
    %v432 = vadd.f32 %v430, %v431
    %v433 = vadd.f32 %v317, %v432
    %v434 = vmul.f32 %v365, %v377
    %v435 = vmul.f32 %v373, %v369
    %v436 = vsub.f32 %v434, %v435
    %v437 = vadd.f32 %v321, %v436
    %v438 = vmul.f32 %v365, %v379
    %v439 = vmul.f32 %v373, %v381
    %v440 = vadd.f32 %v438, %v439
    %v441 = vmul.f32 %v365, %v381
    %v442 = vmul.f32 %v373, %v379
    %v443 = vsub.f32 %v441, %v442
    %v444 = vadd.f32 %v328, %v440
    %v445 = vadd.f32 %v329, %v443
    %v446 = vmul.f32 %v367, %v367
    %v447 = vmul.f32 %v375, %v375
    %v448 = vadd.f32 %v446, %v447
    %v449 = vadd.f32 %v333, %v448
    %v450 = vmul.f32 %v367, %v369
    %v451 = vmul.f32 %v375, %v377
    %v452 = vadd.f32 %v450, %v451
    %v453 = vadd.f32 %v337, %v452
    %v454 = vmul.f32 %v367, %v377
    %v455 = vmul.f32 %v375, %v369
    %v456 = vsub.f32 %v454, %v455
    %v457 = vadd.f32 %v341, %v456
    %v458 = vmul.f32 %v367, %v379
    %v459 = vmul.f32 %v375, %v381
    %v460 = vadd.f32 %v458, %v459
    %v461 = vmul.f32 %v367, %v381
    %v462 = vmul.f32 %v375, %v379
    %v463 = vsub.f32 %v461, %v462
    %v464 = vadd.f32 %v348, %v460
    %v465 = vadd.f32 %v349, %v463
    %v466 = vmul.f32 %v369, %v369
    %v467 = vmul.f32 %v377, %v377
    %v468 = vadd.f32 %v466, %v467
    %v469 = vadd.f32 %v353, %v468
    %v470 = vmul.f32 %v369, %v379
    %v471 = vmul.f32 %v377, %v381
    %v472 = vadd.f32 %v470, %v471
    %v473 = vmul.f32 %v369, %v381
    %v474 = vmul.f32 %v377, %v379
    %v475 = vsub.f32 %v473, %v474
    %v476 = vadd.f32 %v360, %v472
    %v477 = vadd.f32 %v361, %v475
    %s478 = scalar_lea.vmem [#allocation2], 32
    %v479 = vld [vmem:[%s478] sm:$0xff]
    %s480 = scalar_lea.vmem [#allocation2], 160
    %v481 = vld [vmem:[%s480] sm:$0xff]
    %s482 = scalar_lea.vmem [#allocation2], 288
    %v483 = vld [vmem:[%s482] sm:$0xff]
    %s484 = scalar_lea.vmem [#allocation2], 416
    %v485 = vld [vmem:[%s484] sm:$0xff]
    %s486 = scalar_lea.vmem [#allocation2], 544
    %v487 = vld [vmem:[%s486] sm:$0xff]
    %s488 = scalar_lea.vmem [#allocation2], 672
    %v489 = vld [vmem:[%s488] sm:$0xff]
    %s490 = scalar_lea.vmem [#allocation2], 800
    %v491 = vld [vmem:[%s490] sm:$0xff]
    %s492 = scalar_lea.vmem [#allocation2], 928
    %v493 = vld [vmem:[%s492] sm:$0xff]
    %s494 = scalar_lea.vmem [#allocation5], 32
    %v495 = vld [vmem:[%s494] sm:$0xff]
    %s496 = scalar_lea.vmem [#allocation5], 160
    %v497 = vld [vmem:[%s496] sm:$0xff]
    %v498 = vmul.f32 %v479, %v479
    %v499 = vmul.f32 %v487, %v487
    %v500 = vadd.f32 %v498, %v499
    %v501 = vadd.f32 %v385, %v500
    %v502 = vmul.f32 %v479, %v481
    %v503 = vmul.f32 %v487, %v489
    %v504 = vadd.f32 %v502, %v503
    %v505 = vadd.f32 %v389, %v504
    %v506 = vmul.f32 %v479, %v489
    %v507 = vmul.f32 %v487, %v481
    %v508 = vsub.f32 %v506, %v507
    %v509 = vadd.f32 %v393, %v508
    %v510 = vmul.f32 %v479, %v483
    %v511 = vmul.f32 %v487, %v491
    %v512 = vadd.f32 %v510, %v511
    %v513 = vadd.f32 %v397, %v512
    %v514 = vmul.f32 %v479, %v491
    %v515 = vmul.f32 %v487, %v483
    %v516 = vsub.f32 %v514, %v515
    %v517 = vadd.f32 %v401, %v516
    %v518 = vmul.f32 %v479, %v485
    %v519 = vmul.f32 %v487, %v493
    %v520 = vadd.f32 %v518, %v519
    %v521 = vadd.f32 %v405, %v520
    %v522 = vmul.f32 %v479, %v493
    %v523 = vmul.f32 %v487, %v485
    %v524 = vsub.f32 %v522, %v523
    %v525 = vadd.f32 %v409, %v524
    %v526 = vmul.f32 %v479, %v495
    %v527 = vmul.f32 %v487, %v497
    %v528 = vadd.f32 %v526, %v527
    %v529 = vmul.f32 %v479, %v497
    %v530 = vmul.f32 %v487, %v495
    %v531 = vsub.f32 %v529, %v530
    %v532 = vadd.f32 %v416, %v528
    %v533 = vadd.f32 %v417, %v531
    %v534 = vmul.f32 %v481, %v481
    %v535 = vmul.f32 %v489, %v489
    %v536 = vadd.f32 %v534, %v535
    %v537 = vadd.f32 %v421, %v536
    %v538 = vmul.f32 %v481, %v483
    %v539 = vmul.f32 %v489, %v491
    %v540 = vadd.f32 %v538, %v539
    %v541 = vadd.f32 %v425, %v540
    %v542 = vmul.f32 %v481, %v491
    %v543 = vmul.f32 %v489, %v483
    %v544 = vsub.f32 %v542, %v543
    %v545 = vadd.f32 %v429, %v544
    %v546 = vmul.f32 %v481, %v485
    %v547 = vmul.f32 %v489, %v493
    %v548 = vadd.f32 %v546, %v547
    %v549 = vadd.f32 %v433, %v548
    %v550 = vmul.f32 %v481, %v493
    %v551 = vmul.f32 %v489, %v485
    %v552 = vsub.f32 %v550, %v551
    %v553 = vadd.f32 %v437, %v552
    %v554 = vmul.f32 %v481, %v495
    %v555 = vmul.f32 %v489, %v497
    %v556 = vadd.f32 %v554, %v555
    %v557 = vmul.f32 %v481, %v497
    %v558 = vmul.f32 %v489, %v495
    %v559 = vsub.f32 %v557, %v558
    %v560 = vadd.f32 %v444, %v556
    %v561 = vadd.f32 %v445, %v559
    %v562 = vmul.f32 %v483, %v483
    %v563 = vmul.f32 %v491, %v491
    %v564 = vadd.f32 %v562, %v563
    %v565 = vadd.f32 %v449, %v564
    %v566 = vmul.f32 %v483, %v485
    %v567 = vmul.f32 %v491, %v493
    %v568 = vadd.f32 %v566, %v567
    %v569 = vadd.f32 %v453, %v568
    %v570 = vmul.f32 %v483, %v493
    %v571 = vmul.f32 %v491, %v485
    %v572 = vsub.f32 %v570, %v571
    %v573 = vadd.f32 %v457, %v572
    %v574 = vmul.f32 %v483, %v495
    %v575 = vmul.f32 %v491, %v497
    %v576 = vadd.f32 %v574, %v575
    %v577 = vmul.f32 %v483, %v497
    %v578 = vmul.f32 %v491, %v495
    %v579 = vsub.f32 %v577, %v578
    %v580 = vadd.f32 %v464, %v576
    %v581 = vadd.f32 %v465, %v579
    %v582 = vmul.f32 %v485, %v485
    %v583 = vmul.f32 %v493, %v493
    %v584 = vadd.f32 %v582, %v583
    %v585 = vadd.f32 %v469, %v584
    %v586 = vmul.f32 %v485, %v495
    %v587 = vmul.f32 %v493, %v497
    %v588 = vadd.f32 %v586, %v587
    %v589 = vmul.f32 %v485, %v497
    %v590 = vmul.f32 %v493, %v495
    %v591 = vsub.f32 %v589, %v590
    %v592 = vadd.f32 %v476, %v588
    %v593 = vadd.f32 %v477, %v591
    %s594 = scalar_lea.vmem [#allocation2], 40
    %v595 = vld [vmem:[%s594] sm:$0xff]
    %s596 = scalar_lea.vmem [#allocation2], 168
    %v597 = vld [vmem:[%s596] sm:$0xff]
    %s598 = scalar_lea.vmem [#allocation2], 296
    %v599 = vld [vmem:[%s598] sm:$0xff]
    %s600 = scalar_lea.vmem [#allocation2], 424
    %v601 = vld [vmem:[%s600] sm:$0xff]
    %s602 = scalar_lea.vmem [#allocation2], 552
    %v603 = vld [vmem:[%s602] sm:$0xff]
    %s604 = scalar_lea.vmem [#allocation2], 680
    %v605 = vld [vmem:[%s604] sm:$0xff]
    %s606 = scalar_lea.vmem [#allocation2], 808
    %v607 = vld [vmem:[%s606] sm:$0xff]
    %s608 = scalar_lea.vmem [#allocation2], 936
    %v609 = vld [vmem:[%s608] sm:$0xff]
    %s610 = scalar_lea.vmem [#allocation5], 40
    %v611 = vld [vmem:[%s610] sm:$0xff]
    %s612 = scalar_lea.vmem [#allocation5], 168
    %v613 = vld [vmem:[%s612] sm:$0xff]
    %v614 = vmul.f32 %v595, %v595
    %v615 = vmul.f32 %v603, %v603
    %v616 = vadd.f32 %v614, %v615
    %v617 = vadd.f32 %v501, %v616
    %v618 = vmul.f32 %v595, %v597
    %v619 = vmul.f32 %v603, %v605
    %v620 = vadd.f32 %v618, %v619
    %v621 = vadd.f32 %v505, %v620
    %v622 = vmul.f32 %v595, %v605
    %v623 = vmul.f32 %v603, %v597
    %v624 = vsub.f32 %v622, %v623
    %v625 = vadd.f32 %v509, %v624
    %v626 = vmul.f32 %v595, %v599
    %v627 = vmul.f32 %v603, %v607
    %v628 = vadd.f32 %v626, %v627
    %v629 = vadd.f32 %v513, %v628
    %v630 = vmul.f32 %v595, %v607
    %v631 = vmul.f32 %v603, %v599
    %v632 = vsub.f32 %v630, %v631
    %v633 = vadd.f32 %v517, %v632
    %v634 = vmul.f32 %v595, %v601
    %v635 = vmul.f32 %v603, %v609
    %v636 = vadd.f32 %v634, %v635
    %v637 = vadd.f32 %v521, %v636
    %v638 = vmul.f32 %v595, %v609
    %v639 = vmul.f32 %v603, %v601
    %v640 = vsub.f32 %v638, %v639
    %v641 = vadd.f32 %v525, %v640
    %v642 = vmul.f32 %v595, %v611
    %v643 = vmul.f32 %v603, %v613
    %v644 = vadd.f32 %v642, %v643
    %v645 = vmul.f32 %v595, %v613
    %v646 = vmul.f32 %v603, %v611
    %v647 = vsub.f32 %v645, %v646
    %v648 = vadd.f32 %v532, %v644
    %v649 = vadd.f32 %v533, %v647
    %v650 = vmul.f32 %v597, %v597
    %v651 = vmul.f32 %v605, %v605
    %v652 = vadd.f32 %v650, %v651
    %v653 = vadd.f32 %v537, %v652
    %v654 = vmul.f32 %v597, %v599
    %v655 = vmul.f32 %v605, %v607
    %v656 = vadd.f32 %v654, %v655
    %v657 = vadd.f32 %v541, %v656
    %v658 = vmul.f32 %v597, %v607
    %v659 = vmul.f32 %v605, %v599
    %v660 = vsub.f32 %v658, %v659
    %v661 = vadd.f32 %v545, %v660
    %v662 = vmul.f32 %v597, %v601
    %v663 = vmul.f32 %v605, %v609
    %v664 = vadd.f32 %v662, %v663
    %v665 = vadd.f32 %v549, %v664
    %v666 = vmul.f32 %v597, %v609
    %v667 = vmul.f32 %v605, %v601
    %v668 = vsub.f32 %v666, %v667
    %v669 = vadd.f32 %v553, %v668
    %v670 = vmul.f32 %v597, %v611
    %v671 = vmul.f32 %v605, %v613
    %v672 = vadd.f32 %v670, %v671
    %v673 = vmul.f32 %v597, %v613
    %v674 = vmul.f32 %v605, %v611
    %v675 = vsub.f32 %v673, %v674
    %v676 = vadd.f32 %v560, %v672
    %v677 = vadd.f32 %v561, %v675
    %v678 = vmul.f32 %v599, %v599
    %v679 = vmul.f32 %v607, %v607
    %v680 = vadd.f32 %v678, %v679
    %v681 = vadd.f32 %v565, %v680
    %v682 = vmul.f32 %v599, %v601
    %v683 = vmul.f32 %v607, %v609
    %v684 = vadd.f32 %v682, %v683
    %v685 = vadd.f32 %v569, %v684
    %v686 = vmul.f32 %v599, %v609
    %v687 = vmul.f32 %v607, %v601
    %v688 = vsub.f32 %v686, %v687
    %v689 = vadd.f32 %v573, %v688
    %v690 = vmul.f32 %v599, %v611
    %v691 = vmul.f32 %v607, %v613
    %v692 = vadd.f32 %v690, %v691
    %v693 = vmul.f32 %v599, %v613
    %v694 = vmul.f32 %v607, %v611
    %v695 = vsub.f32 %v693, %v694
    %v696 = vadd.f32 %v580, %v692
    %v697 = vadd.f32 %v581, %v695
    %v698 = vmul.f32 %v601, %v601
    %v699 = vmul.f32 %v609, %v609
    %v700 = vadd.f32 %v698, %v699
    %v701 = vadd.f32 %v585, %v700
    %v702 = vmul.f32 %v601, %v611
    %v703 = vmul.f32 %v609, %v613
    %v704 = vadd.f32 %v702, %v703
    %v705 = vmul.f32 %v601, %v613
    %v706 = vmul.f32 %v609, %v611
    %v707 = vsub.f32 %v705, %v706
    %v708 = vadd.f32 %v592, %v704
    %v709 = vadd.f32 %v593, %v707
    %s710 = scalar_lea.vmem [#allocation2], 48
    %v711 = vld [vmem:[%s710] sm:$0xff]
    %s712 = scalar_lea.vmem [#allocation2], 176
    %v713 = vld [vmem:[%s712] sm:$0xff]
    %s714 = scalar_lea.vmem [#allocation2], 304
    %v715 = vld [vmem:[%s714] sm:$0xff]
    %s716 = scalar_lea.vmem [#allocation2], 432
    %v717 = vld [vmem:[%s716] sm:$0xff]
    %s718 = scalar_lea.vmem [#allocation2], 560
    %v719 = vld [vmem:[%s718] sm:$0xff]
    %s720 = scalar_lea.vmem [#allocation2], 688
    %v721 = vld [vmem:[%s720] sm:$0xff]
    %s722 = scalar_lea.vmem [#allocation2], 816
    %v723 = vld [vmem:[%s722] sm:$0xff]
    %s724 = scalar_lea.vmem [#allocation2], 944
    %v725 = vld [vmem:[%s724] sm:$0xff]
    %s726 = scalar_lea.vmem [#allocation5], 48
    %v727 = vld [vmem:[%s726] sm:$0xff]
    %s728 = scalar_lea.vmem [#allocation5], 176
    %v729 = vld [vmem:[%s728] sm:$0xff]
    %v730 = vmul.f32 %v711, %v711
    %v731 = vmul.f32 %v719, %v719
    %v732 = vadd.f32 %v730, %v731
    %v733 = vadd.f32 %v617, %v732
    %v734 = vmul.f32 %v711, %v713
    %v735 = vmul.f32 %v719, %v721
    %v736 = vadd.f32 %v734, %v735
    %v737 = vadd.f32 %v621, %v736
    %v738 = vmul.f32 %v711, %v721
    %v739 = vmul.f32 %v719, %v713
    %v740 = vsub.f32 %v738, %v739
    %v741 = vadd.f32 %v625, %v740
    %v742 = vmul.f32 %v711, %v715
    %v743 = vmul.f32 %v719, %v723
    %v744 = vadd.f32 %v742, %v743
    %v745 = vadd.f32 %v629, %v744
    %v746 = vmul.f32 %v711, %v723
    %v747 = vmul.f32 %v719, %v715
    %v748 = vsub.f32 %v746, %v747
    %v749 = vadd.f32 %v633, %v748
    %v750 = vmul.f32 %v711, %v717
    %v751 = vmul.f32 %v719, %v725
    %v752 = vadd.f32 %v750, %v751
    %v753 = vadd.f32 %v637, %v752
    %v754 = vmul.f32 %v711, %v725
    %v755 = vmul.f32 %v719, %v717
    %v756 = vsub.f32 %v754, %v755
    %v757 = vadd.f32 %v641, %v756
    %v758 = vmul.f32 %v711, %v727
    %v759 = vmul.f32 %v719, %v729
    %v760 = vadd.f32 %v758, %v759
    %v761 = vmul.f32 %v711, %v729
    %v762 = vmul.f32 %v719, %v727
    %v763 = vsub.f32 %v761, %v762
    %v764 = vadd.f32 %v648, %v760
    %v765 = vadd.f32 %v649, %v763
    %v766 = vmul.f32 %v713, %v713
    %v767 = vmul.f32 %v721, %v721
    %v768 = vadd.f32 %v766, %v767
    %v769 = vadd.f32 %v653, %v768
    %v770 = vmul.f32 %v713, %v715
    %v771 = vmul.f32 %v721, %v723
    %v772 = vadd.f32 %v770, %v771
    %v773 = vadd.f32 %v657, %v772
    %v774 = vmul.f32 %v713, %v723
    %v775 = vmul.f32 %v721, %v715
    %v776 = vsub.f32 %v774, %v775
    %v777 = vadd.f32 %v661, %v776
    %v778 = vmul.f32 %v713, %v717
    %v779 = vmul.f32 %v721, %v725
    %v780 = vadd.f32 %v778, %v779
    %v781 = vadd.f32 %v665, %v780
    %v782 = vmul.f32 %v713, %v725
    %v783 = vmul.f32 %v721, %v717
    %v784 = vsub.f32 %v782, %v783
    %v785 = vadd.f32 %v669, %v784
    %v786 = vmul.f32 %v713, %v727
    %v787 = vmul.f32 %v721, %v729
    %v788 = vadd.f32 %v786, %v787
    %v789 = vmul.f32 %v713, %v729
    %v790 = vmul.f32 %v721, %v727
    %v791 = vsub.f32 %v789, %v790
    %v792 = vadd.f32 %v676, %v788
    %v793 = vadd.f32 %v677, %v791
    %v794 = vmul.f32 %v715, %v715
    %v795 = vmul.f32 %v723, %v723
    %v796 = vadd.f32 %v794, %v795
    %v797 = vadd.f32 %v681, %v796
    %v798 = vmul.f32 %v715, %v717
    %v799 = vmul.f32 %v723, %v725
    %v800 = vadd.f32 %v798, %v799
    %v801 = vadd.f32 %v685, %v800
    %v802 = vmul.f32 %v715, %v725
    %v803 = vmul.f32 %v723, %v717
    %v804 = vsub.f32 %v802, %v803
    %v805 = vadd.f32 %v689, %v804
    %v806 = vmul.f32 %v715, %v727
    %v807 = vmul.f32 %v723, %v729
    %v808 = vadd.f32 %v806, %v807
    %v809 = vmul.f32 %v715, %v729
    %v810 = vmul.f32 %v723, %v727
    %v811 = vsub.f32 %v809, %v810
    %v812 = vadd.f32 %v696, %v808
    %v813 = vadd.f32 %v697, %v811
    %v814 = vmul.f32 %v717, %v717
    %v815 = vmul.f32 %v725, %v725
    %v816 = vadd.f32 %v814, %v815
    %v817 = vadd.f32 %v701, %v816
    %v818 = vmul.f32 %v717, %v727
    %v819 = vmul.f32 %v725, %v729
    %v820 = vadd.f32 %v818, %v819
    %v821 = vmul.f32 %v717, %v729
    %v822 = vmul.f32 %v725, %v727
    %v823 = vsub.f32 %v821, %v822
    %v824 = vadd.f32 %v708, %v820
    %v825 = vadd.f32 %v709, %v823
    %s826 = scalar_lea.vmem [#allocation2], 56
    %v827 = vld [vmem:[%s826] sm:$0xff]
    %s828 = scalar_lea.vmem [#allocation2], 184
    %v829 = vld [vmem:[%s828] sm:$0xff]
    %s830 = scalar_lea.vmem [#allocation2], 312
    %v831 = vld [vmem:[%s830] sm:$0xff]
    %s832 = scalar_lea.vmem [#allocation2], 440
    %v833 = vld [vmem:[%s832] sm:$0xff]
    %s834 = scalar_lea.vmem [#allocation2], 568
    %v835 = vld [vmem:[%s834] sm:$0xff]
    %s836 = scalar_lea.vmem [#allocation2], 696
    %v837 = vld [vmem:[%s836] sm:$0xff]
    %s838 = scalar_lea.vmem [#allocation2], 824
    %v839 = vld [vmem:[%s838] sm:$0xff]
    %s840 = scalar_lea.vmem [#allocation2], 952
    %v841 = vld [vmem:[%s840] sm:$0xff]
    %s842 = scalar_lea.vmem [#allocation5], 56
    %v843 = vld [vmem:[%s842] sm:$0xff]
    %s844 = scalar_lea.vmem [#allocation5], 184
    %v845 = vld [vmem:[%s844] sm:$0xff]
    %v846 = vmul.f32 %v827, %v827
    %v847 = vmul.f32 %v835, %v835
    %v848 = vadd.f32 %v846, %v847
    %v849 = vadd.f32 %v733, %v848
    %v850 = vmul.f32 %v827, %v829
    %v851 = vmul.f32 %v835, %v837
    %v852 = vadd.f32 %v850, %v851
    %v853 = vadd.f32 %v737, %v852
    %v854 = vmul.f32 %v827, %v837
    %v855 = vmul.f32 %v835, %v829
    %v856 = vsub.f32 %v854, %v855
    %v857 = vadd.f32 %v741, %v856
    %v858 = vmul.f32 %v827, %v831
    %v859 = vmul.f32 %v835, %v839
    %v860 = vadd.f32 %v858, %v859
    %v861 = vadd.f32 %v745, %v860
    %v862 = vmul.f32 %v827, %v839
    %v863 = vmul.f32 %v835, %v831
    %v864 = vsub.f32 %v862, %v863
    %v865 = vadd.f32 %v749, %v864
    %v866 = vmul.f32 %v827, %v833
    %v867 = vmul.f32 %v835, %v841
    %v868 = vadd.f32 %v866, %v867
    %v869 = vadd.f32 %v753, %v868
    %v870 = vmul.f32 %v827, %v841
    %v871 = vmul.f32 %v835, %v833
    %v872 = vsub.f32 %v870, %v871
    %v873 = vadd.f32 %v757, %v872
    %v874 = vmul.f32 %v827, %v843
    %v875 = vmul.f32 %v835, %v845
    %v876 = vadd.f32 %v874, %v875
    %v877 = vmul.f32 %v827, %v845
    %v878 = vmul.f32 %v835, %v843
    %v879 = vsub.f32 %v877, %v878
    %v880 = vadd.f32 %v764, %v876
    %v881 = vadd.f32 %v765, %v879
    %v882 = vmul.f32 %v829, %v829
    %v883 = vmul.f32 %v837, %v837
    %v884 = vadd.f32 %v882, %v883
    %v885 = vadd.f32 %v769, %v884
    %v886 = vmul.f32 %v829, %v831
    %v887 = vmul.f32 %v837, %v839
    %v888 = vadd.f32 %v886, %v887
    %v889 = vadd.f32 %v773, %v888
    %v890 = vmul.f32 %v829, %v839
    %v891 = vmul.f32 %v837, %v831
    %v892 = vsub.f32 %v890, %v891
    %v893 = vadd.f32 %v777, %v892
    %v894 = vmul.f32 %v829, %v833
    %v895 = vmul.f32 %v837, %v841
    %v896 = vadd.f32 %v894, %v895
    %v897 = vadd.f32 %v781, %v896
    %v898 = vmul.f32 %v829, %v841
    %v899 = vmul.f32 %v837, %v833
    %v900 = vsub.f32 %v898, %v899
    %v901 = vadd.f32 %v785, %v900
    %v902 = vmul.f32 %v829, %v843
    %v903 = vmul.f32 %v837, %v845
    %v904 = vadd.f32 %v902, %v903
    %v905 = vmul.f32 %v829, %v845
    %v906 = vmul.f32 %v837, %v843
    %v907 = vsub.f32 %v905, %v906
    %v908 = vadd.f32 %v792, %v904
    %v909 = vadd.f32 %v793, %v907
    %v910 = vmul.f32 %v831, %v831
    %v911 = vmul.f32 %v839, %v839
    %v912 = vadd.f32 %v910, %v911
    %v913 = vadd.f32 %v797, %v912
    %v914 = vmul.f32 %v831, %v833
    %v915 = vmul.f32 %v839, %v841
    %v916 = vadd.f32 %v914, %v915
    %v917 = vadd.f32 %v801, %v916
    %v918 = vmul.f32 %v831, %v841
    %v919 = vmul.f32 %v839, %v833
    %v920 = vsub.f32 %v918, %v919
    %v921 = vadd.f32 %v805, %v920
    %v922 = vmul.f32 %v831, %v843
    %v923 = vmul.f32 %v839, %v845
    %v924 = vadd.f32 %v922, %v923
    %v925 = vmul.f32 %v831, %v845
    %v926 = vmul.f32 %v839, %v843
    %v927 = vsub.f32 %v925, %v926
    %v928 = vadd.f32 %v812, %v924
    %v929 = vadd.f32 %v813, %v927
    %v930 = vmul.f32 %v833, %v833
    %v931 = vmul.f32 %v841, %v841
    %v932 = vadd.f32 %v930, %v931
    %v933 = vadd.f32 %v817, %v932
    %v934 = vmul.f32 %v833, %v843
    %v935 = vmul.f32 %v841, %v845
    %v936 = vadd.f32 %v934, %v935
    %v937 = vmul.f32 %v833, %v845
    %v938 = vmul.f32 %v841, %v843
    %v939 = vsub.f32 %v937, %v938
    %v940 = vadd.f32 %v824, %v936
    %v941 = vadd.f32 %v825, %v939
    %s942 = scalar_lea.vmem [#allocation2], 64
    %v943 = vld [vmem:[%s942] sm:$0xff]
    %s944 = scalar_lea.vmem [#allocation2], 192
    %v945 = vld [vmem:[%s944] sm:$0xff]
    %s946 = scalar_lea.vmem [#allocation2], 320
    %v947 = vld [vmem:[%s946] sm:$0xff]
    %s948 = scalar_lea.vmem [#allocation2], 448
    %v949 = vld [vmem:[%s948] sm:$0xff]
    %s950 = scalar_lea.vmem [#allocation2], 576
    %v951 = vld [vmem:[%s950] sm:$0xff]
    %s952 = scalar_lea.vmem [#allocation2], 704
    %v953 = vld [vmem:[%s952] sm:$0xff]
    %s954 = scalar_lea.vmem [#allocation2], 832
    %v955 = vld [vmem:[%s954] sm:$0xff]
    %s956 = scalar_lea.vmem [#allocation2], 960
    %v957 = vld [vmem:[%s956] sm:$0xff]
    %s958 = scalar_lea.vmem [#allocation5], 64
    %v959 = vld [vmem:[%s958] sm:$0xff]
    %s960 = scalar_lea.vmem [#allocation5], 192
    %v961 = vld [vmem:[%s960] sm:$0xff]
    %v962 = vmul.f32 %v943, %v943
    %v963 = vmul.f32 %v951, %v951
    %v964 = vadd.f32 %v962, %v963
    %v965 = vadd.f32 %v849, %v964
    %v966 = vmul.f32 %v943, %v945
    %v967 = vmul.f32 %v951, %v953
    %v968 = vadd.f32 %v966, %v967
    %v969 = vadd.f32 %v853, %v968
    %v970 = vmul.f32 %v943, %v953
    %v971 = vmul.f32 %v951, %v945
    %v972 = vsub.f32 %v970, %v971
    %v973 = vadd.f32 %v857, %v972
    %v974 = vmul.f32 %v943, %v947
    %v975 = vmul.f32 %v951, %v955
    %v976 = vadd.f32 %v974, %v975
    %v977 = vadd.f32 %v861, %v976
    %v978 = vmul.f32 %v943, %v955
    %v979 = vmul.f32 %v951, %v947
    %v980 = vsub.f32 %v978, %v979
    %v981 = vadd.f32 %v865, %v980
    %v982 = vmul.f32 %v943, %v949
    %v983 = vmul.f32 %v951, %v957
    %v984 = vadd.f32 %v982, %v983
    %v985 = vadd.f32 %v869, %v984
    %v986 = vmul.f32 %v943, %v957
    %v987 = vmul.f32 %v951, %v949
    %v988 = vsub.f32 %v986, %v987
    %v989 = vadd.f32 %v873, %v988
    %v990 = vmul.f32 %v943, %v959
    %v991 = vmul.f32 %v951, %v961
    %v992 = vadd.f32 %v990, %v991
    %v993 = vmul.f32 %v943, %v961
    %v994 = vmul.f32 %v951, %v959
    %v995 = vsub.f32 %v993, %v994
    %v996 = vadd.f32 %v880, %v992
    %v997 = vadd.f32 %v881, %v995
    %v998 = vmul.f32 %v945, %v945
    %v999 = vmul.f32 %v953, %v953
    %v1000 = vadd.f32 %v998, %v999
    %v1001 = vadd.f32 %v885, %v1000
    %v1002 = vmul.f32 %v945, %v947
    %v1003 = vmul.f32 %v953, %v955
    %v1004 = vadd.f32 %v1002, %v1003
    %v1005 = vadd.f32 %v889, %v1004
    %v1006 = vmul.f32 %v945, %v955
    %v1007 = vmul.f32 %v953, %v947
    %v1008 = vsub.f32 %v1006, %v1007
    %v1009 = vadd.f32 %v893, %v1008
    %v1010 = vmul.f32 %v945, %v949
    %v1011 = vmul.f32 %v953, %v957
    %v1012 = vadd.f32 %v1010, %v1011
    %v1013 = vadd.f32 %v897, %v1012
    %v1014 = vmul.f32 %v945, %v957
    %v1015 = vmul.f32 %v953, %v949
    %v1016 = vsub.f32 %v1014, %v1015
    %v1017 = vadd.f32 %v901, %v1016
    %v1018 = vmul.f32 %v945, %v959
    %v1019 = vmul.f32 %v953, %v961
    %v1020 = vadd.f32 %v1018, %v1019
    %v1021 = vmul.f32 %v945, %v961
    %v1022 = vmul.f32 %v953, %v959
    %v1023 = vsub.f32 %v1021, %v1022
    %v1024 = vadd.f32 %v908, %v1020
    %v1025 = vadd.f32 %v909, %v1023
    %v1026 = vmul.f32 %v947, %v947
    %v1027 = vmul.f32 %v955, %v955
    %v1028 = vadd.f32 %v1026, %v1027
    %v1029 = vadd.f32 %v913, %v1028
    %v1030 = vmul.f32 %v947, %v949
    %v1031 = vmul.f32 %v955, %v957
    %v1032 = vadd.f32 %v1030, %v1031
    %v1033 = vadd.f32 %v917, %v1032
    %v1034 = vmul.f32 %v947, %v957
    %v1035 = vmul.f32 %v955, %v949
    %v1036 = vsub.f32 %v1034, %v1035
    %v1037 = vadd.f32 %v921, %v1036
    %v1038 = vmul.f32 %v947, %v959
    %v1039 = vmul.f32 %v955, %v961
    %v1040 = vadd.f32 %v1038, %v1039
    %v1041 = vmul.f32 %v947, %v961
    %v1042 = vmul.f32 %v955, %v959
    %v1043 = vsub.f32 %v1041, %v1042
    %v1044 = vadd.f32 %v928, %v1040
    %v1045 = vadd.f32 %v929, %v1043
    %v1046 = vmul.f32 %v949, %v949
    %v1047 = vmul.f32 %v957, %v957
    %v1048 = vadd.f32 %v1046, %v1047
    %v1049 = vadd.f32 %v933, %v1048
    %v1050 = vmul.f32 %v949, %v959
    %v1051 = vmul.f32 %v957, %v961
    %v1052 = vadd.f32 %v1050, %v1051
    %v1053 = vmul.f32 %v949, %v961
    %v1054 = vmul.f32 %v957, %v959
    %v1055 = vsub.f32 %v1053, %v1054
    %v1056 = vadd.f32 %v940, %v1052
    %v1057 = vadd.f32 %v941, %v1055
    %s1058 = scalar_lea.vmem [#allocation2], 72
    %v1059 = vld [vmem:[%s1058] sm:$0xff]
    %s1060 = scalar_lea.vmem [#allocation2], 200
    %v1061 = vld [vmem:[%s1060] sm:$0xff]
    %s1062 = scalar_lea.vmem [#allocation2], 328
    %v1063 = vld [vmem:[%s1062] sm:$0xff]
    %s1064 = scalar_lea.vmem [#allocation2], 456
    %v1065 = vld [vmem:[%s1064] sm:$0xff]
    %s1066 = scalar_lea.vmem [#allocation2], 584
    %v1067 = vld [vmem:[%s1066] sm:$0xff]
    %s1068 = scalar_lea.vmem [#allocation2], 712
    %v1069 = vld [vmem:[%s1068] sm:$0xff]
    %s1070 = scalar_lea.vmem [#allocation2], 840
    %v1071 = vld [vmem:[%s1070] sm:$0xff]
    %s1072 = scalar_lea.vmem [#allocation2], 968
    %v1073 = vld [vmem:[%s1072] sm:$0xff]
    %s1074 = scalar_lea.vmem [#allocation5], 72
    %v1075 = vld [vmem:[%s1074] sm:$0xff]
    %s1076 = scalar_lea.vmem [#allocation5], 200
    %v1077 = vld [vmem:[%s1076] sm:$0xff]
    %v1078 = vmul.f32 %v1059, %v1059
    %v1079 = vmul.f32 %v1067, %v1067
    %v1080 = vadd.f32 %v1078, %v1079
    %v1081 = vadd.f32 %v965, %v1080
    %v1082 = vmul.f32 %v1059, %v1061
    %v1083 = vmul.f32 %v1067, %v1069
    %v1084 = vadd.f32 %v1082, %v1083
    %v1085 = vadd.f32 %v969, %v1084
    %v1086 = vmul.f32 %v1059, %v1069
    %v1087 = vmul.f32 %v1067, %v1061
    %v1088 = vsub.f32 %v1086, %v1087
    %v1089 = vadd.f32 %v973, %v1088
    %v1090 = vmul.f32 %v1059, %v1063
    %v1091 = vmul.f32 %v1067, %v1071
    %v1092 = vadd.f32 %v1090, %v1091
    %v1093 = vadd.f32 %v977, %v1092
    %v1094 = vmul.f32 %v1059, %v1071
    %v1095 = vmul.f32 %v1067, %v1063
    %v1096 = vsub.f32 %v1094, %v1095
    %v1097 = vadd.f32 %v981, %v1096
    %v1098 = vmul.f32 %v1059, %v1065
    %v1099 = vmul.f32 %v1067, %v1073
    %v1100 = vadd.f32 %v1098, %v1099
    %v1101 = vadd.f32 %v985, %v1100
    %v1102 = vmul.f32 %v1059, %v1073
    %v1103 = vmul.f32 %v1067, %v1065
    %v1104 = vsub.f32 %v1102, %v1103
    %v1105 = vadd.f32 %v989, %v1104
    %v1106 = vmul.f32 %v1059, %v1075
    %v1107 = vmul.f32 %v1067, %v1077
    %v1108 = vadd.f32 %v1106, %v1107
    %v1109 = vmul.f32 %v1059, %v1077
    %v1110 = vmul.f32 %v1067, %v1075
    %v1111 = vsub.f32 %v1109, %v1110
    %v1112 = vadd.f32 %v996, %v1108
    %v1113 = vadd.f32 %v997, %v1111
    %v1114 = vmul.f32 %v1061, %v1061
    %v1115 = vmul.f32 %v1069, %v1069
    %v1116 = vadd.f32 %v1114, %v1115
    %v1117 = vadd.f32 %v1001, %v1116
    %v1118 = vmul.f32 %v1061, %v1063
    %v1119 = vmul.f32 %v1069, %v1071
    %v1120 = vadd.f32 %v1118, %v1119
    %v1121 = vadd.f32 %v1005, %v1120
    %v1122 = vmul.f32 %v1061, %v1071
    %v1123 = vmul.f32 %v1069, %v1063
    %v1124 = vsub.f32 %v1122, %v1123
    %v1125 = vadd.f32 %v1009, %v1124
    %v1126 = vmul.f32 %v1061, %v1065
    %v1127 = vmul.f32 %v1069, %v1073
    %v1128 = vadd.f32 %v1126, %v1127
    %v1129 = vadd.f32 %v1013, %v1128
    %v1130 = vmul.f32 %v1061, %v1073
    %v1131 = vmul.f32 %v1069, %v1065
    %v1132 = vsub.f32 %v1130, %v1131
    %v1133 = vadd.f32 %v1017, %v1132
    %v1134 = vmul.f32 %v1061, %v1075
    %v1135 = vmul.f32 %v1069, %v1077
    %v1136 = vadd.f32 %v1134, %v1135
    %v1137 = vmul.f32 %v1061, %v1077
    %v1138 = vmul.f32 %v1069, %v1075
    %v1139 = vsub.f32 %v1137, %v1138
    %v1140 = vadd.f32 %v1024, %v1136
    %v1141 = vadd.f32 %v1025, %v1139
    %v1142 = vmul.f32 %v1063, %v1063
    %v1143 = vmul.f32 %v1071, %v1071
    %v1144 = vadd.f32 %v1142, %v1143
    %v1145 = vadd.f32 %v1029, %v1144
    %v1146 = vmul.f32 %v1063, %v1065
    %v1147 = vmul.f32 %v1071, %v1073
    %v1148 = vadd.f32 %v1146, %v1147
    %v1149 = vadd.f32 %v1033, %v1148
    %v1150 = vmul.f32 %v1063, %v1073
    %v1151 = vmul.f32 %v1071, %v1065
    %v1152 = vsub.f32 %v1150, %v1151
    %v1153 = vadd.f32 %v1037, %v1152
    %v1154 = vmul.f32 %v1063, %v1075
    %v1155 = vmul.f32 %v1071, %v1077
    %v1156 = vadd.f32 %v1154, %v1155
    %v1157 = vmul.f32 %v1063, %v1077
    %v1158 = vmul.f32 %v1071, %v1075
    %v1159 = vsub.f32 %v1157, %v1158
    %v1160 = vadd.f32 %v1044, %v1156
    %v1161 = vadd.f32 %v1045, %v1159
    %v1162 = vmul.f32 %v1065, %v1065
    %v1163 = vmul.f32 %v1073, %v1073
    %v1164 = vadd.f32 %v1162, %v1163
    %v1165 = vadd.f32 %v1049, %v1164
    %v1166 = vmul.f32 %v1065, %v1075
    %v1167 = vmul.f32 %v1073, %v1077
    %v1168 = vadd.f32 %v1166, %v1167
    %v1169 = vmul.f32 %v1065, %v1077
    %v1170 = vmul.f32 %v1073, %v1075
    %v1171 = vsub.f32 %v1169, %v1170
    %v1172 = vadd.f32 %v1056, %v1168
    %v1173 = vadd.f32 %v1057, %v1171
    %s1174 = scalar_lea.vmem [#allocation2], 80
    %v1175 = vld [vmem:[%s1174] sm:$0xff]
    %s1176 = scalar_lea.vmem [#allocation2], 208
    %v1177 = vld [vmem:[%s1176] sm:$0xff]
    %s1178 = scalar_lea.vmem [#allocation2], 336
    %v1179 = vld [vmem:[%s1178] sm:$0xff]
    %s1180 = scalar_lea.vmem [#allocation2], 464
    %v1181 = vld [vmem:[%s1180] sm:$0xff]
    %s1182 = scalar_lea.vmem [#allocation2], 592
    %v1183 = vld [vmem:[%s1182] sm:$0xff]
    %s1184 = scalar_lea.vmem [#allocation2], 720
    %v1185 = vld [vmem:[%s1184] sm:$0xff]
    %s1186 = scalar_lea.vmem [#allocation2], 848
    %v1187 = vld [vmem:[%s1186] sm:$0xff]
    %s1188 = scalar_lea.vmem [#allocation2], 976
    %v1189 = vld [vmem:[%s1188] sm:$0xff]
    %s1190 = scalar_lea.vmem [#allocation5], 80
    %v1191 = vld [vmem:[%s1190] sm:$0xff]
    %s1192 = scalar_lea.vmem [#allocation5], 208
    %v1193 = vld [vmem:[%s1192] sm:$0xff]
    %v1194 = vmul.f32 %v1175, %v1175
    %v1195 = vmul.f32 %v1183, %v1183
    %v1196 = vadd.f32 %v1194, %v1195
    %v1197 = vadd.f32 %v1081, %v1196
    %v1198 = vmul.f32 %v1175, %v1177
    %v1199 = vmul.f32 %v1183, %v1185
    %v1200 = vadd.f32 %v1198, %v1199
    %v1201 = vadd.f32 %v1085, %v1200
    %v1202 = vmul.f32 %v1175, %v1185
    %v1203 = vmul.f32 %v1183, %v1177
    %v1204 = vsub.f32 %v1202, %v1203
    %v1205 = vadd.f32 %v1089, %v1204
    %v1206 = vmul.f32 %v1175, %v1179
    %v1207 = vmul.f32 %v1183, %v1187
    %v1208 = vadd.f32 %v1206, %v1207
    %v1209 = vadd.f32 %v1093, %v1208
    %v1210 = vmul.f32 %v1175, %v1187
    %v1211 = vmul.f32 %v1183, %v1179
    %v1212 = vsub.f32 %v1210, %v1211
    %v1213 = vadd.f32 %v1097, %v1212
    %v1214 = vmul.f32 %v1175, %v1181
    %v1215 = vmul.f32 %v1183, %v1189
    %v1216 = vadd.f32 %v1214, %v1215
    %v1217 = vadd.f32 %v1101, %v1216
    %v1218 = vmul.f32 %v1175, %v1189
    %v1219 = vmul.f32 %v1183, %v1181
    %v1220 = vsub.f32 %v1218, %v1219
    %v1221 = vadd.f32 %v1105, %v1220
    %v1222 = vmul.f32 %v1175, %v1191
    %v1223 = vmul.f32 %v1183, %v1193
    %v1224 = vadd.f32 %v1222, %v1223
    %v1225 = vmul.f32 %v1175, %v1193
    %v1226 = vmul.f32 %v1183, %v1191
    %v1227 = vsub.f32 %v1225, %v1226
    %v1228 = vadd.f32 %v1112, %v1224
    %v1229 = vadd.f32 %v1113, %v1227
    %v1230 = vmul.f32 %v1177, %v1177
    %v1231 = vmul.f32 %v1185, %v1185
    %v1232 = vadd.f32 %v1230, %v1231
    %v1233 = vadd.f32 %v1117, %v1232
    %v1234 = vmul.f32 %v1177, %v1179
    %v1235 = vmul.f32 %v1185, %v1187
    %v1236 = vadd.f32 %v1234, %v1235
    %v1237 = vadd.f32 %v1121, %v1236
    %v1238 = vmul.f32 %v1177, %v1187
    %v1239 = vmul.f32 %v1185, %v1179
    %v1240 = vsub.f32 %v1238, %v1239
    %v1241 = vadd.f32 %v1125, %v1240
    %v1242 = vmul.f32 %v1177, %v1181
    %v1243 = vmul.f32 %v1185, %v1189
    %v1244 = vadd.f32 %v1242, %v1243
    %v1245 = vadd.f32 %v1129, %v1244
    %v1246 = vmul.f32 %v1177, %v1189
    %v1247 = vmul.f32 %v1185, %v1181
    %v1248 = vsub.f32 %v1246, %v1247
    %v1249 = vadd.f32 %v1133, %v1248
    %v1250 = vmul.f32 %v1177, %v1191
    %v1251 = vmul.f32 %v1185, %v1193
    %v1252 = vadd.f32 %v1250, %v1251
    %v1253 = vmul.f32 %v1177, %v1193
    %v1254 = vmul.f32 %v1185, %v1191
    %v1255 = vsub.f32 %v1253, %v1254
    %v1256 = vadd.f32 %v1140, %v1252
    %v1257 = vadd.f32 %v1141, %v1255
    %v1258 = vmul.f32 %v1179, %v1179
    %v1259 = vmul.f32 %v1187, %v1187
    %v1260 = vadd.f32 %v1258, %v1259
    %v1261 = vadd.f32 %v1145, %v1260
    %v1262 = vmul.f32 %v1179, %v1181
    %v1263 = vmul.f32 %v1187, %v1189
    %v1264 = vadd.f32 %v1262, %v1263
    %v1265 = vadd.f32 %v1149, %v1264
    %v1266 = vmul.f32 %v1179, %v1189
    %v1267 = vmul.f32 %v1187, %v1181
    %v1268 = vsub.f32 %v1266, %v1267
    %v1269 = vadd.f32 %v1153, %v1268
    %v1270 = vmul.f32 %v1179, %v1191
    %v1271 = vmul.f32 %v1187, %v1193
    %v1272 = vadd.f32 %v1270, %v1271
    %v1273 = vmul.f32 %v1179, %v1193
    %v1274 = vmul.f32 %v1187, %v1191
    %v1275 = vsub.f32 %v1273, %v1274
    %v1276 = vadd.f32 %v1160, %v1272
    %v1277 = vadd.f32 %v1161, %v1275
    %v1278 = vmul.f32 %v1181, %v1181
    %v1279 = vmul.f32 %v1189, %v1189
    %v1280 = vadd.f32 %v1278, %v1279
    %v1281 = vadd.f32 %v1165, %v1280
    %v1282 = vmul.f32 %v1181, %v1191
    %v1283 = vmul.f32 %v1189, %v1193
    %v1284 = vadd.f32 %v1282, %v1283
    %v1285 = vmul.f32 %v1181, %v1193
    %v1286 = vmul.f32 %v1189, %v1191
    %v1287 = vsub.f32 %v1285, %v1286
    %v1288 = vadd.f32 %v1172, %v1284
    %v1289 = vadd.f32 %v1173, %v1287
    %s1290 = scalar_lea.vmem [#allocation2], 88
    %v1291 = vld [vmem:[%s1290] sm:$0xff]
    %s1292 = scalar_lea.vmem [#allocation2], 216
    %v1293 = vld [vmem:[%s1292] sm:$0xff]
    %s1294 = scalar_lea.vmem [#allocation2], 344
    %v1295 = vld [vmem:[%s1294] sm:$0xff]
    %s1296 = scalar_lea.vmem [#allocation2], 472
    %v1297 = vld [vmem:[%s1296] sm:$0xff]
    %s1298 = scalar_lea.vmem [#allocation2], 600
    %v1299 = vld [vmem:[%s1298] sm:$0xff]
    %s1300 = scalar_lea.vmem [#allocation2], 728
    %v1301 = vld [vmem:[%s1300] sm:$0xff]
    %s1302 = scalar_lea.vmem [#allocation2], 856
    %v1303 = vld [vmem:[%s1302] sm:$0xff]
    %s1304 = scalar_lea.vmem [#allocation2], 984
    %v1305 = vld [vmem:[%s1304] sm:$0xff]
    %s1306 = scalar_lea.vmem [#allocation5], 88
    %v1307 = vld [vmem:[%s1306] sm:$0xff]
    %s1308 = scalar_lea.vmem [#allocation5], 216
    %v1309 = vld [vmem:[%s1308] sm:$0xff]
    %v1310 = vmul.f32 %v1291, %v1291
    %v1311 = vmul.f32 %v1299, %v1299
    %v1312 = vadd.f32 %v1310, %v1311
    %v1313 = vadd.f32 %v1197, %v1312
    %v1314 = vmul.f32 %v1291, %v1293
    %v1315 = vmul.f32 %v1299, %v1301
    %v1316 = vadd.f32 %v1314, %v1315
    %v1317 = vadd.f32 %v1201, %v1316
    %v1318 = vmul.f32 %v1291, %v1301
    %v1319 = vmul.f32 %v1299, %v1293
    %v1320 = vsub.f32 %v1318, %v1319
    %v1321 = vadd.f32 %v1205, %v1320
    %v1322 = vmul.f32 %v1291, %v1295
    %v1323 = vmul.f32 %v1299, %v1303
    %v1324 = vadd.f32 %v1322, %v1323
    %v1325 = vadd.f32 %v1209, %v1324
    %v1326 = vmul.f32 %v1291, %v1303
    %v1327 = vmul.f32 %v1299, %v1295
    %v1328 = vsub.f32 %v1326, %v1327
    %v1329 = vadd.f32 %v1213, %v1328
    %v1330 = vmul.f32 %v1291, %v1297
    %v1331 = vmul.f32 %v1299, %v1305
    %v1332 = vadd.f32 %v1330, %v1331
    %v1333 = vadd.f32 %v1217, %v1332
    %v1334 = vmul.f32 %v1291, %v1305
    %v1335 = vmul.f32 %v1299, %v1297
    %v1336 = vsub.f32 %v1334, %v1335
    %v1337 = vadd.f32 %v1221, %v1336
    %v1338 = vmul.f32 %v1291, %v1307
    %v1339 = vmul.f32 %v1299, %v1309
    %v1340 = vadd.f32 %v1338, %v1339
    %v1341 = vmul.f32 %v1291, %v1309
    %v1342 = vmul.f32 %v1299, %v1307
    %v1343 = vsub.f32 %v1341, %v1342
    %v1344 = vadd.f32 %v1228, %v1340
    %v1345 = vadd.f32 %v1229, %v1343
    %v1346 = vmul.f32 %v1293, %v1293
    %v1347 = vmul.f32 %v1301, %v1301
    %v1348 = vadd.f32 %v1346, %v1347
    %v1349 = vadd.f32 %v1233, %v1348
    %v1350 = vmul.f32 %v1293, %v1295
    %v1351 = vmul.f32 %v1301, %v1303
    %v1352 = vadd.f32 %v1350, %v1351
    %v1353 = vadd.f32 %v1237, %v1352
    %v1354 = vmul.f32 %v1293, %v1303
    %v1355 = vmul.f32 %v1301, %v1295
    %v1356 = vsub.f32 %v1354, %v1355
    %v1357 = vadd.f32 %v1241, %v1356
    %v1358 = vmul.f32 %v1293, %v1297
    %v1359 = vmul.f32 %v1301, %v1305
    %v1360 = vadd.f32 %v1358, %v1359
    %v1361 = vadd.f32 %v1245, %v1360
    %v1362 = vmul.f32 %v1293, %v1305
    %v1363 = vmul.f32 %v1301, %v1297
    %v1364 = vsub.f32 %v1362, %v1363
    %v1365 = vadd.f32 %v1249, %v1364
    %v1366 = vmul.f32 %v1293, %v1307
    %v1367 = vmul.f32 %v1301, %v1309
    %v1368 = vadd.f32 %v1366, %v1367
    %v1369 = vmul.f32 %v1293, %v1309
    %v1370 = vmul.f32 %v1301, %v1307
    %v1371 = vsub.f32 %v1369, %v1370
    %v1372 = vadd.f32 %v1256, %v1368
    %v1373 = vadd.f32 %v1257, %v1371
    %v1374 = vmul.f32 %v1295, %v1295
    %v1375 = vmul.f32 %v1303, %v1303
    %v1376 = vadd.f32 %v1374, %v1375
    %v1377 = vadd.f32 %v1261, %v1376
    %v1378 = vmul.f32 %v1295, %v1297
    %v1379 = vmul.f32 %v1303, %v1305
    %v1380 = vadd.f32 %v1378, %v1379
    %v1381 = vadd.f32 %v1265, %v1380
    %v1382 = vmul.f32 %v1295, %v1305
    %v1383 = vmul.f32 %v1303, %v1297
    %v1384 = vsub.f32 %v1382, %v1383
    %v1385 = vadd.f32 %v1269, %v1384
    %v1386 = vmul.f32 %v1295, %v1307
    %v1387 = vmul.f32 %v1303, %v1309
    %v1388 = vadd.f32 %v1386, %v1387
    %v1389 = vmul.f32 %v1295, %v1309
    %v1390 = vmul.f32 %v1303, %v1307
    %v1391 = vsub.f32 %v1389, %v1390
    %v1392 = vadd.f32 %v1276, %v1388
    %v1393 = vadd.f32 %v1277, %v1391
    %v1394 = vmul.f32 %v1297, %v1297
    %v1395 = vmul.f32 %v1305, %v1305
    %v1396 = vadd.f32 %v1394, %v1395
    %v1397 = vadd.f32 %v1281, %v1396
    %v1398 = vmul.f32 %v1297, %v1307
    %v1399 = vmul.f32 %v1305, %v1309
    %v1400 = vadd.f32 %v1398, %v1399
    %v1401 = vmul.f32 %v1297, %v1309
    %v1402 = vmul.f32 %v1305, %v1307
    %v1403 = vsub.f32 %v1401, %v1402
    %v1404 = vadd.f32 %v1288, %v1400
    %v1405 = vadd.f32 %v1289, %v1403
    %s1406 = scalar_lea.vmem [#allocation2], 96
    %v1407 = vld [vmem:[%s1406] sm:$0xff]
    %s1408 = scalar_lea.vmem [#allocation2], 224
    %v1409 = vld [vmem:[%s1408] sm:$0xff]
    %s1410 = scalar_lea.vmem [#allocation2], 352
    %v1411 = vld [vmem:[%s1410] sm:$0xff]
    %s1412 = scalar_lea.vmem [#allocation2], 480
    %v1413 = vld [vmem:[%s1412] sm:$0xff]
    %s1414 = scalar_lea.vmem [#allocation2], 608
    %v1415 = vld [vmem:[%s1414] sm:$0xff]
    %s1416 = scalar_lea.vmem [#allocation2], 736
    %v1417 = vld [vmem:[%s1416] sm:$0xff]
    %s1418 = scalar_lea.vmem [#allocation2], 864
    %v1419 = vld [vmem:[%s1418] sm:$0xff]
    %s1420 = scalar_lea.vmem [#allocation2], 992
    %v1421 = vld [vmem:[%s1420] sm:$0xff]
    %s1422 = scalar_lea.vmem [#allocation5], 96
    %v1423 = vld [vmem:[%s1422] sm:$0xff]
    %s1424 = scalar_lea.vmem [#allocation5], 224
    %v1425 = vld [vmem:[%s1424] sm:$0xff]
    %v1426 = vmul.f32 %v1407, %v1407
    %v1427 = vmul.f32 %v1415, %v1415
    %v1428 = vadd.f32 %v1426, %v1427
    %v1429 = vadd.f32 %v1313, %v1428
    %v1430 = vmul.f32 %v1407, %v1409
    %v1431 = vmul.f32 %v1415, %v1417
    %v1432 = vadd.f32 %v1430, %v1431
    %v1433 = vadd.f32 %v1317, %v1432
    %v1434 = vmul.f32 %v1407, %v1417
    %v1435 = vmul.f32 %v1415, %v1409
    %v1436 = vsub.f32 %v1434, %v1435
    %v1437 = vadd.f32 %v1321, %v1436
    %v1438 = vmul.f32 %v1407, %v1411
    %v1439 = vmul.f32 %v1415, %v1419
    %v1440 = vadd.f32 %v1438, %v1439
    %v1441 = vadd.f32 %v1325, %v1440
    %v1442 = vmul.f32 %v1407, %v1419
    %v1443 = vmul.f32 %v1415, %v1411
    %v1444 = vsub.f32 %v1442, %v1443
    %v1445 = vadd.f32 %v1329, %v1444
    %v1446 = vmul.f32 %v1407, %v1413
    %v1447 = vmul.f32 %v1415, %v1421
    %v1448 = vadd.f32 %v1446, %v1447
    %v1449 = vadd.f32 %v1333, %v1448
    %v1450 = vmul.f32 %v1407, %v1421
    %v1451 = vmul.f32 %v1415, %v1413
    %v1452 = vsub.f32 %v1450, %v1451
    %v1453 = vadd.f32 %v1337, %v1452
    %v1454 = vmul.f32 %v1407, %v1423
    %v1455 = vmul.f32 %v1415, %v1425
    %v1456 = vadd.f32 %v1454, %v1455
    %v1457 = vmul.f32 %v1407, %v1425
    %v1458 = vmul.f32 %v1415, %v1423
    %v1459 = vsub.f32 %v1457, %v1458
    %v1460 = vadd.f32 %v1344, %v1456
    %v1461 = vadd.f32 %v1345, %v1459
    %v1462 = vmul.f32 %v1409, %v1409
    %v1463 = vmul.f32 %v1417, %v1417
    %v1464 = vadd.f32 %v1462, %v1463
    %v1465 = vadd.f32 %v1349, %v1464
    %v1466 = vmul.f32 %v1409, %v1411
    %v1467 = vmul.f32 %v1417, %v1419
    %v1468 = vadd.f32 %v1466, %v1467
    %v1469 = vadd.f32 %v1353, %v1468
    %v1470 = vmul.f32 %v1409, %v1419
    %v1471 = vmul.f32 %v1417, %v1411
    %v1472 = vsub.f32 %v1470, %v1471
    %v1473 = vadd.f32 %v1357, %v1472
    %v1474 = vmul.f32 %v1409, %v1413
    %v1475 = vmul.f32 %v1417, %v1421
    %v1476 = vadd.f32 %v1474, %v1475
    %v1477 = vadd.f32 %v1361, %v1476
    %v1478 = vmul.f32 %v1409, %v1421
    %v1479 = vmul.f32 %v1417, %v1413
    %v1480 = vsub.f32 %v1478, %v1479
    %v1481 = vadd.f32 %v1365, %v1480
    %v1482 = vmul.f32 %v1409, %v1423
    %v1483 = vmul.f32 %v1417, %v1425
    %v1484 = vadd.f32 %v1482, %v1483
    %v1485 = vmul.f32 %v1409, %v1425
    %v1486 = vmul.f32 %v1417, %v1423
    %v1487 = vsub.f32 %v1485, %v1486
    %v1488 = vadd.f32 %v1372, %v1484
    %v1489 = vadd.f32 %v1373, %v1487
    %v1490 = vmul.f32 %v1411, %v1411
    %v1491 = vmul.f32 %v1419, %v1419
    %v1492 = vadd.f32 %v1490, %v1491
    %v1493 = vadd.f32 %v1377, %v1492
    %v1494 = vmul.f32 %v1411, %v1413
    %v1495 = vmul.f32 %v1419, %v1421
    %v1496 = vadd.f32 %v1494, %v1495
    %v1497 = vadd.f32 %v1381, %v1496
    %v1498 = vmul.f32 %v1411, %v1421
    %v1499 = vmul.f32 %v1419, %v1413
    %v1500 = vsub.f32 %v1498, %v1499
    %v1501 = vadd.f32 %v1385, %v1500
    %v1502 = vmul.f32 %v1411, %v1423
    %v1503 = vmul.f32 %v1419, %v1425
    %v1504 = vadd.f32 %v1502, %v1503
    %v1505 = vmul.f32 %v1411, %v1425
    %v1506 = vmul.f32 %v1419, %v1423
    %v1507 = vsub.f32 %v1505, %v1506
    %v1508 = vadd.f32 %v1392, %v1504
    %v1509 = vadd.f32 %v1393, %v1507
    %v1510 = vmul.f32 %v1413, %v1413
    %v1511 = vmul.f32 %v1421, %v1421
    %v1512 = vadd.f32 %v1510, %v1511
    %v1513 = vadd.f32 %v1397, %v1512
    %v1514 = vmul.f32 %v1413, %v1423
    %v1515 = vmul.f32 %v1421, %v1425
    %v1516 = vadd.f32 %v1514, %v1515
    %v1517 = vmul.f32 %v1413, %v1425
    %v1518 = vmul.f32 %v1421, %v1423
    %v1519 = vsub.f32 %v1517, %v1518
    %v1520 = vadd.f32 %v1404, %v1516
    %v1521 = vadd.f32 %v1405, %v1519
    %s1522 = scalar_lea.vmem [#allocation2], 104
    %v1523 = vld [vmem:[%s1522] sm:$0xff]
    %s1524 = scalar_lea.vmem [#allocation2], 232
    %v1525 = vld [vmem:[%s1524] sm:$0xff]
    %s1526 = scalar_lea.vmem [#allocation2], 360
    %v1527 = vld [vmem:[%s1526] sm:$0xff]
    %s1528 = scalar_lea.vmem [#allocation2], 488
    %v1529 = vld [vmem:[%s1528] sm:$0xff]
    %s1530 = scalar_lea.vmem [#allocation2], 616
    %v1531 = vld [vmem:[%s1530] sm:$0xff]
    %s1532 = scalar_lea.vmem [#allocation2], 744
    %v1533 = vld [vmem:[%s1532] sm:$0xff]
    %s1534 = scalar_lea.vmem [#allocation2], 872
    %v1535 = vld [vmem:[%s1534] sm:$0xff]
    %s1536 = scalar_lea.vmem [#allocation2], 1000
    %v1537 = vld [vmem:[%s1536] sm:$0xff]
    %s1538 = scalar_lea.vmem [#allocation5], 104
    %v1539 = vld [vmem:[%s1538] sm:$0xff]
    %s1540 = scalar_lea.vmem [#allocation5], 232
    %v1541 = vld [vmem:[%s1540] sm:$0xff]
    %v1542 = vmul.f32 %v1523, %v1523
    %v1543 = vmul.f32 %v1531, %v1531
    %v1544 = vadd.f32 %v1542, %v1543
    %v1545 = vadd.f32 %v1429, %v1544
    %v1546 = vmul.f32 %v1523, %v1525
    %v1547 = vmul.f32 %v1531, %v1533
    %v1548 = vadd.f32 %v1546, %v1547
    %v1549 = vadd.f32 %v1433, %v1548
    %v1550 = vmul.f32 %v1523, %v1533
    %v1551 = vmul.f32 %v1531, %v1525
    %v1552 = vsub.f32 %v1550, %v1551
    %v1553 = vadd.f32 %v1437, %v1552
    %v1554 = vmul.f32 %v1523, %v1527
    %v1555 = vmul.f32 %v1531, %v1535
    %v1556 = vadd.f32 %v1554, %v1555
    %v1557 = vadd.f32 %v1441, %v1556
    %v1558 = vmul.f32 %v1523, %v1535
    %v1559 = vmul.f32 %v1531, %v1527
    %v1560 = vsub.f32 %v1558, %v1559
    %v1561 = vadd.f32 %v1445, %v1560
    %v1562 = vmul.f32 %v1523, %v1529
    %v1563 = vmul.f32 %v1531, %v1537
    %v1564 = vadd.f32 %v1562, %v1563
    %v1565 = vadd.f32 %v1449, %v1564
    %v1566 = vmul.f32 %v1523, %v1537
    %v1567 = vmul.f32 %v1531, %v1529
    %v1568 = vsub.f32 %v1566, %v1567
    %v1569 = vadd.f32 %v1453, %v1568
    %v1570 = vmul.f32 %v1523, %v1539
    %v1571 = vmul.f32 %v1531, %v1541
    %v1572 = vadd.f32 %v1570, %v1571
    %v1573 = vmul.f32 %v1523, %v1541
    %v1574 = vmul.f32 %v1531, %v1539
    %v1575 = vsub.f32 %v1573, %v1574
    %v1576 = vadd.f32 %v1460, %v1572
    %v1577 = vadd.f32 %v1461, %v1575
    %v1578 = vmul.f32 %v1525, %v1525
    %v1579 = vmul.f32 %v1533, %v1533
    %v1580 = vadd.f32 %v1578, %v1579
    %v1581 = vadd.f32 %v1465, %v1580
    %v1582 = vmul.f32 %v1525, %v1527
    %v1583 = vmul.f32 %v1533, %v1535
    %v1584 = vadd.f32 %v1582, %v1583
    %v1585 = vadd.f32 %v1469, %v1584
    %v1586 = vmul.f32 %v1525, %v1535
    %v1587 = vmul.f32 %v1533, %v1527
    %v1588 = vsub.f32 %v1586, %v1587
    %v1589 = vadd.f32 %v1473, %v1588
    %v1590 = vmul.f32 %v1525, %v1529
    %v1591 = vmul.f32 %v1533, %v1537
    %v1592 = vadd.f32 %v1590, %v1591
    %v1593 = vadd.f32 %v1477, %v1592
    %v1594 = vmul.f32 %v1525, %v1537
    %v1595 = vmul.f32 %v1533, %v1529
    %v1596 = vsub.f32 %v1594, %v1595
    %v1597 = vadd.f32 %v1481, %v1596
    %v1598 = vmul.f32 %v1525, %v1539
    %v1599 = vmul.f32 %v1533, %v1541
    %v1600 = vadd.f32 %v1598, %v1599
    %v1601 = vmul.f32 %v1525, %v1541
    %v1602 = vmul.f32 %v1533, %v1539
    %v1603 = vsub.f32 %v1601, %v1602
    %v1604 = vadd.f32 %v1488, %v1600
    %v1605 = vadd.f32 %v1489, %v1603
    %v1606 = vmul.f32 %v1527, %v1527
    %v1607 = vmul.f32 %v1535, %v1535
    %v1608 = vadd.f32 %v1606, %v1607
    %v1609 = vadd.f32 %v1493, %v1608
    %v1610 = vmul.f32 %v1527, %v1529
    %v1611 = vmul.f32 %v1535, %v1537
    %v1612 = vadd.f32 %v1610, %v1611
    %v1613 = vadd.f32 %v1497, %v1612
    %v1614 = vmul.f32 %v1527, %v1537
    %v1615 = vmul.f32 %v1535, %v1529
    %v1616 = vsub.f32 %v1614, %v1615
    %v1617 = vadd.f32 %v1501, %v1616
    %v1618 = vmul.f32 %v1527, %v1539
    %v1619 = vmul.f32 %v1535, %v1541
    %v1620 = vadd.f32 %v1618, %v1619
    %v1621 = vmul.f32 %v1527, %v1541
    %v1622 = vmul.f32 %v1535, %v1539
    %v1623 = vsub.f32 %v1621, %v1622
    %v1624 = vadd.f32 %v1508, %v1620
    %v1625 = vadd.f32 %v1509, %v1623
    %v1626 = vmul.f32 %v1529, %v1529
    %v1627 = vmul.f32 %v1537, %v1537
    %v1628 = vadd.f32 %v1626, %v1627
    %v1629 = vadd.f32 %v1513, %v1628
    %v1630 = vmul.f32 %v1529, %v1539
    %v1631 = vmul.f32 %v1537, %v1541
    %v1632 = vadd.f32 %v1630, %v1631
    %v1633 = vmul.f32 %v1529, %v1541
    %v1634 = vmul.f32 %v1537, %v1539
    %v1635 = vsub.f32 %v1633, %v1634
    %v1636 = vadd.f32 %v1520, %v1632
    %v1637 = vadd.f32 %v1521, %v1635
    %s1638 = scalar_lea.vmem [#allocation2], 112
    %v1639 = vld [vmem:[%s1638] sm:$0xff]
    %s1640 = scalar_lea.vmem [#allocation2], 240
    %v1641 = vld [vmem:[%s1640] sm:$0xff]
    %s1642 = scalar_lea.vmem [#allocation2], 368
    %v1643 = vld [vmem:[%s1642] sm:$0xff]
    %s1644 = scalar_lea.vmem [#allocation2], 496
    %v1645 = vld [vmem:[%s1644] sm:$0xff]
    %s1646 = scalar_lea.vmem [#allocation2], 624
    %v1647 = vld [vmem:[%s1646] sm:$0xff]
    %s1648 = scalar_lea.vmem [#allocation2], 752
    %v1649 = vld [vmem:[%s1648] sm:$0xff]
    %s1650 = scalar_lea.vmem [#allocation2], 880
    %v1651 = vld [vmem:[%s1650] sm:$0xff]
    %s1652 = scalar_lea.vmem [#allocation2], 1008
    %v1653 = vld [vmem:[%s1652] sm:$0xff]
    %s1654 = scalar_lea.vmem [#allocation5], 112
    %v1655 = vld [vmem:[%s1654] sm:$0xff]
    %s1656 = scalar_lea.vmem [#allocation5], 240
    %v1657 = vld [vmem:[%s1656] sm:$0xff]
    %v1658 = vmul.f32 %v1639, %v1639
    %v1659 = vmul.f32 %v1647, %v1647
    %v1660 = vadd.f32 %v1658, %v1659
    %v1661 = vadd.f32 %v1545, %v1660
    %v1662 = vmul.f32 %v1639, %v1641
    %v1663 = vmul.f32 %v1647, %v1649
    %v1664 = vadd.f32 %v1662, %v1663
    %v1665 = vadd.f32 %v1549, %v1664
    %v1666 = vmul.f32 %v1639, %v1649
    %v1667 = vmul.f32 %v1647, %v1641
    %v1668 = vsub.f32 %v1666, %v1667
    %v1669 = vadd.f32 %v1553, %v1668
    %v1670 = vmul.f32 %v1639, %v1643
    %v1671 = vmul.f32 %v1647, %v1651
    %v1672 = vadd.f32 %v1670, %v1671
    %v1673 = vadd.f32 %v1557, %v1672
    %v1674 = vmul.f32 %v1639, %v1651
    %v1675 = vmul.f32 %v1647, %v1643
    %v1676 = vsub.f32 %v1674, %v1675
    %v1677 = vadd.f32 %v1561, %v1676
    %v1678 = vmul.f32 %v1639, %v1645
    %v1679 = vmul.f32 %v1647, %v1653
    %v1680 = vadd.f32 %v1678, %v1679
    %v1681 = vadd.f32 %v1565, %v1680
    %v1682 = vmul.f32 %v1639, %v1653
    %v1683 = vmul.f32 %v1647, %v1645
    %v1684 = vsub.f32 %v1682, %v1683
    %v1685 = vadd.f32 %v1569, %v1684
    %v1686 = vmul.f32 %v1639, %v1655
    %v1687 = vmul.f32 %v1647, %v1657
    %v1688 = vadd.f32 %v1686, %v1687
    %v1689 = vmul.f32 %v1639, %v1657
    %v1690 = vmul.f32 %v1647, %v1655
    %v1691 = vsub.f32 %v1689, %v1690
    %v1692 = vadd.f32 %v1576, %v1688
    %v1693 = vadd.f32 %v1577, %v1691
    %v1694 = vmul.f32 %v1641, %v1641
    %v1695 = vmul.f32 %v1649, %v1649
    %v1696 = vadd.f32 %v1694, %v1695
    %v1697 = vadd.f32 %v1581, %v1696
    %v1698 = vmul.f32 %v1641, %v1643
    %v1699 = vmul.f32 %v1649, %v1651
    %v1700 = vadd.f32 %v1698, %v1699
    %v1701 = vadd.f32 %v1585, %v1700
    %v1702 = vmul.f32 %v1641, %v1651
    %v1703 = vmul.f32 %v1649, %v1643
    %v1704 = vsub.f32 %v1702, %v1703
    %v1705 = vadd.f32 %v1589, %v1704
    %v1706 = vmul.f32 %v1641, %v1645
    %v1707 = vmul.f32 %v1649, %v1653
    %v1708 = vadd.f32 %v1706, %v1707
    %v1709 = vadd.f32 %v1593, %v1708
    %v1710 = vmul.f32 %v1641, %v1653
    %v1711 = vmul.f32 %v1649, %v1645
    %v1712 = vsub.f32 %v1710, %v1711
    %v1713 = vadd.f32 %v1597, %v1712
    %v1714 = vmul.f32 %v1641, %v1655
    %v1715 = vmul.f32 %v1649, %v1657
    %v1716 = vadd.f32 %v1714, %v1715
    %v1717 = vmul.f32 %v1641, %v1657
    %v1718 = vmul.f32 %v1649, %v1655
    %v1719 = vsub.f32 %v1717, %v1718
    %v1720 = vadd.f32 %v1604, %v1716
    %v1721 = vadd.f32 %v1605, %v1719
    %v1722 = vmul.f32 %v1643, %v1643
    %v1723 = vmul.f32 %v1651, %v1651
    %v1724 = vadd.f32 %v1722, %v1723
    %v1725 = vadd.f32 %v1609, %v1724
    %v1726 = vmul.f32 %v1643, %v1645
    %v1727 = vmul.f32 %v1651, %v1653
    %v1728 = vadd.f32 %v1726, %v1727
    %v1729 = vadd.f32 %v1613, %v1728
    %v1730 = vmul.f32 %v1643, %v1653
    %v1731 = vmul.f32 %v1651, %v1645
    %v1732 = vsub.f32 %v1730, %v1731
    %v1733 = vadd.f32 %v1617, %v1732
    %v1734 = vmul.f32 %v1643, %v1655
    %v1735 = vmul.f32 %v1651, %v1657
    %v1736 = vadd.f32 %v1734, %v1735
    %v1737 = vmul.f32 %v1643, %v1657
    %v1738 = vmul.f32 %v1651, %v1655
    %v1739 = vsub.f32 %v1737, %v1738
    %v1740 = vadd.f32 %v1624, %v1736
    %v1741 = vadd.f32 %v1625, %v1739
    %v1742 = vmul.f32 %v1645, %v1645
    %v1743 = vmul.f32 %v1653, %v1653
    %v1744 = vadd.f32 %v1742, %v1743
    %v1745 = vadd.f32 %v1629, %v1744
    %v1746 = vmul.f32 %v1645, %v1655
    %v1747 = vmul.f32 %v1653, %v1657
    %v1748 = vadd.f32 %v1746, %v1747
    %v1749 = vmul.f32 %v1645, %v1657
    %v1750 = vmul.f32 %v1653, %v1655
    %v1751 = vsub.f32 %v1749, %v1750
    %v1752 = vadd.f32 %v1636, %v1748
    %v1753 = vadd.f32 %v1637, %v1751
    %s1754 = scalar_lea.vmem [#allocation2], 120
    %v1755 = vld [vmem:[%s1754] sm:$0xff]
    %s1756 = scalar_lea.vmem [#allocation2], 248
    %v1757 = vld [vmem:[%s1756] sm:$0xff]
    %s1758 = scalar_lea.vmem [#allocation2], 376
    %v1759 = vld [vmem:[%s1758] sm:$0xff]
    %s1760 = scalar_lea.vmem [#allocation2], 504
    %v1761 = vld [vmem:[%s1760] sm:$0xff]
    %s1762 = scalar_lea.vmem [#allocation2], 632
    %v1763 = vld [vmem:[%s1762] sm:$0xff]
    %s1764 = scalar_lea.vmem [#allocation2], 760
    %v1765 = vld [vmem:[%s1764] sm:$0xff]
    %s1766 = scalar_lea.vmem [#allocation2], 888
    %v1767 = vld [vmem:[%s1766] sm:$0xff]
    %s1768 = scalar_lea.vmem [#allocation2], 1016
    %v1769 = vld [vmem:[%s1768] sm:$0xff]
    %s1770 = scalar_lea.vmem [#allocation5], 120
    %v1771 = vld [vmem:[%s1770] sm:$0xff]
    %s1772 = scalar_lea.vmem [#allocation5], 248
    %v1773 = vld [vmem:[%s1772] sm:$0xff]
    %v1774 = vmul.f32 %v1755, %v1755
    %v1775 = vmul.f32 %v1763, %v1763
    %v1776 = vadd.f32 %v1774, %v1775
    %v1777 = vadd.f32 %v1661, %v1776
    %v1778 = vmul.f32 %v1755, %v1757
    %v1779 = vmul.f32 %v1763, %v1765
    %v1780 = vadd.f32 %v1778, %v1779
    %v1781 = vadd.f32 %v1665, %v1780
    %v1782 = vmul.f32 %v1755, %v1765
    %v1783 = vmul.f32 %v1763, %v1757
    %v1784 = vsub.f32 %v1782, %v1783
    %v1785 = vadd.f32 %v1669, %v1784
    %v1786 = vmul.f32 %v1755, %v1759
    %v1787 = vmul.f32 %v1763, %v1767
    %v1788 = vadd.f32 %v1786, %v1787
    %v1789 = vadd.f32 %v1673, %v1788
    %v1790 = vmul.f32 %v1755, %v1767
    %v1791 = vmul.f32 %v1763, %v1759
    %v1792 = vsub.f32 %v1790, %v1791
    %v1793 = vadd.f32 %v1677, %v1792
    %v1794 = vmul.f32 %v1755, %v1761
    %v1795 = vmul.f32 %v1763, %v1769
    %v1796 = vadd.f32 %v1794, %v1795
    %v1797 = vadd.f32 %v1681, %v1796
    %v1798 = vmul.f32 %v1755, %v1769
    %v1799 = vmul.f32 %v1763, %v1761
    %v1800 = vsub.f32 %v1798, %v1799
    %v1801 = vadd.f32 %v1685, %v1800
    %v1802 = vmul.f32 %v1755, %v1771
    %v1803 = vmul.f32 %v1763, %v1773
    %v1804 = vadd.f32 %v1802, %v1803
    %v1805 = vmul.f32 %v1755, %v1773
    %v1806 = vmul.f32 %v1763, %v1771
    %v1807 = vsub.f32 %v1805, %v1806
    %v1808 = vadd.f32 %v1692, %v1804
    %v1809 = vadd.f32 %v1693, %v1807
    %v1810 = vmul.f32 %v1757, %v1757
    %v1811 = vmul.f32 %v1765, %v1765
    %v1812 = vadd.f32 %v1810, %v1811
    %v1813 = vadd.f32 %v1697, %v1812
    %v1814 = vmul.f32 %v1757, %v1759
    %v1815 = vmul.f32 %v1765, %v1767
    %v1816 = vadd.f32 %v1814, %v1815
    %v1817 = vadd.f32 %v1701, %v1816
    %v1818 = vmul.f32 %v1757, %v1767
    %v1819 = vmul.f32 %v1765, %v1759
    %v1820 = vsub.f32 %v1818, %v1819
    %v1821 = vadd.f32 %v1705, %v1820
    %v1822 = vmul.f32 %v1757, %v1761
    %v1823 = vmul.f32 %v1765, %v1769
    %v1824 = vadd.f32 %v1822, %v1823
    %v1825 = vadd.f32 %v1709, %v1824
    %v1826 = vmul.f32 %v1757, %v1769
    %v1827 = vmul.f32 %v1765, %v1761
    %v1828 = vsub.f32 %v1826, %v1827
    %v1829 = vadd.f32 %v1713, %v1828
    %v1830 = vmul.f32 %v1757, %v1771
    %v1831 = vmul.f32 %v1765, %v1773
    %v1832 = vadd.f32 %v1830, %v1831
    %v1833 = vmul.f32 %v1757, %v1773
    %v1834 = vmul.f32 %v1765, %v1771
    %v1835 = vsub.f32 %v1833, %v1834
    %v1836 = vadd.f32 %v1720, %v1832
    %v1837 = vadd.f32 %v1721, %v1835
    %v1838 = vmul.f32 %v1759, %v1759
    %v1839 = vmul.f32 %v1767, %v1767
    %v1840 = vadd.f32 %v1838, %v1839
    %v1841 = vadd.f32 %v1725, %v1840
    %v1842 = vmul.f32 %v1759, %v1761
    %v1843 = vmul.f32 %v1767, %v1769
    %v1844 = vadd.f32 %v1842, %v1843
    %v1845 = vadd.f32 %v1729, %v1844
    %v1846 = vmul.f32 %v1759, %v1769
    %v1847 = vmul.f32 %v1767, %v1761
    %v1848 = vsub.f32 %v1846, %v1847
    %v1849 = vadd.f32 %v1733, %v1848
    %v1850 = vmul.f32 %v1759, %v1771
    %v1851 = vmul.f32 %v1767, %v1773
    %v1852 = vadd.f32 %v1850, %v1851
    %v1853 = vmul.f32 %v1759, %v1773
    %v1854 = vmul.f32 %v1767, %v1771
    %v1855 = vsub.f32 %v1853, %v1854
    %v1856 = vadd.f32 %v1740, %v1852
    %v1857 = vadd.f32 %v1741, %v1855
    %v1858 = vmul.f32 %v1761, %v1761
    %v1859 = vmul.f32 %v1769, %v1769
    %v1860 = vadd.f32 %v1858, %v1859
    %v1861 = vadd.f32 %v1745, %v1860
    %v1862 = vmul.f32 %v1761, %v1771
    %v1863 = vmul.f32 %v1769, %v1773
    %v1864 = vadd.f32 %v1862, %v1863
    %v1865 = vmul.f32 %v1761, %v1773
    %v1866 = vmul.f32 %v1769, %v1771
    %v1867 = vsub.f32 %v1865, %v1866
    %v1868 = vadd.f32 %v1752, %v1864
    %v1869 = vadd.f32 %v1753, %v1867
    %v1870 = vadd.f32 %v1777, 1.0
    %v1871 = vadd.f32 %v1813, 1.0
    %v1872 = vadd.f32 %v1841, 1.0
    %v1873 = vadd.f32 %v1861, 1.0
    %v1874 = vmax.f32 %v1870, 1e-12
    %v1875 = vrsqrt.pop %v1874
    %v1876 = vsub.f32 0.0, %v1785
    %v1877 = vmul.f32 %v1781, %v1875
    %v1878 = vmul.f32 %v1876, %v1875
    %v1879 = vsub.f32 0.0, %v1793
    %v1880 = vmul.f32 %v1789, %v1875
    %v1881 = vmul.f32 %v1879, %v1875
    %v1882 = vsub.f32 0.0, %v1801
    %v1883 = vmul.f32 %v1797, %v1875
    %v1884 = vmul.f32 %v1882, %v1875
    %v1885 = vmul.f32 %v1877, %v1877
    %v1886 = vmul.f32 %v1878, %v1878
    %v1887 = vadd.f32 %v1885, %v1886
    %v1888 = vsub.f32 %v1871, %v1887
    %v1889 = vmax.f32 %v1888, 1e-12
    %v1890 = vrsqrt.pop %v1889
    %v1891 = vsub.f32 0.0, %v1821
    %v1892 = vmul.f32 %v1880, %v1877
    %v1893 = vmul.f32 %v1881, %v1878
    %v1894 = vadd.f32 %v1892, %v1893
    %v1895 = vsub.f32 %v1817, %v1894
    %v1896 = vmul.f32 %v1881, %v1877
    %v1897 = vmul.f32 %v1880, %v1878
    %v1898 = vsub.f32 %v1896, %v1897
    %v1899 = vsub.f32 %v1891, %v1898
    %v1900 = vmul.f32 %v1895, %v1890
    %v1901 = vmul.f32 %v1899, %v1890
    %v1902 = vsub.f32 0.0, %v1829
    %v1903 = vmul.f32 %v1883, %v1877
    %v1904 = vmul.f32 %v1884, %v1878
    %v1905 = vadd.f32 %v1903, %v1904
    %v1906 = vsub.f32 %v1825, %v1905
    %v1907 = vmul.f32 %v1884, %v1877
    %v1908 = vmul.f32 %v1883, %v1878
    %v1909 = vsub.f32 %v1907, %v1908
    %v1910 = vsub.f32 %v1902, %v1909
    %v1911 = vmul.f32 %v1906, %v1890
    %v1912 = vmul.f32 %v1910, %v1890
    %v1913 = vmul.f32 %v1880, %v1880
    %v1914 = vmul.f32 %v1881, %v1881
    %v1915 = vadd.f32 %v1913, %v1914
    %v1916 = vsub.f32 %v1872, %v1915
    %v1917 = vmul.f32 %v1900, %v1900
    %v1918 = vmul.f32 %v1901, %v1901
    %v1919 = vadd.f32 %v1917, %v1918
    %v1920 = vsub.f32 %v1916, %v1919
    %v1921 = vmax.f32 %v1920, 1e-12
    %v1922 = vrsqrt.pop %v1921
    %v1923 = vsub.f32 0.0, %v1849
    %v1924 = vmul.f32 %v1883, %v1880
    %v1925 = vmul.f32 %v1884, %v1881
    %v1926 = vadd.f32 %v1924, %v1925
    %v1927 = vsub.f32 %v1845, %v1926
    %v1928 = vmul.f32 %v1884, %v1880
    %v1929 = vmul.f32 %v1883, %v1881
    %v1930 = vsub.f32 %v1928, %v1929
    %v1931 = vsub.f32 %v1923, %v1930
    %v1932 = vmul.f32 %v1911, %v1900
    %v1933 = vmul.f32 %v1912, %v1901
    %v1934 = vadd.f32 %v1932, %v1933
    %v1935 = vsub.f32 %v1927, %v1934
    %v1936 = vmul.f32 %v1912, %v1900
    %v1937 = vmul.f32 %v1911, %v1901
    %v1938 = vsub.f32 %v1936, %v1937
    %v1939 = vsub.f32 %v1931, %v1938
    %v1940 = vmul.f32 %v1935, %v1922
    %v1941 = vmul.f32 %v1939, %v1922
    %v1942 = vmul.f32 %v1883, %v1883
    %v1943 = vmul.f32 %v1884, %v1884
    %v1944 = vadd.f32 %v1942, %v1943
    %v1945 = vsub.f32 %v1873, %v1944
    %v1946 = vmul.f32 %v1911, %v1911
    %v1947 = vmul.f32 %v1912, %v1912
    %v1948 = vadd.f32 %v1946, %v1947
    %v1949 = vsub.f32 %v1945, %v1948
    %v1950 = vmul.f32 %v1940, %v1940
    %v1951 = vmul.f32 %v1941, %v1941
    %v1952 = vadd.f32 %v1950, %v1951
    %v1953 = vsub.f32 %v1949, %v1952
    %v1954 = vmax.f32 %v1953, 1e-12
    %v1955 = vrsqrt.pop %v1954
    %v1956 = vmul.f32 %v1808, %v1875
    %v1957 = vmul.f32 %v1809, %v1875
    %v1958 = vmul.f32 %v1877, %v1956
    %v1959 = vmul.f32 %v1878, %v1957
    %v1960 = vsub.f32 %v1958, %v1959
    %v1961 = vsub.f32 %v1836, %v1960
    %v1962 = vmul.f32 %v1877, %v1957
    %v1963 = vmul.f32 %v1878, %v1956
    %v1964 = vadd.f32 %v1962, %v1963
    %v1965 = vsub.f32 %v1837, %v1964
    %v1966 = vmul.f32 %v1961, %v1890
    %v1967 = vmul.f32 %v1965, %v1890
    %v1968 = vmul.f32 %v1880, %v1956
    %v1969 = vmul.f32 %v1881, %v1957
    %v1970 = vsub.f32 %v1968, %v1969
    %v1971 = vsub.f32 %v1856, %v1970
    %v1972 = vmul.f32 %v1880, %v1957
    %v1973 = vmul.f32 %v1881, %v1956
    %v1974 = vadd.f32 %v1972, %v1973
    %v1975 = vsub.f32 %v1857, %v1974
    %v1976 = vmul.f32 %v1900, %v1966
    %v1977 = vmul.f32 %v1901, %v1967
    %v1978 = vsub.f32 %v1976, %v1977
    %v1979 = vsub.f32 %v1971, %v1978
    %v1980 = vmul.f32 %v1900, %v1967
    %v1981 = vmul.f32 %v1901, %v1966
    %v1982 = vadd.f32 %v1980, %v1981
    %v1983 = vsub.f32 %v1975, %v1982
    %v1984 = vmul.f32 %v1979, %v1922
    %v1985 = vmul.f32 %v1983, %v1922
    %v1986 = vmul.f32 %v1883, %v1956
    %v1987 = vmul.f32 %v1884, %v1957
    %v1988 = vsub.f32 %v1986, %v1987
    %v1989 = vsub.f32 %v1868, %v1988
    %v1990 = vmul.f32 %v1883, %v1957
    %v1991 = vmul.f32 %v1884, %v1956
    %v1992 = vadd.f32 %v1990, %v1991
    %v1993 = vsub.f32 %v1869, %v1992
    %v1994 = vmul.f32 %v1911, %v1966
    %v1995 = vmul.f32 %v1912, %v1967
    %v1996 = vsub.f32 %v1994, %v1995
    %v1997 = vsub.f32 %v1989, %v1996
    %v1998 = vmul.f32 %v1911, %v1967
    %v1999 = vmul.f32 %v1912, %v1966
    %v2000 = vadd.f32 %v1998, %v1999
    %v2001 = vsub.f32 %v1993, %v2000
    %v2002 = vmul.f32 %v1940, %v1984
    %v2003 = vmul.f32 %v1941, %v1985
    %v2004 = vsub.f32 %v2002, %v2003
    %v2005 = vsub.f32 %v1997, %v2004
    %v2006 = vmul.f32 %v1940, %v1985
    %v2007 = vmul.f32 %v1941, %v1984
    %v2008 = vadd.f32 %v2006, %v2007
    %v2009 = vsub.f32 %v2001, %v2008
    %v2010 = vmul.f32 %v2005, %v1955
    %v2011 = vmul.f32 %v2009, %v1955
    %v2012 = vmul.f32 %v2010, %v1955
    %v2013 = vmul.f32 %v2011, %v1955
    %v2014 = vmul.f32 %v1940, %v2012
    %v2015 = vmul.f32 %v1941, %v2013
    %v2016 = vadd.f32 %v2014, %v2015
    %v2017 = vsub.f32 %v1984, %v2016
    %v2018 = vmul.f32 %v1940, %v2013
    %v2019 = vmul.f32 %v1941, %v2012
    %v2020 = vsub.f32 %v2018, %v2019
    %v2021 = vsub.f32 %v1985, %v2020
    %v2022 = vmul.f32 %v2017, %v1922
    %v2023 = vmul.f32 %v2021, %v1922
    %v2024 = vmul.f32 %v1900, %v2022
    %v2025 = vmul.f32 %v1901, %v2023
    %v2026 = vadd.f32 %v2024, %v2025
    %v2027 = vsub.f32 %v1966, %v2026
    %v2028 = vmul.f32 %v1900, %v2023
    %v2029 = vmul.f32 %v1901, %v2022
    %v2030 = vsub.f32 %v2028, %v2029
    %v2031 = vsub.f32 %v1967, %v2030
    %v2032 = vmul.f32 %v1911, %v2012
    %v2033 = vmul.f32 %v1912, %v2013
    %v2034 = vadd.f32 %v2032, %v2033
    %v2035 = vsub.f32 %v2027, %v2034
    %v2036 = vmul.f32 %v1911, %v2013
    %v2037 = vmul.f32 %v1912, %v2012
    %v2038 = vsub.f32 %v2036, %v2037
    %v2039 = vsub.f32 %v2031, %v2038
    %v2040 = vmul.f32 %v2035, %v1890
    %v2041 = vmul.f32 %v2039, %v1890
    %v2042 = vmul.f32 %v1877, %v2040
    %v2043 = vmul.f32 %v1878, %v2041
    %v2044 = vadd.f32 %v2042, %v2043
    %v2045 = vsub.f32 %v1956, %v2044
    %v2046 = vmul.f32 %v1877, %v2041
    %v2047 = vmul.f32 %v1878, %v2040
    %v2048 = vsub.f32 %v2046, %v2047
    %v2049 = vsub.f32 %v1957, %v2048
    %v2050 = vmul.f32 %v1880, %v2022
    %v2051 = vmul.f32 %v1881, %v2023
    %v2052 = vadd.f32 %v2050, %v2051
    %v2053 = vsub.f32 %v2045, %v2052
    %v2054 = vmul.f32 %v1880, %v2023
    %v2055 = vmul.f32 %v1881, %v2022
    %v2056 = vsub.f32 %v2054, %v2055
    %v2057 = vsub.f32 %v2049, %v2056
    %v2058 = vmul.f32 %v1883, %v2012
    %v2059 = vmul.f32 %v1884, %v2013
    %v2060 = vadd.f32 %v2058, %v2059
    %v2061 = vsub.f32 %v2053, %v2060
    %v2062 = vmul.f32 %v1883, %v2013
    %v2063 = vmul.f32 %v1884, %v2012
    %v2064 = vsub.f32 %v2062, %v2063
    %v2065 = vsub.f32 %v2057, %v2064
    %v2066 = vmul.f32 %v2061, %v1875
    %v2067 = vmul.f32 %v2065, %v1875
    %v2068 = vmul.f32 %v1875, %v1875
    %v2069 = vmul.f32 %v1877, %v1875
    %v2070 = vmul.f32 %v1878, %v1875
    %v2071 = vsub.f32 0.0, %v2069
    %v2072 = vmul.f32 %v2071, %v1890
    %v2073 = vsub.f32 0.0, %v2070
    %v2074 = vmul.f32 %v2073, %v1890
    %v2075 = vmul.f32 %v2072, %v2072
    %v2076 = vadd.f32 %v2068, %v2075
    %v2077 = vmul.f32 %v2074, %v2074
    %v2078 = vadd.f32 %v2076, %v2077
    %v2079 = vmul.f32 %v1880, %v1875
    %v2080 = vmul.f32 %v1881, %v1875
    %v2081 = vmul.f32 %v1900, %v2072
    %v2082 = vadd.f32 %v2079, %v2081
    %v2083 = vmul.f32 %v1901, %v2074
    %v2084 = vsub.f32 %v2082, %v2083
    %v2085 = vmul.f32 %v1900, %v2074
    %v2086 = vadd.f32 %v2080, %v2085
    %v2087 = vmul.f32 %v1901, %v2072
    %v2088 = vadd.f32 %v2086, %v2087
    %v2089 = vsub.f32 0.0, %v2084
    %v2090 = vmul.f32 %v2089, %v1922
    %v2091 = vsub.f32 0.0, %v2088
    %v2092 = vmul.f32 %v2091, %v1922
    %v2093 = vmul.f32 %v2090, %v2090
    %v2094 = vadd.f32 %v2078, %v2093
    %v2095 = vmul.f32 %v2092, %v2092
    %v2096 = vadd.f32 %v2094, %v2095
    %v2097 = vmul.f32 %v1883, %v1875
    %v2098 = vmul.f32 %v1884, %v1875
    %v2099 = vmul.f32 %v1911, %v2072
    %v2100 = vadd.f32 %v2097, %v2099
    %v2101 = vmul.f32 %v1912, %v2074
    %v2102 = vsub.f32 %v2100, %v2101
    %v2103 = vmul.f32 %v1911, %v2074
    %v2104 = vadd.f32 %v2098, %v2103
    %v2105 = vmul.f32 %v1912, %v2072
    %v2106 = vadd.f32 %v2104, %v2105
    %v2107 = vmul.f32 %v1940, %v2090
    %v2108 = vadd.f32 %v2102, %v2107
    %v2109 = vmul.f32 %v1941, %v2092
    %v2110 = vsub.f32 %v2108, %v2109
    %v2111 = vmul.f32 %v1940, %v2092
    %v2112 = vadd.f32 %v2106, %v2111
    %v2113 = vmul.f32 %v1941, %v2090
    %v2114 = vadd.f32 %v2112, %v2113
    %v2115 = vsub.f32 0.0, %v2110
    %v2116 = vmul.f32 %v2115, %v1955
    %v2117 = vsub.f32 0.0, %v2114
    %v2118 = vmul.f32 %v2117, %v1955
    %v2119 = vmul.f32 %v2116, %v2116
    %v2120 = vadd.f32 %v2096, %v2119
    %v2121 = vmul.f32 %v2118, %v2118
    %v2122 = vadd.f32 %v2120, %v2121
    %v2123 = vmul.f32 %v1890, %v1890
    %v2124 = vmul.f32 %v1900, %v1890
    %v2125 = vmul.f32 %v1901, %v1890
    %v2126 = vsub.f32 0.0, %v2124
    %v2127 = vmul.f32 %v2126, %v1922
    %v2128 = vsub.f32 0.0, %v2125
    %v2129 = vmul.f32 %v2128, %v1922
    %v2130 = vmul.f32 %v2127, %v2127
    %v2131 = vadd.f32 %v2123, %v2130
    %v2132 = vmul.f32 %v2129, %v2129
    %v2133 = vadd.f32 %v2131, %v2132
    %v2134 = vmul.f32 %v1911, %v1890
    %v2135 = vmul.f32 %v1912, %v1890
    %v2136 = vmul.f32 %v1940, %v2127
    %v2137 = vadd.f32 %v2134, %v2136
    %v2138 = vmul.f32 %v1941, %v2129
    %v2139 = vsub.f32 %v2137, %v2138
    %v2140 = vmul.f32 %v1940, %v2129
    %v2141 = vadd.f32 %v2135, %v2140
    %v2142 = vmul.f32 %v1941, %v2127
    %v2143 = vadd.f32 %v2141, %v2142
    %v2144 = vsub.f32 0.0, %v2139
    %v2145 = vmul.f32 %v2144, %v1955
    %v2146 = vsub.f32 0.0, %v2143
    %v2147 = vmul.f32 %v2146, %v1955
    %v2148 = vmul.f32 %v2145, %v2145
    %v2149 = vadd.f32 %v2133, %v2148
    %v2150 = vmul.f32 %v2147, %v2147
    %v2151 = vadd.f32 %v2149, %v2150
    %v2152 = vmul.f32 %v1922, %v1922
    %v2153 = vmul.f32 %v1940, %v1922
    %v2154 = vmul.f32 %v1941, %v1922
    %v2155 = vsub.f32 0.0, %v2153
    %v2156 = vmul.f32 %v2155, %v1955
    %v2157 = vsub.f32 0.0, %v2154
    %v2158 = vmul.f32 %v2157, %v1955
    %v2159 = vmul.f32 %v2156, %v2156
    %v2160 = vadd.f32 %v2152, %v2159
    %v2161 = vmul.f32 %v2158, %v2158
    %v2162 = vadd.f32 %v2160, %v2161
    %v2163 = vmul.f32 %v1955, %v1955
    %v2164 = vmax.f32 %v2122, 1e-20
    %v2165 = vsub.f32 1.0, %v2164
    %v2166 = vmax.f32 %v2165, 1e-20
    %v2167 = vrcp.pop %v2166
    %v2168 = vmul.f32 %v2166, %v2167
    %v2169 = vsub.f32 2.0, %v2168
    %v2170 = vmul.f32 %v2167, %v2169
    %v2171 = vmul.f32 %v2066, %v2170
    %v2172 = vmul.f32 %v2067, %v2170
    %v2173 = vrcp.pop %v2164
    %v2174 = vmul.f32 %v2164, %v2173
    %v2175 = vsub.f32 2.0, %v2174
    %v2176 = vmul.f32 %v2173, %v2175
    %v2177 = vmul.f32 %v2166, %v2176
    %v2178 = vmul.f32 %v2171, -2.828427
    %v2179 = vmul.f32 %v2172, -2.828427
    %v2180 = vmul.f32 %v2178, %v2177
    %2181 = vst [vmem:[#allocation7] sm:$0xff] %v2180
    %v2182 = vmul.f32 %v2179, %v2177
    %s2183 = scalar_lea.vmem [#allocation7], 8
    %2184 = vst [vmem:[%s2183] sm:$0xff] %v2182
    %v2185 = vmax.f32 %v2151, 1e-20
    %v2186 = vsub.f32 1.0, %v2185
    %v2187 = vmax.f32 %v2186, 1e-20
    %v2188 = vrcp.pop %v2187
    %v2189 = vmul.f32 %v2187, %v2188
    %v2190 = vsub.f32 2.0, %v2189
    %v2191 = vmul.f32 %v2188, %v2190
    %v2192 = vmul.f32 %v2040, %v2191
    %v2193 = vmul.f32 %v2041, %v2191
    %v2194 = vrcp.pop %v2185
    %v2195 = vmul.f32 %v2185, %v2194
    %v2196 = vsub.f32 2.0, %v2195
    %v2197 = vmul.f32 %v2194, %v2196
    %v2198 = vmul.f32 %v2187, %v2197
    %v2199 = vmul.f32 %v2192, -2.828427
    %v2200 = vmul.f32 %v2193, -2.828427
    %v2201 = vmul.f32 %v2199, %v2198
    %s2202 = scalar_lea.vmem [#allocation7], 16
    %2203 = vst [vmem:[%s2202] sm:$0xff] %v2201
    %v2204 = vmul.f32 %v2200, %v2198
    %s2205 = scalar_lea.vmem [#allocation7], 24
    %2206 = vst [vmem:[%s2205] sm:$0xff] %v2204
    %v2207 = vmax.f32 %v2162, 1e-20
    %v2208 = vsub.f32 1.0, %v2207
    %v2209 = vmax.f32 %v2208, 1e-20
    %v2210 = vrcp.pop %v2209
    %v2211 = vmul.f32 %v2209, %v2210
    %v2212 = vsub.f32 2.0, %v2211
    %v2213 = vmul.f32 %v2210, %v2212
    %v2214 = vmul.f32 %v2022, %v2213
    %v2215 = vmul.f32 %v2023, %v2213
    %v2216 = vrcp.pop %v2207
    %v2217 = vmul.f32 %v2207, %v2216
    %v2218 = vsub.f32 2.0, %v2217
    %v2219 = vmul.f32 %v2216, %v2218
    %v2220 = vmul.f32 %v2209, %v2219
    %v2221 = vmul.f32 %v2214, -2.828427
    %v2222 = vmul.f32 %v2215, -2.828427
    %v2223 = vmul.f32 %v2221, %v2220
    %s2224 = scalar_lea.vmem [#allocation7], 32
    %2225 = vst [vmem:[%s2224] sm:$0xff] %v2223
    %v2226 = vmul.f32 %v2222, %v2220
    %s2227 = scalar_lea.vmem [#allocation7], 40
    %2228 = vst [vmem:[%s2227] sm:$0xff] %v2226
    %v2229 = vmax.f32 %v2163, 1e-20
    %v2230 = vsub.f32 1.0, %v2229
    %v2231 = vmax.f32 %v2230, 1e-20
    %v2232 = vrcp.pop %v2231
    %v2233 = vmul.f32 %v2231, %v2232
    %v2234 = vsub.f32 2.0, %v2233
    %v2235 = vmul.f32 %v2232, %v2234
    %v2236 = vmul.f32 %v2012, %v2235
    %v2237 = vmul.f32 %v2013, %v2235
    %v2238 = vrcp.pop %v2229
    %v2239 = vmul.f32 %v2229, %v2238
    %v2240 = vsub.f32 2.0, %v2239
    %v2241 = vmul.f32 %v2238, %v2240
    %v2242 = vmul.f32 %v2231, %v2241
    %v2243 = vmul.f32 %v2236, -2.828427
    %v2244 = vmul.f32 %v2237, -2.828427
    %v2245 = vmul.f32 %v2243, %v2242
    %s2246 = scalar_lea.vmem [#allocation7], 48
    %2247 = vst [vmem:[%s2246] sm:$0xff] %v2245
    %v2248 = vmul.f32 %v2244, %v2242
    %s2249 = scalar_lea.vmem [#allocation7], 56
    %2250 = vst [vmem:[%s2249] sm:$0xff] %v2248
    // Predicated region
    $region18: #{tpu_custom_call.1} parent=1 // pred_check
      _
    $region19: #{tpu_custom_call.1} parent=1 // pred_check_branch
      %2252 = sbr.rel (0) target = $region21
    $region20: #{tpu_custom_call.1} parent=1 // pred_region
      %s2254 = ssub.s32 1024, 1024
      %2255 = vsyncadd [#allocation4], %s2254
      %s2256 = sshll.u32 [#allocation7], 4
      %s2257 = int_to_ptr.vmem [resolvable:$true] %s2256
      %2262 = dma.vmem_to_hbm [thread:$0]  %s2257, 1024, %s2, [#allocation4], 128, 128, 8
    $region21: #{tpu_custom_call.1} parent=1 // pred_fallthru
      _
    // Predicated region
    $region22: #{tpu_custom_call.1} parent=1 // pred_check
      _
    $region23: #{tpu_custom_call.1} parent=1 // pred_check_branch
      %2264 = sbr.rel (0) target = $region25
    $region24: #{tpu_custom_call.1} parent=1 // pred_region
      %2265 = dma.done [#allocation4], 1024
    $region25: #{tpu_custom_call.1} parent=1 // pred_fallthru
      _
    %2266 = vsyncpa [#allocation3], 1
    %2267 = vsyncpa [#allocation6], 1
    %2268 = vsyncpa [#allocation4], 1

</llo_original>
